<compile_context>
chip_gen: v6e
topology: v6e:2x2x1
jax: 0.10.0
libtpu: 0.0.40
codegen_flags: <defaults>
</compile_context>

<pallas_src>
import jax
import jax.numpy as jnp
from jax.experimental import pallas as pl
from jax.experimental.pallas import tpu as pltpu

IN_FEATURES = 196608   # = 3 * 256 * 256, as in the PyTorch module
OUT_FEATURES = 10

TK = 32768                          # K tile (lane dim); 196608 = 6 * 32768
assert IN_FEATURES % TK == 0
K_STEPS = IN_FEATURES // TK         # 6 reduction steps


def _linear_kernel(x_ref, w_ref, b_ref, o_ref, acc_ref):
    """VPU broadcast-MAC linear layer.

    x_ref : (B, TK)          f32   activation tile
    w_ref : (OUT, TK)        f32   weight tile, native PyTorch (out, in) layout
    b_ref : (1, OUT)         f32   bias row
    o_ref : (B, OUT)         f32   output block (resident across the k axis)
    acc_ref: (OUT, B)        f32   VMEM scratch accumulator (column per batch row)
    """
    k = pl.program_id(0)
    n_batch = x_ref.shape[0]

    @pl.when(k == 0)
    def _init():
        acc_ref[...] = jnp.zeros_like(acc_ref)

    w = w_ref[...]                                           # (OUT, TK)
    for b in range(n_batch):                                 # static unroll (B tiny)
        # (1, TK) * (OUT, TK) -> (OUT, TK): pure VPU, no weight transpose.
        prod = x_ref[pl.ds(b, 1), :] * w
        # Lane reduction -> (OUT, 1) partial sums for this batch row.
        acc_ref[:, pl.ds(b, 1)] += jnp.sum(prod, axis=-1, keepdims=True)

    @pl.when(k == pl.num_programs(0) - 1)
    def _finalize():
        # Tiny (OUT, B) -> (B, OUT) relayout + bias fold; no XLA epilogue needed.
        o_ref[...] = (jnp.transpose(acc_ref[...]) + b_ref[...]).astype(o_ref.dtype)


def _ocean_forward(x, weight, bias):
    """x: (B, 196608) f32; weight: (10, 196608) f32; bias: (10,) f32 -> (B, 10) f32."""
    B, K = x.shape
    assert K == IN_FEATURES
    assert weight.shape == (OUT_FEATURES, IN_FEATURES)
    assert bias.shape == (OUT_FEATURES,)

    bias_row = bias.reshape(1, OUT_FEATURES).astype(jnp.float32)

    cost = pl.CostEstimate(
        flops=2 * B * K * OUT_FEATURES,
        transcendentals=0,
        bytes_accessed=4 * (B * K + OUT_FEATURES * K + OUT_FEATURES + B * OUT_FEATURES),
    )

    return pl.pallas_call(
        _linear_kernel,
        out_shape=jax.ShapeDtypeStruct((B, OUT_FEATURES), jnp.float32),
        grid_spec=pltpu.PrefetchScalarGridSpec(
            num_scalar_prefetch=0,
            grid=(K_STEPS,),
            in_specs=[
                # x tile: (B, TK); B equals the full array dim -> legal even for B=2.
                pl.BlockSpec((B, TK), lambda k: (0, k)),
                # weight tile: (OUT, TK), native layout, no padding.
                pl.BlockSpec((OUT_FEATURES, TK), lambda k: (0, k)),
                # bias row, same (tiny) block every step.
                pl.BlockSpec((1, OUT_FEATURES), lambda k: (0, 0)),
            ],
            # Output block resident across the whole reduction axis.
            out_specs=pl.BlockSpec((B, OUT_FEATURES), lambda k: (0, 0)),
            scratch_shapes=[pltpu.VMEM((OUT_FEATURES, B), jnp.float32)],
        ),
        compiler_params=pltpu.CompilerParams(
            dimension_semantics=("arbitrary",),
            vmem_limit_bytes=32 * 1024 * 1024,
        ),
        cost_estimate=cost,
    )(x, weight, bias_row)


ocean_forward = jax.jit(_ocean_forward)


if __name__ == "__main__":
    key = jax.random.PRNGKey(0)
    kx, kw, kb = jax.random.split(key, 3)

    batch = 2
    x = jax.random.normal(kx, (batch, IN_FEATURES), dtype=jnp.float32)

    # Deterministic parameter init (mimics nn.Linear's uniform(-1/sqrt(K), 1/sqrt(K))).
    bound = 1.0 / (IN_FEATURES ** 0.5)
    weight = jax.random.uniform(
        kw, (OUT_FEATURES, IN_FEATURES), jnp.float32, -bound, bound
    )
    bias = jax.random.uniform(kb, (OUT_FEATURES,), jnp.float32, -bound, bound)

    out = ocean_forward(x, weight, bias)
    jax.block_until_ready(out)

    # Reference check against plain (full-precision) JAX.
    ref = jnp.dot(x, weight.T, precision=jax.lax.Precision.HIGHEST) + bias
    assert out.shape == (batch, OUT_FEATURES)
    assert jnp.allclose(out, ref, atol=2e-3, rtol=2e-3), (
        f"mismatch: max abs err = {jnp.max(jnp.abs(out - ref))}"
    )

    print("KERNEL_OK")
</pallas_src>

<mosaic_0001>
module attributes {stable_mosaic.version = 11 : i64} {
  func.func @_linear_kernel(%arg0: i32, %arg1: memref<2x32768xf32, #tpu.memory_space<vmem>>, %arg2: memref<10x32768xf32, #tpu.memory_space<vmem>>, %arg3: memref<1x10xf32, #tpu.memory_space<vmem>>, %arg4: memref<2x10xf32, #tpu.memory_space<vmem>>, %arg5: memref<10x2xf32, #tpu.memory_space<vmem>>) attributes {dimension_semantics = [#tpu.dimension_semantics<arbitrary>], iteration_bounds = array<i64: 6>, scalar_prefetch = 0 : i64, scratch_operands = 1 : i64, tpu.core_type = #tpu.core_type<tc>, window_params = [{transform_indices = @transform_0, window_bounds = array<i64: 2, 32768>}, {transform_indices = @transform_1, window_bounds = array<i64: 10, 32768>}, {pipeline_mode = #tpu.pipeline_mode<synchronous>, transform_indices = @transform_2, window_bounds = array<i64: 1, 10>}, {pipeline_mode = #tpu.pipeline_mode<synchronous>, transform_indices = @transform_3, window_bounds = array<i64: 2, 10>}]} {
    %c0_i32 = arith.constant 0 : i32
    %0 = arith.cmpi eq, %arg0, %c0_i32 : i32
    %1 = arith.extui %0 : i1 to i32
    %c0_i32_0 = arith.constant 0 : i32
    %2 = arith.cmpi ne, %1, %c0_i32_0 : i32
    scf.if %2 {
      %cst_15 = arith.constant 0.000000e+00 : f32
      %23 = vector.broadcast %cst_15 : f32 to vector<10x2xf32>
      %c0_16 = arith.constant 0 : index
      %c0_17 = arith.constant 0 : index
      %24 = vector.load %arg5[%c0_16, %c0_17] : memref<10x2xf32, #tpu.memory_space<vmem>>, vector<10x2xf32>
      tpu.vector_store %arg5[%c0_16, %c0_17], %23 {strides = array<i32>} : memref<10x2xf32, #tpu.memory_space<vmem>>, vector<10x2xf32>,
    } else {
    }
    %c0 = arith.constant 0 : index
    %c0_1 = arith.constant 0 : index
    %3 = vector.load %arg2[%c0, %c0_1] : memref<10x32768xf32, #tpu.memory_space<vmem>>, vector<10x32768xf32>
    %c0_2 = arith.constant 0 : index
    %c0_3 = arith.constant 0 : index
    %4 = vector.load %arg1[%c0_2, %c0_3] : memref<2x32768xf32, #tpu.memory_space<vmem>>, vector<1x32768xf32>
    %5 = vector.broadcast %4 : vector<1x32768xf32> to vector<10x32768xf32>
    %6 = arith.mulf %5, %3 : vector<10x32768xf32>
    %c0_4 = arith.constant 0 : index
    %c0_5 = arith.constant 0 : index
    %7 = vector.load %arg5[%c0_4, %c0_5] : memref<10x2xf32, #tpu.memory_space<vmem>>, vector<10x1xf32>
    %cst = arith.constant dense<0.000000e+00> : vector<10xf32>
    %8 = vector.multi_reduction <add>, %6, %cst [1] : vector<10x32768xf32> to vector<10xf32>
    %9 = vector.shape_cast %8 : vector<10xf32> to vector<10x1xf32>
    %10 = arith.addf %7, %9 : vector<10x1xf32>
    %c0_6 = arith.constant 0 : index
    %c0_7 = arith.constant 0 : index
    %11 = vector.load %arg5[%c0_6, %c0_7] : memref<10x2xf32, #tpu.memory_space<vmem>>, vector<10x1xf32>
    tpu.vector_store %arg5[%c0_6, %c0_7], %10 {strides = array<i32>} : memref<10x2xf32, #tpu.memory_space<vmem>>, vector<10x1xf32>,
    %c1 = arith.constant 1 : index
    %c0_8 = arith.constant 0 : index
    %12 = vector.load %arg1[%c1, %c0_8] : memref<2x32768xf32, #tpu.memory_space<vmem>>, vector<1x32768xf32>
    %13 = vector.broadcast %12 : vector<1x32768xf32> to vector<10x32768xf32>
    %14 = arith.mulf %13, %3 : vector<10x32768xf32>
    %c0_9 = arith.constant 0 : index
    %c1_10 = arith.constant 1 : index
    %15 = vector.load %arg5[%c0_9, %c1_10] : memref<10x2xf32, #tpu.memory_space<vmem>>, vector<10x1xf32>
    %cst_11 = arith.constant dense<0.000000e+00> : vector<10xf32>
    %16 = vector.multi_reduction <add>, %14, %cst_11 [1] : vector<10x32768xf32> to vector<10xf32>
    %17 = vector.shape_cast %16 : vector<10xf32> to vector<10x1xf32>
    %18 = arith.addf %15, %17 : vector<10x1xf32>
    %c0_12 = arith.constant 0 : index
    %c1_13 = arith.constant 1 : index
    %19 = vector.load %arg5[%c0_12, %c1_13] : memref<10x2xf32, #tpu.memory_space<vmem>>, vector<10x1xf32>
    tpu.vector_store %arg5[%c0_12, %c1_13], %18 {strides = array<i32>} : memref<10x2xf32, #tpu.memory_space<vmem>>, vector<10x1xf32>,
    %c5_i32 = arith.constant 5 : i32
    %20 = arith.cmpi eq, %arg0, %c5_i32 : i32
    %21 = arith.extui %20 : i1 to i32
    %c0_i32_14 = arith.constant 0 : i32
    %22 = arith.cmpi ne, %21, %c0_i32_14 : i32
    scf.if %22 {
      %c0_15 = arith.constant 0 : index
      %c0_16 = arith.constant 0 : index
      %23 = vector.load %arg5[%c0_15, %c0_16] : memref<10x2xf32, #tpu.memory_space<vmem>>, vector<10x2xf32>
      %24 = tpu.transpose %23, [1, 0] : vector<10x2xf32> -> vector<2x10xf32>
      %c0_17 = arith.constant 0 : index
      %c0_18 = arith.constant 0 : index
      %25 = vector.load %arg3[%c0_17, %c0_18] : memref<1x10xf32, #tpu.memory_space<vmem>>, vector<1x10xf32>
      %26 = vector.broadcast %25 : vector<1x10xf32> to vector<2x10xf32>
      %27 = arith.addf %24, %26 : vector<2x10xf32>
      %c0_19 = arith.constant 0 : index
      %c0_20 = arith.constant 0 : index
      %28 = vector.load %arg4[%c0_19, %c0_20] : memref<2x10xf32, #tpu.memory_space<vmem>>, vector<2x10xf32>
      tpu.vector_store %arg4[%c0_19, %c0_20], %27 {strides = array<i32>} : memref<2x10xf32, #tpu.memory_space<vmem>>, vector<2x10xf32>,
    } else {
    }
    return
  }
  func.func @transform_0(%arg0: i32) -> (i32, i32) {
    %c0_i32 = arith.constant 0 : i32
    %c0_i32_0 = arith.constant 0 : i32
    return %c0_i32, %arg0 : i32, i32
  }
  func.func @transform_1(%arg0: i32) -> (i32, i32) {
    %c0_i32 = arith.constant 0 : i32
    %c0_i32_0 = arith.constant 0 : i32
    return %c0_i32, %arg0 : i32, i32
  }
  func.func @transform_2(%arg0: i32) -> (i32, i32) {
    %c0_i32 = arith.constant 0 : i32
    %c0_i32_0 = arith.constant 0 : i32
    %c0_i32_1 = arith.constant 0 : i32
    return %c0_i32, %c0_i32_0 : i32, i32
  }
  func.func @transform_3(%arg0: i32) -> (i32, i32) {
    %c0_i32 = arith.constant 0 : i32
    %c0_i32_0 = arith.constant 0 : i32
    %c0_i32_1 = arith.constant 0 : i32
    return %c0_i32, %c0_i32_0 : i32, i32
  }
}

</mosaic_0001>

<llo_original>
// kernel: _ocean_forward.1
$region0: #{_ocean_forward.1}
  #allocation0 [shape = 'u32[]', space=smem, size = 0x4, offset = 0x4, fixed_abs, tag = 'smem constant byte address 0x4 - core index']
  #allocation1 [shape = 'u32[144,128]{1,0:T(1,128)}', space=vmem, size = 0x12000, scoped, tag = 'internal scratch']
  #allocation2 [shape = 'f32[10,2]{1,0:T(8,128)}', space=vmem, size = 0x2000, scoped, tag = 'scratch operand']
  %s0 = inlined_call_operand.hbm [shape: f32[2,196608], index: 0, kind: input, shape index: {}]
  %s1 = inlined_call_operand.hbm [shape: f32[10,196608], index: 1, kind: input, shape index: {}]
  %s2 = inlined_call_operand.hbm [shape: f32[1,10], index: 2, kind: input, shape index: {}]
  %s3 = inlined_call_operand.hbm [shape: f32[2,10], index: 3, kind: output, shape index: {}]
  %s4 = sld [smem:[#allocation0]]
  $region65: #{_ocean_forward.1} parent=0
    _
  %s6 = ssub.s32 1, %s4
  %s7 = scalar_select 0, %s6, %s4
  $region1: #{_ocean_forward.1} parent=0
    #allocation3 [shape = 'u8[524288]{0}', space=vmem, size = 0x80000, scoped, tag = 'input window, operand 0']
    #allocation4 [shape = 's32[2]{0}', space=sflag, size = 0x8, scoped, tag = 'scoped memory for _ocean_forward.1']
    #allocation5 [shape = 's32[2]{0}', space=sflag, size = 0x8, scoped, tag = 'scoped memory for _ocean_forward.1']
    #allocation6 [shape = 'u8[4194304]{0}', space=vmem, size = 0x400000, scoped, tag = 'input window, operand 1']
    #allocation7 [shape = 's32[2]{0}', space=sflag, size = 0x8, scoped, tag = 'scoped memory for _ocean_forward.1']
    #allocation8 [shape = 'u8[512]{0}', space=vmem, size = 0x400, scoped, tag = 'input window, operand 2, single buffered']
    #allocation9 [shape = 'u8[1024]{0}', space=vmem, size = 0x400, scoped, tag = 'output window, operand 0, single buffered']
    %8 = vsyncpa [#allocation4], 0
    %s9 = scalar_lea.sflag [#allocation4], 1
    %10 = vsyncpa %s9, 0
    %11 = vsyncpa [#allocation7], 0
    %s12 = scalar_lea.sflag [#allocation7], 1
    %13 = vsyncpa %s12, 0
    %14 = vsyncpa [#allocation5], 0
    loop: start=0, step=1, limit=8
    $region2: #{_ocean_forward.1} parent=1 // loop_pre_header
      _
    $region3: #{_ocean_forward.1} parent=1 // loop_header
      %s16 = sphi 0, %s20
      %p17 = scmp.ge.s32.totalorder %s16, 8
      %s26 = sphi 0, %s28
      %s29 = sphi 0, %s26
      %s30 = sphi 0, %s29
      %s46 = sphi 0, %s30
      %s52 = sphi 0, %s54
      %s55 = sphi 0, %s52
      %s56 = sphi 0, %s55
      %s72 = sphi 0, %s56
      %s76 = sphi 0, %s76
      %s78 = sphi 0, %s76
      %s79 = sphi 0, %s78
      %s93 = sphi 0, %s79
      %s97 = sphi 0, %s97
      %s99 = sphi 0, %s97
      %s100 = sphi 0, %s99
      %s114 = sphi 0, %s100
    $region4: #{_ocean_forward.1} parent=1 // loop_header_branch
      %19 = sbr.rel (%p17) target = $region8
    $region5: #{_ocean_forward.1} parent=1 // loop_body
      %s21 = ssub.s32 %s16, 1
      %s22 = ssub.s32 %s16, 2
      %s23 = sadd.s32 %s16, 1
      %s24 = ssub.s32 %s16, %s23
      %p25 = scmp.eq.s32.totalorder %s24, 0
      %s27 = sadd.s32 %s26, 1
      %s28 = scalar_select %p25, %s26, %s27
      %p31 = pneg %p25
      %p32 = scmp.eq.s32.totalorder %s16, 5
      %p33 = por %p31, %p32
      %p34 = scmp.ne.s32.totalorder %s26, %s29
      %p35 = scmp.eq.s32.totalorder %s16, 0
      %p36 = por %p34, %p35
      %p37 = scmp.ne.s32.totalorder %s26, %s29
      %p38 = scmp.eq.s32.totalorder %s21, 5
      %p39 = por %p37, %p38
      %p40 = scmp.ne.s32.totalorder %s29, %s30
      %p41 = scmp.eq.s32.totalorder %s21, 0
      %p42 = por %p40, %p41
      %p43 = scmp.ne.s32.totalorder %s29, %s30
      %p44 = scmp.eq.s32.totalorder %s22, 5
      %p45 = por %p43, %p44
      %p47 = scmp.ne.s32.totalorder %s30, %s46
      %p48 = scmp.eq.s32.totalorder %s22, 0
      %p49 = por %p47, %p48
      %s50 = ssub.s32 %s16, %s23
      %p51 = scmp.eq.s32.totalorder %s50, 0
      %s53 = sadd.s32 %s52, 1
      %s54 = scalar_select %p51, %s52, %s53
      %p57 = pneg %p51
      %p58 = scmp.eq.s32.totalorder %s16, 5
      %p59 = por %p57, %p58
      %p60 = scmp.ne.s32.totalorder %s52, %s55
      %p61 = scmp.eq.s32.totalorder %s16, 0
      %p62 = por %p60, %p61
      %p63 = scmp.ne.s32.totalorder %s52, %s55
      %p64 = scmp.eq.s32.totalorder %s21, 5
      %p65 = por %p63, %p64
      %p66 = scmp.ne.s32.totalorder %s55, %s56
      %p67 = scmp.eq.s32.totalorder %s21, 0
      %p68 = por %p66, %p67
      %p69 = scmp.ne.s32.totalorder %s55, %s56
      %p70 = scmp.eq.s32.totalorder %s22, 5
      %p71 = por %p69, %p70
      %p73 = scmp.ne.s32.totalorder %s56, %s72
      %p74 = scmp.eq.s32.totalorder %s22, 0
      %p75 = por %p73, %p74
      %s77 = sadd.s32 %s76, 1
      %p80 = scmp.eq.s32.totalorder %s16, 5
      %p81 = scmp.ne.s32.totalorder %s76, %s78
      %p82 = scmp.eq.s32.totalorder %s16, 0
      %p83 = por %p81, %p82
      %p84 = scmp.ne.s32.totalorder %s76, %s78
      %p85 = scmp.eq.s32.totalorder %s21, 5
      %p86 = por %p84, %p85
      %p87 = scmp.ne.s32.totalorder %s78, %s79
      %p88 = scmp.eq.s32.totalorder %s21, 0
      %p89 = por %p87, %p88
      %p90 = scmp.ne.s32.totalorder %s78, %s79
      %p91 = scmp.eq.s32.totalorder %s22, 5
      %p92 = por %p90, %p91
      %p94 = scmp.ne.s32.totalorder %s79, %s93
      %p95 = scmp.eq.s32.totalorder %s22, 0
      %p96 = por %p94, %p95
      %s98 = sadd.s32 %s97, 1
      %p101 = scmp.eq.s32.totalorder %s16, 5
      %p102 = scmp.ne.s32.totalorder %s97, %s99
      %p103 = scmp.eq.s32.totalorder %s16, 0
      %p104 = por %p102, %p103
      %p105 = scmp.ne.s32.totalorder %s97, %s99
      %p106 = scmp.eq.s32.totalorder %s21, 5
      %p107 = por %p105, %p106
      %p108 = scmp.ne.s32.totalorder %s99, %s100
      %p109 = scmp.eq.s32.totalorder %s21, 0
      %p110 = por %p108, %p109
      %p111 = scmp.ne.s32.totalorder %s99, %s100
      %p112 = scmp.eq.s32.totalorder %s22, 5
      %p113 = por %p111, %p112
      %p115 = scmp.ne.s32.totalorder %s100, %s114
      %p116 = scmp.eq.s32.totalorder %s22, 0
      %p117 = por %p115, %p116
      %p118 = scmp.le.s32.totalorder 1, %s16
      %p119 = scmp.lt.s32.totalorder %s16, 7
      %p120 = pnand %p118, %p119
      %p121 = pneg %p120
      // Predicated region
      $region9: #{_ocean_forward.1} parent=5 // pred_check
        _
      $region10: #{_ocean_forward.1} parent=5 // pred_check_branch
        %123 = sbr.rel (%p120) target = $region12
      $region11: #{_ocean_forward.1} parent=5 // pred_region
        %s124 = ssub.s32 %s16, 1
        // Predicated region
        $region13: #{_ocean_forward.1} parent=11 // pred_check
          %p125 = pneg %p89
        $region14: #{_ocean_forward.1} parent=11 // pred_check_branch
          %127 = sbr.rel (%p125) target = $region16
        $region15: #{_ocean_forward.1} parent=11 // pred_region
          %s129 = ssub.s32 16, 16
          %130 = vsyncadd [#allocation7], %s129
          %s132 = sshll.u32 [#allocation8], 4
          %s133 = int_to_ptr.vmem [resolvable:$true] %s132
          %135 = dma.hbm_to_vmem [thread:$0]  %s2, 16, %s133, [#allocation7]
        $region16: #{_ocean_forward.1} parent=11 // pred_fallthru
          _
      $region12: #{_ocean_forward.1} parent=5 // pred_fallthru
        _
      %p136 = scmp.lt.s32.totalorder %s16, 6
      // Predicated region
      $region17: #{_ocean_forward.1} parent=5 // pred_check
        %p137 = pneg %p136
      $region18: #{_ocean_forward.1} parent=5 // pred_check_branch
        %139 = sbr.rel (%p137) target = $region20
      $region19: #{_ocean_forward.1} parent=5 // pred_region
        // Predicated region
        $region21: #{_ocean_forward.1} parent=19 // pred_check
          %p140 = pneg %p36
        $region22: #{_ocean_forward.1} parent=19 // pred_check_branch
          %142 = sbr.rel (%p140) target = $region24
        $region23: #{_ocean_forward.1} parent=19 // pred_region
          %s143 = sand.u32 %s26, 1
          %s144 = scalar_lea.sflag [#allocation4], %s143
          %s145 = sand.u32 %s26, 1
          %s146 = smul.addr %s145, 512
          %s147 = scalar_lea.vmem [#allocation3], %s146
          %s148 = smul.u32 256, %s16
          %s150 = ssub.s32 8192, 8192
          %151 = vsyncadd %s144, %s150
          %s152 = smul.addr %s148, 32
          %s153 = scalar_lea.hbm %s0, %s152
          %s155 = sshll.u32 %s147, 4
          %s156 = int_to_ptr.vmem [resolvable:$true] %s155
          %158 = dma.hbm_to_vmem [thread:$0]  %s153, 8192, %s156, %s144
        $region24: #{_ocean_forward.1} parent=19 // pred_fallthru
          _
        // Predicated region
        $region25: #{_ocean_forward.1} parent=19 // pred_check
          %p159 = pneg %p62
        $region26: #{_ocean_forward.1} parent=19 // pred_check_branch
          %161 = sbr.rel (%p159) target = $region28
        $region27: #{_ocean_forward.1} parent=19 // pred_region
          %s162 = sand.u32 %s16, 1
          %s163 = scalar_lea.sflag [#allocation7], %s162
          %s164 = sand.u32 %s52, 1
          %s165 = smul.addr %s164, 4096
          %s166 = scalar_lea.vmem [#allocation6], %s165
          %s167 = smul.u32 256, %s16
          %s169 = ssub.s32 65536, 65536
          %170 = vsyncadd %s163, %s169
          %s171 = smul.addr %s167, 128
          %s172 = scalar_lea.hbm %s1, %s171
          %s173 = sshll.u32 %s166, 4
          %s174 = int_to_ptr.vmem [resolvable:$true] %s173
          %179 = dma.hbm_to_vmem [thread:$0]  %s172, 65536, %s174, %s163, 196608, 32768, 2048
        $region28: #{_ocean_forward.1} parent=19 // pred_fallthru
          _
      $region20: #{_ocean_forward.1} parent=5 // pred_fallthru
        _
      %p180 = scmp.le.s32.totalorder 1, %s16
      %p181 = scmp.lt.s32.totalorder %s16, 7
      %p182 = pnand %p180, %p181
      %p183 = pneg %p182
      // Predicated region
      $region29: #{_ocean_forward.1} parent=5 // pred_check
        _
      $region30: #{_ocean_forward.1} parent=5 // pred_check_branch
        %185 = sbr.rel (%p182) target = $region32
      $region31: #{_ocean_forward.1} parent=5 // pred_region
        %s186 = ssub.s32 %s16, 1
        %s187 = sand.u32 %s29, 1
        %s188 = scalar_lea.sflag [#allocation4], %s187
        %s189 = sand.u32 %s29, 1
        %s190 = smul.addr %s189, 512
        %s191 = scalar_lea.vmem [#allocation3], %s190
        // Predicated region
        $region33: #{_ocean_forward.1} parent=31 // pred_check
          %p192 = pneg %p42
        $region34: #{_ocean_forward.1} parent=31 // pred_check_branch
          %194 = sbr.rel (%p192) target = $region36
        $region35: #{_ocean_forward.1} parent=31 // pred_region
          %195 = dma.done %s188, 8192
        $region36: #{_ocean_forward.1} parent=31 // pred_fallthru
          _
        %s196 = sand.u32 %s21, 1
        %s197 = scalar_lea.sflag [#allocation7], %s196
        %s198 = sand.u32 %s55, 1
        %s199 = smul.addr %s198, 4096
        %s200 = scalar_lea.vmem [#allocation6], %s199
        // Predicated region
        $region37: #{_ocean_forward.1} parent=31 // pred_check
          %p201 = pneg %p68
        $region38: #{_ocean_forward.1} parent=31 // pred_check_branch
          %203 = sbr.rel (%p201) target = $region40
        $region39: #{_ocean_forward.1} parent=31 // pred_region
          %204 = dma.done %s197, 65536
        $region40: #{_ocean_forward.1} parent=31 // pred_fallthru
          _
        // Predicated region
        $region41: #{_ocean_forward.1} parent=31 // pred_check
          %p205 = pneg %p89
        $region42: #{_ocean_forward.1} parent=31 // pred_check_branch
          %207 = sbr.rel (%p205) target = $region44
        $region43: #{_ocean_forward.1} parent=31 // pred_region
          %208 = dma.done [#allocation7], 16
        $region44: #{_ocean_forward.1} parent=31 // pred_fallthru
          _
        %s209 = sand.u32 %s29, 1
        %s210 = scalar_lea.sflag [#allocation4], %s209
        %s211 = sand.u32 %s29, 1
        %s212 = smul.addr %s211, 512
        %s213 = scalar_lea.vmem [#allocation3], %s212
        %p214 = pneg %p42
        %p215 = pneg %p39
        %s216 = sand.u32 %s21, 1
        %s217 = scalar_lea.sflag [#allocation7], %s216
        %s218 = sand.u32 %s55, 1
        %s219 = smul.addr %s218, 4096
        %s220 = scalar_lea.vmem [#allocation6], %s219
        %p221 = pneg %p68
        %p222 = pneg %p65
        %p223 = pneg %p89
        %p224 = pneg %p86
        %p225 = pneg %p110
        %p226 = pneg %p107
        %s227 = smul.u32 256, %s21
        %s228 = smul.u32 256, %s21
        %p229 = scmp.eq.s32.totalorder %s21, 0
        // Predicated region
        $region45: #{_ocean_forward.1} parent=31 // pred_check
          %p230 = pneg %p229
        $region46: #{_ocean_forward.1} parent=31 // pred_check_branch
          %232 = sbr.rel (%p230) target = $region48
        $region47: #{_ocean_forward.1} parent=31 // pred_region
          %vm233 = vcmask 15360
          %234 = vst.msk [vmem:[#allocation2] sm:$0xff] %vm233, 0.0
          %vm235 = vcmask 9216
          %236 = vst.msk [vmem:[#allocation2 + $0x8] sm:$0x3] %vm235, 0.0
        $region48: #{_ocean_forward.1} parent=31 // pred_fallthru
          _
        %v237 = vld [vmem:[%s200] sm:$0xff]
        %v238 = vld [vmem:[%s200 + $0x8] sm:$0xff]
        %v239 = vld [vmem:[%s200 + $0x10] sm:$0xff]
        %v240 = vld [vmem:[%s200 + $0x18] sm:$0xff]
        %v241 = vld [vmem:[%s200 + $0x20] sm:$0xff]
        %v242 = vld [vmem:[%s200 + $0x28] sm:$0xff]
        %v243 = vld [vmem:[%s200 + $0x30] sm:$0xff]
        %v244 = vld [vmem:[%s200 + $0x38] sm:$0xff]
        %v245 = vld [vmem:[%s200 + $0x40] sm:$0xff]
        %v246 = vld [vmem:[%s200 + $0x48] sm:$0xff]
        %v247 = vld [vmem:[%s200 + $0x50] sm:$0xff]
        %v248 = vld [vmem:[%s200 + $0x58] sm:$0xff]
        %v249 = vld [vmem:[%s200 + $0x60] sm:$0xff]
        %v250 = vld [vmem:[%s200 + $0x68] sm:$0xff]
        %v251 = vld [vmem:[%s200 + $0x70] sm:$0xff]
        %v252 = vld [vmem:[%s200 + $0x78] sm:$0xff]
        %v253 = vld [vmem:[%s200 + $0x80] sm:$0xff]
        %v254 = vld [vmem:[%s200 + $0x88] sm:$0xff]
        %v255 = vld [vmem:[%s200 + $0x90] sm:$0xff]
        %v256 = vld [vmem:[%s200 + $0x98] sm:$0xff]
        %v257 = vld [vmem:[%s200 + $0xa0] sm:$0xff]
        %v258 = vld [vmem:[%s200 + $0xa8] sm:$0xff]
        %v259 = vld [vmem:[%s200 + $0xb0] sm:$0xff]
        %v260 = vld [vmem:[%s200 + $0xb8] sm:$0xff]
        %v261 = vld [vmem:[%s200 + $0xc0] sm:$0xff]
        %v262 = vld [vmem:[%s200 + $0xc8] sm:$0xff]
        %v263 = vld [vmem:[%s200 + $0xd0] sm:$0xff]
        %v264 = vld [vmem:[%s200 + $0xd8] sm:$0xff]
        %v265 = vld [vmem:[%s200 + $0xe0] sm:$0xff]
        %v266 = vld [vmem:[%s200 + $0xe8] sm:$0xff]
        %v267 = vld [vmem:[%s200 + $0xf0] sm:$0xff]
        %v268 = vld [vmem:[%s200 + $0xf8] sm:$0xff]
        %v269 = vld [vmem:[%s200 + $0x100] sm:$0xff]
        %v270 = vld [vmem:[%s200 + $0x108] sm:$0xff]
        %v271 = vld [vmem:[%s200 + $0x110] sm:$0xff]
        %v272 = vld [vmem:[%s200 + $0x118] sm:$0xff]
        %v273 = vld [vmem:[%s200 + $0x120] sm:$0xff]
        %v274 = vld [vmem:[%s200 + $0x128] sm:$0xff]
        %v275 = vld [vmem:[%s200 + $0x130] sm:$0xff]
        %v276 = vld [vmem:[%s200 + $0x138] sm:$0xff]
        %v277 = vld [vmem:[%s200 + $0x140] sm:$0xff]
        %v278 = vld [vmem:[%s200 + $0x148] sm:$0xff]
        %v279 = vld [vmem:[%s200 + $0x150] sm:$0xff]
        %v280 = vld [vmem:[%s200 + $0x158] sm:$0xff]
        %v281 = vld [vmem:[%s200 + $0x160] sm:$0xff]
        %v282 = vld [vmem:[%s200 + $0x168] sm:$0xff]
        %v283 = vld [vmem:[%s200 + $0x170] sm:$0xff]
        %v284 = vld [vmem:[%s200 + $0x178] sm:$0xff]
        %v285 = vld [vmem:[%s200 + $0x180] sm:$0xff]
        %v286 = vld [vmem:[%s200 + $0x188] sm:$0xff]
        %v287 = vld [vmem:[%s200 + $0x190] sm:$0xff]
        %v288 = vld [vmem:[%s200 + $0x198] sm:$0xff]
        %v289 = vld [vmem:[%s200 + $0x1a0] sm:$0xff]
        %v290 = vld [vmem:[%s200 + $0x1a8] sm:$0xff]
        %v291 = vld [vmem:[%s200 + $0x1b0] sm:$0xff]
        %v292 = vld [vmem:[%s200 + $0x1b8] sm:$0xff]
        %v293 = vld [vmem:[%s200 + $0x1c0] sm:$0xff]
        %v294 = vld [vmem:[%s200 + $0x1c8] sm:$0xff]
        %v295 = vld [vmem:[%s200 + $0x1d0] sm:$0xff]
        %v296 = vld [vmem:[%s200 + $0x1d8] sm:$0xff]
        %v297 = vld [vmem:[%s200 + $0x1e0] sm:$0xff]
        %v298 = vld [vmem:[%s200 + $0x1e8] sm:$0xff]
        %v299 = vld [vmem:[%s200 + $0x1f0] sm:$0xff]
        %v300 = vld [vmem:[%s200 + $0x1f8] sm:$0xff]
        %v301 = vld [vmem:[%s200 + $0x200] sm:$0xff]
        %v302 = vld [vmem:[%s200 + $0x208] sm:$0xff]
        %v303 = vld [vmem:[%s200 + $0x210] sm:$0xff]
        %v304 = vld [vmem:[%s200 + $0x218] sm:$0xff]
        %v305 = vld [vmem:[%s200 + $0x220] sm:$0xff]
        %v306 = vld [vmem:[%s200 + $0x228] sm:$0xff]
        %v307 = vld [vmem:[%s200 + $0x230] sm:$0xff]
        %v308 = vld [vmem:[%s200 + $0x238] sm:$0xff]
        %v309 = vld [vmem:[%s200 + $0x240] sm:$0xff]
        %v310 = vld [vmem:[%s200 + $0x248] sm:$0xff]
        %v311 = vld [vmem:[%s200 + $0x250] sm:$0xff]
        %v312 = vld [vmem:[%s200 + $0x258] sm:$0xff]
        %v313 = vld [vmem:[%s200 + $0x260] sm:$0xff]
        %v314 = vld [vmem:[%s200 + $0x268] sm:$0xff]
        %v315 = vld [vmem:[%s200 + $0x270] sm:$0xff]
        %v316 = vld [vmem:[%s200 + $0x278] sm:$0xff]
        %v317 = vld [vmem:[%s200 + $0x280] sm:$0xff]
        %v318 = vld [vmem:[%s200 + $0x288] sm:$0xff]
        %v319 = vld [vmem:[%s200 + $0x290] sm:$0xff]
        %v320 = vld [vmem:[%s200 + $0x298] sm:$0xff]
        %v321 = vld [vmem:[%s200 + $0x2a0] sm:$0xff]
        %v322 = vld [vmem:[%s200 + $0x2a8] sm:$0xff]
        %v323 = vld [vmem:[%s200 + $0x2b0] sm:$0xff]
        %v324 = vld [vmem:[%s200 + $0x2b8] sm:$0xff]
        %v325 = vld [vmem:[%s200 + $0x2c0] sm:$0xff]
        %v326 = vld [vmem:[%s200 + $0x2c8] sm:$0xff]
        %v327 = vld [vmem:[%s200 + $0x2d0] sm:$0xff]
        %v328 = vld [vmem:[%s200 + $0x2d8] sm:$0xff]
        %v329 = vld [vmem:[%s200 + $0x2e0] sm:$0xff]
        %v330 = vld [vmem:[%s200 + $0x2e8] sm:$0xff]
        %v331 = vld [vmem:[%s200 + $0x2f0] sm:$0xff]
        %v332 = vld [vmem:[%s200 + $0x2f8] sm:$0xff]
        %v333 = vld [vmem:[%s200 + $0x300] sm:$0xff]
        %v334 = vld [vmem:[%s200 + $0x308] sm:$0xff]
        %v335 = vld [vmem:[%s200 + $0x310] sm:$0xff]
        %v336 = vld [vmem:[%s200 + $0x318] sm:$0xff]
        %v337 = vld [vmem:[%s200 + $0x320] sm:$0xff]
        %v338 = vld [vmem:[%s200 + $0x328] sm:$0xff]
        %v339 = vld [vmem:[%s200 + $0x330] sm:$0xff]
        %v340 = vld [vmem:[%s200 + $0x338] sm:$0xff]
        %v341 = vld [vmem:[%s200 + $0x340] sm:$0xff]
        %v342 = vld [vmem:[%s200 + $0x348] sm:$0xff]
        %v343 = vld [vmem:[%s200 + $0x350] sm:$0xff]
        %v344 = vld [vmem:[%s200 + $0x358] sm:$0xff]
        %v345 = vld [vmem:[%s200 + $0x360] sm:$0xff]
        %v346 = vld [vmem:[%s200 + $0x368] sm:$0xff]
        %v347 = vld [vmem:[%s200 + $0x370] sm:$0xff]
        %v348 = vld [vmem:[%s200 + $0x378] sm:$0xff]
        %v349 = vld [vmem:[%s200 + $0x380] sm:$0xff]
        %v350 = vld [vmem:[%s200 + $0x388] sm:$0xff]
        %v351 = vld [vmem:[%s200 + $0x390] sm:$0xff]
        %v352 = vld [vmem:[%s200 + $0x398] sm:$0xff]
        %v353 = vld [vmem:[%s200 + $0x3a0] sm:$0xff]
        %v354 = vld [vmem:[%s200 + $0x3a8] sm:$0xff]
        %v355 = vld [vmem:[%s200 + $0x3b0] sm:$0xff]
        %v356 = vld [vmem:[%s200 + $0x3b8] sm:$0xff]
        %v357 = vld [vmem:[%s200 + $0x3c0] sm:$0xff]
        %v358 = vld [vmem:[%s200 + $0x3c8] sm:$0xff]
        %v359 = vld [vmem:[%s200 + $0x3d0] sm:$0xff]
        %v360 = vld [vmem:[%s200 + $0x3d8] sm:$0xff]
        %v361 = vld [vmem:[%s200 + $0x3e0] sm:$0xff]
        %v362 = vld [vmem:[%s200 + $0x3e8] sm:$0xff]
        %v363 = vld [vmem:[%s200 + $0x3f0] sm:$0xff]
        %v364 = vld [vmem:[%s200 + $0x3f8] sm:$0xff]
        %v365 = vld [vmem:[%s200 + $0x400] sm:$0xff]
        %v366 = vld [vmem:[%s200 + $0x408] sm:$0xff]
        %v367 = vld [vmem:[%s200 + $0x410] sm:$0xff]
        %v368 = vld [vmem:[%s200 + $0x418] sm:$0xff]
        %v369 = vld [vmem:[%s200 + $0x420] sm:$0xff]
        %v370 = vld [vmem:[%s200 + $0x428] sm:$0xff]
        %v371 = vld [vmem:[%s200 + $0x430] sm:$0xff]
        %v372 = vld [vmem:[%s200 + $0x438] sm:$0xff]
        %v373 = vld [vmem:[%s200 + $0x440] sm:$0xff]
        %v374 = vld [vmem:[%s200 + $0x448] sm:$0xff]
        %v375 = vld [vmem:[%s200 + $0x450] sm:$0xff]
        %v376 = vld [vmem:[%s200 + $0x458] sm:$0xff]
        %v377 = vld [vmem:[%s200 + $0x460] sm:$0xff]
        %v378 = vld [vmem:[%s200 + $0x468] sm:$0xff]
        %v379 = vld [vmem:[%s200 + $0x470] sm:$0xff]
        %v380 = vld [vmem:[%s200 + $0x478] sm:$0xff]
        %v381 = vld [vmem:[%s200 + $0x480] sm:$0xff]
        %v382 = vld [vmem:[%s200 + $0x488] sm:$0xff]
        %v383 = vld [vmem:[%s200 + $0x490] sm:$0xff]
        %v384 = vld [vmem:[%s200 + $0x498] sm:$0xff]
        %v385 = vld [vmem:[%s200 + $0x4a0] sm:$0xff]
        %v386 = vld [vmem:[%s200 + $0x4a8] sm:$0xff]
        %v387 = vld [vmem:[%s200 + $0x4b0] sm:$0xff]
        %v388 = vld [vmem:[%s200 + $0x4b8] sm:$0xff]
        %v389 = vld [vmem:[%s200 + $0x4c0] sm:$0xff]
        %v390 = vld [vmem:[%s200 + $0x4c8] sm:$0xff]
        %v391 = vld [vmem:[%s200 + $0x4d0] sm:$0xff]
        %v392 = vld [vmem:[%s200 + $0x4d8] sm:$0xff]
        %v393 = vld [vmem:[%s200 + $0x4e0] sm:$0xff]
        %v394 = vld [vmem:[%s200 + $0x4e8] sm:$0xff]
        %v395 = vld [vmem:[%s200 + $0x4f0] sm:$0xff]
        %v396 = vld [vmem:[%s200 + $0x4f8] sm:$0xff]
        %v397 = vld [vmem:[%s200 + $0x500] sm:$0xff]
        %v398 = vld [vmem:[%s200 + $0x508] sm:$0xff]
        %v399 = vld [vmem:[%s200 + $0x510] sm:$0xff]
        %v400 = vld [vmem:[%s200 + $0x518] sm:$0xff]
        %v401 = vld [vmem:[%s200 + $0x520] sm:$0xff]
        %v402 = vld [vmem:[%s200 + $0x528] sm:$0xff]
        %v403 = vld [vmem:[%s200 + $0x530] sm:$0xff]
        %v404 = vld [vmem:[%s200 + $0x538] sm:$0xff]
        %v405 = vld [vmem:[%s200 + $0x540] sm:$0xff]
        %v406 = vld [vmem:[%s200 + $0x548] sm:$0xff]
        %v407 = vld [vmem:[%s200 + $0x550] sm:$0xff]
        %v408 = vld [vmem:[%s200 + $0x558] sm:$0xff]
        %v409 = vld [vmem:[%s200 + $0x560] sm:$0xff]
        %v410 = vld [vmem:[%s200 + $0x568] sm:$0xff]
        %v411 = vld [vmem:[%s200 + $0x570] sm:$0xff]
        %v412 = vld [vmem:[%s200 + $0x578] sm:$0xff]
        %v413 = vld [vmem:[%s200 + $0x580] sm:$0xff]
        %v414 = vld [vmem:[%s200 + $0x588] sm:$0xff]
        %v415 = vld [vmem:[%s200 + $0x590] sm:$0xff]
        %v416 = vld [vmem:[%s200 + $0x598] sm:$0xff]
        %v417 = vld [vmem:[%s200 + $0x5a0] sm:$0xff]
        %v418 = vld [vmem:[%s200 + $0x5a8] sm:$0xff]
        %v419 = vld [vmem:[%s200 + $0x5b0] sm:$0xff]
        %v420 = vld [vmem:[%s200 + $0x5b8] sm:$0xff]
        %v421 = vld [vmem:[%s200 + $0x5c0] sm:$0xff]
        %v422 = vld [vmem:[%s200 + $0x5c8] sm:$0xff]
        %v423 = vld [vmem:[%s200 + $0x5d0] sm:$0xff]
        %v424 = vld [vmem:[%s200 + $0x5d8] sm:$0xff]
        %v425 = vld [vmem:[%s200 + $0x5e0] sm:$0xff]
        %v426 = vld [vmem:[%s200 + $0x5e8] sm:$0xff]
        %v427 = vld [vmem:[%s200 + $0x5f0] sm:$0xff]
        %v428 = vld [vmem:[%s200 + $0x5f8] sm:$0xff]
        %v429 = vld [vmem:[%s200 + $0x600] sm:$0xff]
        %v430 = vld [vmem:[%s200 + $0x608] sm:$0xff]
        %v431 = vld [vmem:[%s200 + $0x610] sm:$0xff]
        %v432 = vld [vmem:[%s200 + $0x618] sm:$0xff]
        %v433 = vld [vmem:[%s200 + $0x620] sm:$0xff]
        %v434 = vld [vmem:[%s200 + $0x628] sm:$0xff]
        %v435 = vld [vmem:[%s200 + $0x630] sm:$0xff]
        %v436 = vld [vmem:[%s200 + $0x638] sm:$0xff]
        %v437 = vld [vmem:[%s200 + $0x640] sm:$0xff]
        %v438 = vld [vmem:[%s200 + $0x648] sm:$0xff]
        %v439 = vld [vmem:[%s200 + $0x650] sm:$0xff]
        %v440 = vld [vmem:[%s200 + $0x658] sm:$0xff]
        %v441 = vld [vmem:[%s200 + $0x660] sm:$0xff]
        %v442 = vld [vmem:[%s200 + $0x668] sm:$0xff]
        %v443 = vld [vmem:[%s200 + $0x670] sm:$0xff]
        %v444 = vld [vmem:[%s200 + $0x678] sm:$0xff]
        %v445 = vld [vmem:[%s200 + $0x680] sm:$0xff]
        %v446 = vld [vmem:[%s200 + $0x688] sm:$0xff]
        %v447 = vld [vmem:[%s200 + $0x690] sm:$0xff]
        %v448 = vld [vmem:[%s200 + $0x698] sm:$0xff]
        %v449 = vld [vmem:[%s200 + $0x6a0] sm:$0xff]
        %v450 = vld [vmem:[%s200 + $0x6a8] sm:$0xff]
        %v451 = vld [vmem:[%s200 + $0x6b0] sm:$0xff]
        %v452 = vld [vmem:[%s200 + $0x6b8] sm:$0xff]
        %v453 = vld [vmem:[%s200 + $0x6c0] sm:$0xff]
        %v454 = vld [vmem:[%s200 + $0x6c8] sm:$0xff]
        %v455 = vld [vmem:[%s200 + $0x6d0] sm:$0xff]
        %v456 = vld [vmem:[%s200 + $0x6d8] sm:$0xff]
        %v457 = vld [vmem:[%s200 + $0x6e0] sm:$0xff]
        %v458 = vld [vmem:[%s200 + $0x6e8] sm:$0xff]
        %v459 = vld [vmem:[%s200 + $0x6f0] sm:$0xff]
        %v460 = vld [vmem:[%s200 + $0x6f8] sm:$0xff]
        %v461 = vld [vmem:[%s200 + $0x700] sm:$0xff]
        %v462 = vld [vmem:[%s200 + $0x708] sm:$0xff]
        %v463 = vld [vmem:[%s200 + $0x710] sm:$0xff]
        %v464 = vld [vmem:[%s200 + $0x718] sm:$0xff]
        %v465 = vld [vmem:[%s200 + $0x720] sm:$0xff]
        %v466 = vld [vmem:[%s200 + $0x728] sm:$0xff]
        %v467 = vld [vmem:[%s200 + $0x730] sm:$0xff]
        %v468 = vld [vmem:[%s200 + $0x738] sm:$0xff]
        %v469 = vld [vmem:[%s200 + $0x740] sm:$0xff]
        %v470 = vld [vmem:[%s200 + $0x748] sm:$0xff]
        %v471 = vld [vmem:[%s200 + $0x750] sm:$0xff]
        %v472 = vld [vmem:[%s200 + $0x758] sm:$0xff]
        %v473 = vld [vmem:[%s200 + $0x760] sm:$0xff]
        %v474 = vld [vmem:[%s200 + $0x768] sm:$0xff]
        %v475 = vld [vmem:[%s200 + $0x770] sm:$0xff]
        %v476 = vld [vmem:[%s200 + $0x778] sm:$0xff]
        %v477 = vld [vmem:[%s200 + $0x780] sm:$0xff]
        %v478 = vld [vmem:[%s200 + $0x788] sm:$0xff]
        %v479 = vld [vmem:[%s200 + $0x790] sm:$0xff]
        %v480 = vld [vmem:[%s200 + $0x798] sm:$0xff]
        %v481 = vld [vmem:[%s200 + $0x7a0] sm:$0xff]
        %v482 = vld [vmem:[%s200 + $0x7a8] sm:$0xff]
        %v483 = vld [vmem:[%s200 + $0x7b0] sm:$0xff]
        %v484 = vld [vmem:[%s200 + $0x7b8] sm:$0xff]
        %v485 = vld [vmem:[%s200 + $0x7c0] sm:$0xff]
        %v486 = vld [vmem:[%s200 + $0x7c8] sm:$0xff]
        %v487 = vld [vmem:[%s200 + $0x7d0] sm:$0xff]
        %v488 = vld [vmem:[%s200 + $0x7d8] sm:$0xff]
        %v489 = vld [vmem:[%s200 + $0x7e0] sm:$0xff]
        %v490 = vld [vmem:[%s200 + $0x7e8] sm:$0xff]
        %v491 = vld [vmem:[%s200 + $0x7f0] sm:$0xff]
        %v492 = vld [vmem:[%s200 + $0x7f8] sm:$0xff]
        %v493 = vld [vmem:[%s200 + $0x800] sm:$0x3]
        %v494 = vld [vmem:[%s200 + $0x808] sm:$0x3]
        %v495 = vld [vmem:[%s200 + $0x810] sm:$0x3]
        %v496 = vld [vmem:[%s200 + $0x818] sm:$0x3]
        %v497 = vld [vmem:[%s200 + $0x820] sm:$0x3]
        %v498 = vld [vmem:[%s200 + $0x828] sm:$0x3]
        %v499 = vld [vmem:[%s200 + $0x830] sm:$0x3]
        %v500 = vld [vmem:[%s200 + $0x838] sm:$0x3]
        %v501 = vld [vmem:[%s200 + $0x840] sm:$0x3]
        %v502 = vld [vmem:[%s200 + $0x848] sm:$0x3]
        %v503 = vld [vmem:[%s200 + $0x850] sm:$0x3]
        %v504 = vld [vmem:[%s200 + $0x858] sm:$0x3]
        %v505 = vld [vmem:[%s200 + $0x860] sm:$0x3]
        %v506 = vld [vmem:[%s200 + $0x868] sm:$0x3]
        %v507 = vld [vmem:[%s200 + $0x870] sm:$0x3]
        %v508 = vld [vmem:[%s200 + $0x878] sm:$0x3]
        %v509 = vld [vmem:[%s200 + $0x880] sm:$0x3]
        %v510 = vld [vmem:[%s200 + $0x888] sm:$0x3]
        %v511 = vld [vmem:[%s200 + $0x890] sm:$0x3]
        %v512 = vld [vmem:[%s200 + $0x898] sm:$0x3]
        %v513 = vld [vmem:[%s200 + $0x8a0] sm:$0x3]
        %v514 = vld [vmem:[%s200 + $0x8a8] sm:$0x3]
        %v515 = vld [vmem:[%s200 + $0x8b0] sm:$0x3]
        %v516 = vld [vmem:[%s200 + $0x8b8] sm:$0x3]
        %v517 = vld [vmem:[%s200 + $0x8c0] sm:$0x3]
        %v518 = vld [vmem:[%s200 + $0x8c8] sm:$0x3]
        %v519 = vld [vmem:[%s200 + $0x8d0] sm:$0x3]
        %v520 = vld [vmem:[%s200 + $0x8d8] sm:$0x3]
        %v521 = vld [vmem:[%s200 + $0x8e0] sm:$0x3]
        %v522 = vld [vmem:[%s200 + $0x8e8] sm:$0x3]
        %v523 = vld [vmem:[%s200 + $0x8f0] sm:$0x3]
        %v524 = vld [vmem:[%s200 + $0x8f8] sm:$0x3]
        %v525 = vld [vmem:[%s200 + $0x900] sm:$0x3]
        %v526 = vld [vmem:[%s200 + $0x908] sm:$0x3]
        %v527 = vld [vmem:[%s200 + $0x910] sm:$0x3]
        %v528 = vld [vmem:[%s200 + $0x918] sm:$0x3]
        %v529 = vld [vmem:[%s200 + $0x920] sm:$0x3]
        %v530 = vld [vmem:[%s200 + $0x928] sm:$0x3]
        %v531 = vld [vmem:[%s200 + $0x930] sm:$0x3]
        %v532 = vld [vmem:[%s200 + $0x938] sm:$0x3]
        %v533 = vld [vmem:[%s200 + $0x940] sm:$0x3]
        %v534 = vld [vmem:[%s200 + $0x948] sm:$0x3]
        %v535 = vld [vmem:[%s200 + $0x950] sm:$0x3]
        %v536 = vld [vmem:[%s200 + $0x958] sm:$0x3]
        %v537 = vld [vmem:[%s200 + $0x960] sm:$0x3]
        %v538 = vld [vmem:[%s200 + $0x968] sm:$0x3]
        %v539 = vld [vmem:[%s200 + $0x970] sm:$0x3]
        %v540 = vld [vmem:[%s200 + $0x978] sm:$0x3]
        %v541 = vld [vmem:[%s200 + $0x980] sm:$0x3]
        %v542 = vld [vmem:[%s200 + $0x988] sm:$0x3]
        %v543 = vld [vmem:[%s200 + $0x990] sm:$0x3]
        %v544 = vld [vmem:[%s200 + $0x998] sm:$0x3]
        %v545 = vld [vmem:[%s200 + $0x9a0] sm:$0x3]
        %v546 = vld [vmem:[%s200 + $0x9a8] sm:$0x3]
        %v547 = vld [vmem:[%s200 + $0x9b0] sm:$0x3]
        %v548 = vld [vmem:[%s200 + $0x9b8] sm:$0x3]
        %v549 = vld [vmem:[%s200 + $0x9c0] sm:$0x3]
        %v550 = vld [vmem:[%s200 + $0x9c8] sm:$0x3]
        %v551 = vld [vmem:[%s200 + $0x9d0] sm:$0x3]
        %v552 = vld [vmem:[%s200 + $0x9d8] sm:$0x3]
        %v553 = vld [vmem:[%s200 + $0x9e0] sm:$0x3]
        %v554 = vld [vmem:[%s200 + $0x9e8] sm:$0x3]
        %v555 = vld [vmem:[%s200 + $0x9f0] sm:$0x3]
        %v556 = vld [vmem:[%s200 + $0x9f8] sm:$0x3]
        %v557 = vld [vmem:[%s200 + $0xa00] sm:$0x3]
        %v558 = vld [vmem:[%s200 + $0xa08] sm:$0x3]
        %v559 = vld [vmem:[%s200 + $0xa10] sm:$0x3]
        %v560 = vld [vmem:[%s200 + $0xa18] sm:$0x3]
        %v561 = vld [vmem:[%s200 + $0xa20] sm:$0x3]
        %v562 = vld [vmem:[%s200 + $0xa28] sm:$0x3]
        %v563 = vld [vmem:[%s200 + $0xa30] sm:$0x3]
        %v564 = vld [vmem:[%s200 + $0xa38] sm:$0x3]
        %v565 = vld [vmem:[%s200 + $0xa40] sm:$0x3]
        %v566 = vld [vmem:[%s200 + $0xa48] sm:$0x3]
        %v567 = vld [vmem:[%s200 + $0xa50] sm:$0x3]
        %v568 = vld [vmem:[%s200 + $0xa58] sm:$0x3]
        %v569 = vld [vmem:[%s200 + $0xa60] sm:$0x3]
        %v570 = vld [vmem:[%s200 + $0xa68] sm:$0x3]
        %v571 = vld [vmem:[%s200 + $0xa70] sm:$0x3]
        %v572 = vld [vmem:[%s200 + $0xa78] sm:$0x3]
        %v573 = vld [vmem:[%s200 + $0xa80] sm:$0x3]
        %v574 = vld [vmem:[%s200 + $0xa88] sm:$0x3]
        %v575 = vld [vmem:[%s200 + $0xa90] sm:$0x3]
        %v576 = vld [vmem:[%s200 + $0xa98] sm:$0x3]
        %v577 = vld [vmem:[%s200 + $0xaa0] sm:$0x3]
        %v578 = vld [vmem:[%s200 + $0xaa8] sm:$0x3]
        %v579 = vld [vmem:[%s200 + $0xab0] sm:$0x3]
        %v580 = vld [vmem:[%s200 + $0xab8] sm:$0x3]
        %v581 = vld [vmem:[%s200 + $0xac0] sm:$0x3]
        %v582 = vld [vmem:[%s200 + $0xac8] sm:$0x3]
        %v583 = vld [vmem:[%s200 + $0xad0] sm:$0x3]
        %v584 = vld [vmem:[%s200 + $0xad8] sm:$0x3]
        %v585 = vld [vmem:[%s200 + $0xae0] sm:$0x3]
        %v586 = vld [vmem:[%s200 + $0xae8] sm:$0x3]
        %v587 = vld [vmem:[%s200 + $0xaf0] sm:$0x3]
        %v588 = vld [vmem:[%s200 + $0xaf8] sm:$0x3]
        %v589 = vld [vmem:[%s200 + $0xb00] sm:$0x3]
        %v590 = vld [vmem:[%s200 + $0xb08] sm:$0x3]
        %v591 = vld [vmem:[%s200 + $0xb10] sm:$0x3]
        %v592 = vld [vmem:[%s200 + $0xb18] sm:$0x3]
        %v593 = vld [vmem:[%s200 + $0xb20] sm:$0x3]
        %v594 = vld [vmem:[%s200 + $0xb28] sm:$0x3]
        %v595 = vld [vmem:[%s200 + $0xb30] sm:$0x3]
        %v596 = vld [vmem:[%s200 + $0xb38] sm:$0x3]
        %v597 = vld [vmem:[%s200 + $0xb40] sm:$0x3]
        %v598 = vld [vmem:[%s200 + $0xb48] sm:$0x3]
        %v599 = vld [vmem:[%s200 + $0xb50] sm:$0x3]
        %v600 = vld [vmem:[%s200 + $0xb58] sm:$0x3]
        %v601 = vld [vmem:[%s200 + $0xb60] sm:$0x3]
        %v602 = vld [vmem:[%s200 + $0xb68] sm:$0x3]
        %v603 = vld [vmem:[%s200 + $0xb70] sm:$0x3]
        %v604 = vld [vmem:[%s200 + $0xb78] sm:$0x3]
        %v605 = vld [vmem:[%s200 + $0xb80] sm:$0x3]
        %v606 = vld [vmem:[%s200 + $0xb88] sm:$0x3]
        %v607 = vld [vmem:[%s200 + $0xb90] sm:$0x3]
        %v608 = vld [vmem:[%s200 + $0xb98] sm:$0x3]
        %v609 = vld [vmem:[%s200 + $0xba0] sm:$0x3]
        %v610 = vld [vmem:[%s200 + $0xba8] sm:$0x3]
        %v611 = vld [vmem:[%s200 + $0xbb0] sm:$0x3]
        %v612 = vld [vmem:[%s200 + $0xbb8] sm:$0x3]
        %v613 = vld [vmem:[%s200 + $0xbc0] sm:$0x3]
        %v614 = vld [vmem:[%s200 + $0xbc8] sm:$0x3]
        %v615 = vld [vmem:[%s200 + $0xbd0] sm:$0x3]
        %v616 = vld [vmem:[%s200 + $0xbd8] sm:$0x3]
        %v617 = vld [vmem:[%s200 + $0xbe0] sm:$0x3]
        %v618 = vld [vmem:[%s200 + $0xbe8] sm:$0x3]
        %v619 = vld [vmem:[%s200 + $0xbf0] sm:$0x3]
        %v620 = vld [vmem:[%s200 + $0xbf8] sm:$0x3]
        %v621 = vld [vmem:[%s200 + $0xc00] sm:$0x3]
        %v622 = vld [vmem:[%s200 + $0xc08] sm:$0x3]
        %v623 = vld [vmem:[%s200 + $0xc10] sm:$0x3]
        %v624 = vld [vmem:[%s200 + $0xc18] sm:$0x3]
        %v625 = vld [vmem:[%s200 + $0xc20] sm:$0x3]
        %v626 = vld [vmem:[%s200 + $0xc28] sm:$0x3]
        %v627 = vld [vmem:[%s200 + $0xc30] sm:$0x3]
        %v628 = vld [vmem:[%s200 + $0xc38] sm:$0x3]
        %v629 = vld [vmem:[%s200 + $0xc40] sm:$0x3]
        %v630 = vld [vmem:[%s200 + $0xc48] sm:$0x3]
        %v631 = vld [vmem:[%s200 + $0xc50] sm:$0x3]
        %v632 = vld [vmem:[%s200 + $0xc58] sm:$0x3]
        %v633 = vld [vmem:[%s200 + $0xc60] sm:$0x3]
        %v634 = vld [vmem:[%s200 + $0xc68] sm:$0x3]
        %v635 = vld [vmem:[%s200 + $0xc70] sm:$0x3]
        %v636 = vld [vmem:[%s200 + $0xc78] sm:$0x3]
        %v637 = vld [vmem:[%s200 + $0xc80] sm:$0x3]
        %v638 = vld [vmem:[%s200 + $0xc88] sm:$0x3]
        %v639 = vld [vmem:[%s200 + $0xc90] sm:$0x3]
        %v640 = vld [vmem:[%s200 + $0xc98] sm:$0x3]
        %v641 = vld [vmem:[%s200 + $0xca0] sm:$0x3]
        %v642 = vld [vmem:[%s200 + $0xca8] sm:$0x3]
        %v643 = vld [vmem:[%s200 + $0xcb0] sm:$0x3]
        %v644 = vld [vmem:[%s200 + $0xcb8] sm:$0x3]
        %v645 = vld [vmem:[%s200 + $0xcc0] sm:$0x3]
        %v646 = vld [vmem:[%s200 + $0xcc8] sm:$0x3]
        %v647 = vld [vmem:[%s200 + $0xcd0] sm:$0x3]
        %v648 = vld [vmem:[%s200 + $0xcd8] sm:$0x3]
        %v649 = vld [vmem:[%s200 + $0xce0] sm:$0x3]
        %v650 = vld [vmem:[%s200 + $0xce8] sm:$0x3]
        %v651 = vld [vmem:[%s200 + $0xcf0] sm:$0x3]
        %v652 = vld [vmem:[%s200 + $0xcf8] sm:$0x3]
        %v653 = vld [vmem:[%s200 + $0xd00] sm:$0x3]
        %v654 = vld [vmem:[%s200 + $0xd08] sm:$0x3]
        %v655 = vld [vmem:[%s200 + $0xd10] sm:$0x3]
        %v656 = vld [vmem:[%s200 + $0xd18] sm:$0x3]
        %v657 = vld [vmem:[%s200 + $0xd20] sm:$0x3]
        %v658 = vld [vmem:[%s200 + $0xd28] sm:$0x3]
        %v659 = vld [vmem:[%s200 + $0xd30] sm:$0x3]
        %v660 = vld [vmem:[%s200 + $0xd38] sm:$0x3]
        %v661 = vld [vmem:[%s200 + $0xd40] sm:$0x3]
        %v662 = vld [vmem:[%s200 + $0xd48] sm:$0x3]
        %v663 = vld [vmem:[%s200 + $0xd50] sm:$0x3]
        %v664 = vld [vmem:[%s200 + $0xd58] sm:$0x3]
        %v665 = vld [vmem:[%s200 + $0xd60] sm:$0x3]
        %v666 = vld [vmem:[%s200 + $0xd68] sm:$0x3]
        %v667 = vld [vmem:[%s200 + $0xd70] sm:$0x3]
        %v668 = vld [vmem:[%s200 + $0xd78] sm:$0x3]
        %v669 = vld [vmem:[%s200 + $0xd80] sm:$0x3]
        %v670 = vld [vmem:[%s200 + $0xd88] sm:$0x3]
        %v671 = vld [vmem:[%s200 + $0xd90] sm:$0x3]
        %v672 = vld [vmem:[%s200 + $0xd98] sm:$0x3]
        %v673 = vld [vmem:[%s200 + $0xda0] sm:$0x3]
        %v674 = vld [vmem:[%s200 + $0xda8] sm:$0x3]
        %v675 = vld [vmem:[%s200 + $0xdb0] sm:$0x3]
        %v676 = vld [vmem:[%s200 + $0xdb8] sm:$0x3]
        %v677 = vld [vmem:[%s200 + $0xdc0] sm:$0x3]
        %v678 = vld [vmem:[%s200 + $0xdc8] sm:$0x3]
        %v679 = vld [vmem:[%s200 + $0xdd0] sm:$0x3]
        %v680 = vld [vmem:[%s200 + $0xdd8] sm:$0x3]
        %v681 = vld [vmem:[%s200 + $0xde0] sm:$0x3]
        %v682 = vld [vmem:[%s200 + $0xde8] sm:$0x3]
        %v683 = vld [vmem:[%s200 + $0xdf0] sm:$0x3]
        %v684 = vld [vmem:[%s200 + $0xdf8] sm:$0x3]
        %v685 = vld [vmem:[%s200 + $0xe00] sm:$0x3]
        %v686 = vld [vmem:[%s200 + $0xe08] sm:$0x3]
        %v687 = vld [vmem:[%s200 + $0xe10] sm:$0x3]
        %v688 = vld [vmem:[%s200 + $0xe18] sm:$0x3]
        %v689 = vld [vmem:[%s200 + $0xe20] sm:$0x3]
        %v690 = vld [vmem:[%s200 + $0xe28] sm:$0x3]
        %v691 = vld [vmem:[%s200 + $0xe30] sm:$0x3]
        %v692 = vld [vmem:[%s200 + $0xe38] sm:$0x3]
        %v693 = vld [vmem:[%s200 + $0xe40] sm:$0x3]
        %v694 = vld [vmem:[%s200 + $0xe48] sm:$0x3]
        %v695 = vld [vmem:[%s200 + $0xe50] sm:$0x3]
        %v696 = vld [vmem:[%s200 + $0xe58] sm:$0x3]
        %v697 = vld [vmem:[%s200 + $0xe60] sm:$0x3]
        %v698 = vld [vmem:[%s200 + $0xe68] sm:$0x3]
        %v699 = vld [vmem:[%s200 + $0xe70] sm:$0x3]
        %v700 = vld [vmem:[%s200 + $0xe78] sm:$0x3]
        %v701 = vld [vmem:[%s200 + $0xe80] sm:$0x3]
        %v702 = vld [vmem:[%s200 + $0xe88] sm:$0x3]
        %v703 = vld [vmem:[%s200 + $0xe90] sm:$0x3]
        %v704 = vld [vmem:[%s200 + $0xe98] sm:$0x3]
        %v705 = vld [vmem:[%s200 + $0xea0] sm:$0x3]
        %v706 = vld [vmem:[%s200 + $0xea8] sm:$0x3]
        %v707 = vld [vmem:[%s200 + $0xeb0] sm:$0x3]
        %v708 = vld [vmem:[%s200 + $0xeb8] sm:$0x3]
        %v709 = vld [vmem:[%s200 + $0xec0] sm:$0x3]
        %v710 = vld [vmem:[%s200 + $0xec8] sm:$0x3]
        %v711 = vld [vmem:[%s200 + $0xed0] sm:$0x3]
        %v712 = vld [vmem:[%s200 + $0xed8] sm:$0x3]
        %v713 = vld [vmem:[%s200 + $0xee0] sm:$0x3]
        %v714 = vld [vmem:[%s200 + $0xee8] sm:$0x3]
        %v715 = vld [vmem:[%s200 + $0xef0] sm:$0x3]
        %v716 = vld [vmem:[%s200 + $0xef8] sm:$0x3]
        %v717 = vld [vmem:[%s200 + $0xf00] sm:$0x3]
        %v718 = vld [vmem:[%s200 + $0xf08] sm:$0x3]
        %v719 = vld [vmem:[%s200 + $0xf10] sm:$0x3]
        %v720 = vld [vmem:[%s200 + $0xf18] sm:$0x3]
        %v721 = vld [vmem:[%s200 + $0xf20] sm:$0x3]
        %v722 = vld [vmem:[%s200 + $0xf28] sm:$0x3]
        %v723 = vld [vmem:[%s200 + $0xf30] sm:$0x3]
        %v724 = vld [vmem:[%s200 + $0xf38] sm:$0x3]
        %v725 = vld [vmem:[%s200 + $0xf40] sm:$0x3]
        %v726 = vld [vmem:[%s200 + $0xf48] sm:$0x3]
        %v727 = vld [vmem:[%s200 + $0xf50] sm:$0x3]
        %v728 = vld [vmem:[%s200 + $0xf58] sm:$0x3]
        %v729 = vld [vmem:[%s200 + $0xf60] sm:$0x3]
        %v730 = vld [vmem:[%s200 + $0xf68] sm:$0x3]
        %v731 = vld [vmem:[%s200 + $0xf70] sm:$0x3]
        %v732 = vld [vmem:[%s200 + $0xf78] sm:$0x3]
        %v733 = vld [vmem:[%s200 + $0xf80] sm:$0x3]
        %v734 = vld [vmem:[%s200 + $0xf88] sm:$0x3]
        %v735 = vld [vmem:[%s200 + $0xf90] sm:$0x3]
        %v736 = vld [vmem:[%s200 + $0xf98] sm:$0x3]
        %v737 = vld [vmem:[%s200 + $0xfa0] sm:$0x3]
        %v738 = vld [vmem:[%s200 + $0xfa8] sm:$0x3]
        %v739 = vld [vmem:[%s200 + $0xfb0] sm:$0x3]
        %v740 = vld [vmem:[%s200 + $0xfb8] sm:$0x3]
        %v741 = vld [vmem:[%s200 + $0xfc0] sm:$0x3]
        %v742 = vld [vmem:[%s200 + $0xfc8] sm:$0x3]
        %v743 = vld [vmem:[%s200 + $0xfd0] sm:$0x3]
        %v744 = vld [vmem:[%s200 + $0xfd8] sm:$0x3]
        %v745 = vld [vmem:[%s200 + $0xfe0] sm:$0x3]
        %v746 = vld [vmem:[%s200 + $0xfe8] sm:$0x3]
        %v747 = vld [vmem:[%s200 + $0xff0] sm:$0x3]
        %v748 = vld [vmem:[%s200 + $0xff8] sm:$0x3]
        %v749 = vld [vmem:[%s191] ss:$2 sm:$0xff]
        %s750 = scalar_lea.vmem %s191, 16 [#allocation3]
        %v751 = vld [vmem:[%s750] ss:$2 sm:$0xff]
        %s752 = scalar_lea.vmem %s191, 32 [#allocation3]
        %v753 = vld [vmem:[%s752] ss:$2 sm:$0xff]
        %s754 = scalar_lea.vmem %s191, 48 [#allocation3]
        %v755 = vld [vmem:[%s754] ss:$2 sm:$0xff]
        %s756 = scalar_lea.vmem %s191, 64 [#allocation3]
        %v757 = vld [vmem:[%s756] ss:$2 sm:$0xff]
        %s758 = scalar_lea.vmem %s191, 80 [#allocation3]
        %v759 = vld [vmem:[%s758] ss:$2 sm:$0xff]
        %s760 = scalar_lea.vmem %s191, 96 [#allocation3]
        %v761 = vld [vmem:[%s760] ss:$2 sm:$0xff]
        %s762 = scalar_lea.vmem %s191, 112 [#allocation3]
        %v763 = vld [vmem:[%s762] ss:$2 sm:$0xff]
        %s764 = scalar_lea.vmem %s191, 128 [#allocation3]
        %v765 = vld [vmem:[%s764] ss:$2 sm:$0xff]
        %s766 = scalar_lea.vmem %s191, 144 [#allocation3]
        %v767 = vld [vmem:[%s766] ss:$2 sm:$0xff]
        %s768 = scalar_lea.vmem %s191, 160 [#allocation3]
        %v769 = vld [vmem:[%s768] ss:$2 sm:$0xff]
        %s770 = scalar_lea.vmem %s191, 176 [#allocation3]
        %v771 = vld [vmem:[%s770] ss:$2 sm:$0xff]
        %s772 = scalar_lea.vmem %s191, 192 [#allocation3]
        %v773 = vld [vmem:[%s772] ss:$2 sm:$0xff]
        %s774 = scalar_lea.vmem %s191, 208 [#allocation3]
        %v775 = vld [vmem:[%s774] ss:$2 sm:$0xff]
        %s776 = scalar_lea.vmem %s191, 224 [#allocation3]
        %v777 = vld [vmem:[%s776] ss:$2 sm:$0xff]
        %s778 = scalar_lea.vmem %s191, 240 [#allocation3]
        %v779 = vld [vmem:[%s778] ss:$2 sm:$0xff]
        %s780 = scalar_lea.vmem %s191, 256 [#allocation3]
        %v781 = vld [vmem:[%s780] ss:$2 sm:$0xff]
        %s782 = scalar_lea.vmem %s191, 272 [#allocation3]
        %v783 = vld [vmem:[%s782] ss:$2 sm:$0xff]
        %s784 = scalar_lea.vmem %s191, 288 [#allocation3]
        %v785 = vld [vmem:[%s784] ss:$2 sm:$0xff]
        %s786 = scalar_lea.vmem %s191, 304 [#allocation3]
        %v787 = vld [vmem:[%s786] ss:$2 sm:$0xff]
        %s788 = scalar_lea.vmem %s191, 320 [#allocation3]
        %v789 = vld [vmem:[%s788] ss:$2 sm:$0xff]
        %s790 = scalar_lea.vmem %s191, 336 [#allocation3]
        %v791 = vld [vmem:[%s790] ss:$2 sm:$0xff]
        %s792 = scalar_lea.vmem %s191, 352 [#allocation3]
        %v793 = vld [vmem:[%s792] ss:$2 sm:$0xff]
        %s794 = scalar_lea.vmem %s191, 368 [#allocation3]
        %v795 = vld [vmem:[%s794] ss:$2 sm:$0xff]
        %s796 = scalar_lea.vmem %s191, 384 [#allocation3]
        %v797 = vld [vmem:[%s796] ss:$2 sm:$0xff]
        %s798 = scalar_lea.vmem %s191, 400 [#allocation3]
        %v799 = vld [vmem:[%s798] ss:$2 sm:$0xff]
        %s800 = scalar_lea.vmem %s191, 416 [#allocation3]
        %v801 = vld [vmem:[%s800] ss:$2 sm:$0xff]
        %s802 = scalar_lea.vmem %s191, 432 [#allocation3]
        %v803 = vld [vmem:[%s802] ss:$2 sm:$0xff]
        %s804 = scalar_lea.vmem %s191, 448 [#allocation3]
        %v805 = vld [vmem:[%s804] ss:$2 sm:$0xff]
        %s806 = scalar_lea.vmem %s191, 464 [#allocation3]
        %v807 = vld [vmem:[%s806] ss:$2 sm:$0xff]
        %s808 = scalar_lea.vmem %s191, 480 [#allocation3]
        %v809 = vld [vmem:[%s808] ss:$2 sm:$0xff]
        %s810 = scalar_lea.vmem %s191, 496 [#allocation3]
        %v811 = vld [vmem:[%s810] ss:$2 sm:$0xff]
        %v844 = vlaneseq
        %v845 = vshrl.u32 %v844, 7
        %v846 = vsub.s32 0, %v845
        %v847 = vrot.slane %v749, %v846
        %v848 = vlaneseq
        %v849 = vshrl.u32 %v848, 7
        %v850 = vsub.s32 1, %v849
        %v851 = vrot.slane %v749, %v850
        %v852 = vlaneseq
        %v853 = vshrl.u32 %v852, 7
        %v854 = vsub.s32 2, %v853
        %v855 = vrot.slane %v749, %v854
        %v856 = vlaneseq
        %v857 = vshrl.u32 %v856, 7
        %v858 = vsub.s32 3, %v857
        %v859 = vrot.slane %v749, %v858
        %v860 = vlaneseq
        %v861 = vshrl.u32 %v860, 7
        %v862 = vsub.s32 4, %v861
        %v863 = vrot.slane %v749, %v862
        %v864 = vlaneseq
        %v865 = vshrl.u32 %v864, 7
        %v866 = vsub.s32 5, %v865
        %v867 = vrot.slane %v749, %v866
        %v868 = vlaneseq
        %v869 = vshrl.u32 %v868, 7
        %v870 = vsub.s32 6, %v869
        %v871 = vrot.slane %v749, %v870
        %v872 = vlaneseq
        %v873 = vshrl.u32 %v872, 7
        %v874 = vsub.s32 7, %v873
        %v875 = vrot.slane %v749, %v874
        %v876 = vlaneseq
        %v877 = vshrl.u32 %v876, 7
        %v878 = vsub.s32 0, %v877
        %v879 = vrot.slane %v751, %v878
        %v880 = vlaneseq
        %v881 = vshrl.u32 %v880, 7
        %v882 = vsub.s32 1, %v881
        %v883 = vrot.slane %v751, %v882
        %v884 = vlaneseq
        %v885 = vshrl.u32 %v884, 7
        %v886 = vsub.s32 2, %v885
        %v887 = vrot.slane %v751, %v886
        %v888 = vlaneseq
        %v889 = vshrl.u32 %v888, 7
        %v890 = vsub.s32 3, %v889
        %v891 = vrot.slane %v751, %v890
        %v892 = vlaneseq
        %v893 = vshrl.u32 %v892, 7
        %v894 = vsub.s32 4, %v893
        %v895 = vrot.slane %v751, %v894
        %v896 = vlaneseq
        %v897 = vshrl.u32 %v896, 7
        %v898 = vsub.s32 5, %v897
        %v899 = vrot.slane %v751, %v898
        %v900 = vlaneseq
        %v901 = vshrl.u32 %v900, 7
        %v902 = vsub.s32 6, %v901
        %v903 = vrot.slane %v751, %v902
        %v904 = vlaneseq
        %v905 = vshrl.u32 %v904, 7
        %v906 = vsub.s32 7, %v905
        %v907 = vrot.slane %v751, %v906
        %v908 = vlaneseq
        %v909 = vshrl.u32 %v908, 7
        %v910 = vsub.s32 0, %v909
        %v911 = vrot.slane %v753, %v910
        %v912 = vlaneseq
        %v913 = vshrl.u32 %v912, 7
        %v914 = vsub.s32 1, %v913
        %v915 = vrot.slane %v753, %v914
        %v916 = vlaneseq
        %v917 = vshrl.u32 %v916, 7
        %v918 = vsub.s32 2, %v917
        %v919 = vrot.slane %v753, %v918
        %v920 = vlaneseq
        %v921 = vshrl.u32 %v920, 7
        %v922 = vsub.s32 3, %v921
        %v923 = vrot.slane %v753, %v922
        %v924 = vlaneseq
        %v925 = vshrl.u32 %v924, 7
        %v926 = vsub.s32 4, %v925
        %v927 = vrot.slane %v753, %v926
        %v928 = vlaneseq
        %v929 = vshrl.u32 %v928, 7
        %v930 = vsub.s32 5, %v929
        %v931 = vrot.slane %v753, %v930
        %v932 = vlaneseq
        %v933 = vshrl.u32 %v932, 7
        %v934 = vsub.s32 6, %v933
        %v935 = vrot.slane %v753, %v934
        %v936 = vlaneseq
        %v937 = vshrl.u32 %v936, 7
        %v938 = vsub.s32 7, %v937
        %v939 = vrot.slane %v753, %v938
        %v940 = vlaneseq
        %v941 = vshrl.u32 %v940, 7
        %v942 = vsub.s32 0, %v941
        %v943 = vrot.slane %v755, %v942
        %v944 = vlaneseq
        %v945 = vshrl.u32 %v944, 7
        %v946 = vsub.s32 1, %v945
        %v947 = vrot.slane %v755, %v946
        %v948 = vlaneseq
        %v949 = vshrl.u32 %v948, 7
        %v950 = vsub.s32 2, %v949
        %v951 = vrot.slane %v755, %v950
        %v952 = vlaneseq
        %v953 = vshrl.u32 %v952, 7
        %v954 = vsub.s32 3, %v953
        %v955 = vrot.slane %v755, %v954
        %v956 = vlaneseq
        %v957 = vshrl.u32 %v956, 7
        %v958 = vsub.s32 4, %v957
        %v959 = vrot.slane %v755, %v958
        %v960 = vlaneseq
        %v961 = vshrl.u32 %v960, 7
        %v962 = vsub.s32 5, %v961
        %v963 = vrot.slane %v755, %v962
        %v964 = vlaneseq
        %v965 = vshrl.u32 %v964, 7
        %v966 = vsub.s32 6, %v965
        %v967 = vrot.slane %v755, %v966
        %v968 = vlaneseq
        %v969 = vshrl.u32 %v968, 7
        %v970 = vsub.s32 7, %v969
        %v971 = vrot.slane %v755, %v970
        %v972 = vlaneseq
        %v973 = vshrl.u32 %v972, 7
        %v974 = vsub.s32 0, %v973
        %v975 = vrot.slane %v757, %v974
        %v976 = vlaneseq
        %v977 = vshrl.u32 %v976, 7
        %v978 = vsub.s32 1, %v977
        %v979 = vrot.slane %v757, %v978
        %v980 = vlaneseq
        %v981 = vshrl.u32 %v980, 7
        %v982 = vsub.s32 2, %v981
        %v983 = vrot.slane %v757, %v982
        %v984 = vlaneseq
        %v985 = vshrl.u32 %v984, 7
        %v986 = vsub.s32 3, %v985
        %v987 = vrot.slane %v757, %v986
        %v988 = vlaneseq
        %v989 = vshrl.u32 %v988, 7
        %v990 = vsub.s32 4, %v989
        %v991 = vrot.slane %v757, %v990
        %v992 = vlaneseq
        %v993 = vshrl.u32 %v992, 7
        %v994 = vsub.s32 5, %v993
        %v995 = vrot.slane %v757, %v994
        %v996 = vlaneseq
        %v997 = vshrl.u32 %v996, 7
        %v998 = vsub.s32 6, %v997
        %v999 = vrot.slane %v757, %v998
        %v1000 = vlaneseq
        %v1001 = vshrl.u32 %v1000, 7
        %v1002 = vsub.s32 7, %v1001
        %v1003 = vrot.slane %v757, %v1002
        %v1004 = vlaneseq
        %v1005 = vshrl.u32 %v1004, 7
        %v1006 = vsub.s32 0, %v1005
        %v1007 = vrot.slane %v759, %v1006
        %v1008 = vlaneseq
        %v1009 = vshrl.u32 %v1008, 7
        %v1010 = vsub.s32 1, %v1009
        %v1011 = vrot.slane %v759, %v1010
        %v1012 = vlaneseq
        %v1013 = vshrl.u32 %v1012, 7
        %v1014 = vsub.s32 2, %v1013
        %v1015 = vrot.slane %v759, %v1014
        %v1016 = vlaneseq
        %v1017 = vshrl.u32 %v1016, 7
        %v1018 = vsub.s32 3, %v1017
        %v1019 = vrot.slane %v759, %v1018
        %v1020 = vlaneseq
        %v1021 = vshrl.u32 %v1020, 7
        %v1022 = vsub.s32 4, %v1021
        %v1023 = vrot.slane %v759, %v1022
        %v1024 = vlaneseq
        %v1025 = vshrl.u32 %v1024, 7
        %v1026 = vsub.s32 5, %v1025
        %v1027 = vrot.slane %v759, %v1026
        %v1028 = vlaneseq
        %v1029 = vshrl.u32 %v1028, 7
        %v1030 = vsub.s32 6, %v1029
        %v1031 = vrot.slane %v759, %v1030
        %v1032 = vlaneseq
        %v1033 = vshrl.u32 %v1032, 7
        %v1034 = vsub.s32 7, %v1033
        %v1035 = vrot.slane %v759, %v1034
        %v1036 = vlaneseq
        %v1037 = vshrl.u32 %v1036, 7
        %v1038 = vsub.s32 0, %v1037
        %v1039 = vrot.slane %v761, %v1038
        %v1040 = vlaneseq
        %v1041 = vshrl.u32 %v1040, 7
        %v1042 = vsub.s32 1, %v1041
        %v1043 = vrot.slane %v761, %v1042
        %v1044 = vlaneseq
        %v1045 = vshrl.u32 %v1044, 7
        %v1046 = vsub.s32 2, %v1045
        %v1047 = vrot.slane %v761, %v1046
        %v1048 = vlaneseq
        %v1049 = vshrl.u32 %v1048, 7
        %v1050 = vsub.s32 3, %v1049
        %v1051 = vrot.slane %v761, %v1050
        %v1052 = vlaneseq
        %v1053 = vshrl.u32 %v1052, 7
        %v1054 = vsub.s32 4, %v1053
        %v1055 = vrot.slane %v761, %v1054
        %v1056 = vlaneseq
        %v1057 = vshrl.u32 %v1056, 7
        %v1058 = vsub.s32 5, %v1057
        %v1059 = vrot.slane %v761, %v1058
        %v1060 = vlaneseq
        %v1061 = vshrl.u32 %v1060, 7
        %v1062 = vsub.s32 6, %v1061
        %v1063 = vrot.slane %v761, %v1062
        %v1064 = vlaneseq
        %v1065 = vshrl.u32 %v1064, 7
        %v1066 = vsub.s32 7, %v1065
        %v1067 = vrot.slane %v761, %v1066
        %v1068 = vlaneseq
        %v1069 = vshrl.u32 %v1068, 7
        %v1070 = vsub.s32 0, %v1069
        %v1071 = vrot.slane %v763, %v1070
        %v1072 = vlaneseq
        %v1073 = vshrl.u32 %v1072, 7
        %v1074 = vsub.s32 1, %v1073
        %v1075 = vrot.slane %v763, %v1074
        %v1076 = vlaneseq
        %v1077 = vshrl.u32 %v1076, 7
        %v1078 = vsub.s32 2, %v1077
        %v1079 = vrot.slane %v763, %v1078
        %v1080 = vlaneseq
        %v1081 = vshrl.u32 %v1080, 7
        %v1082 = vsub.s32 3, %v1081
        %v1083 = vrot.slane %v763, %v1082
        %v1084 = vlaneseq
        %v1085 = vshrl.u32 %v1084, 7
        %v1086 = vsub.s32 4, %v1085
        %v1087 = vrot.slane %v763, %v1086
        %v1088 = vlaneseq
        %v1089 = vshrl.u32 %v1088, 7
        %v1090 = vsub.s32 5, %v1089
        %v1091 = vrot.slane %v763, %v1090
        %v1092 = vlaneseq
        %v1093 = vshrl.u32 %v1092, 7
        %v1094 = vsub.s32 6, %v1093
        %v1095 = vrot.slane %v763, %v1094
        %v1096 = vlaneseq
        %v1097 = vshrl.u32 %v1096, 7
        %v1098 = vsub.s32 7, %v1097
        %v1099 = vrot.slane %v763, %v1098
        %v1100 = vlaneseq
        %v1101 = vshrl.u32 %v1100, 7
        %v1102 = vsub.s32 0, %v1101
        %v1103 = vrot.slane %v765, %v1102
        %v1104 = vlaneseq
        %v1105 = vshrl.u32 %v1104, 7
        %v1106 = vsub.s32 1, %v1105
        %v1107 = vrot.slane %v765, %v1106
        %v1108 = vlaneseq
        %v1109 = vshrl.u32 %v1108, 7
        %v1110 = vsub.s32 2, %v1109
        %v1111 = vrot.slane %v765, %v1110
        %v1112 = vlaneseq
        %v1113 = vshrl.u32 %v1112, 7
        %v1114 = vsub.s32 3, %v1113
        %v1115 = vrot.slane %v765, %v1114
        %v1116 = vlaneseq
        %v1117 = vshrl.u32 %v1116, 7
        %v1118 = vsub.s32 4, %v1117
        %v1119 = vrot.slane %v765, %v1118
        %v1120 = vlaneseq
        %v1121 = vshrl.u32 %v1120, 7
        %v1122 = vsub.s32 5, %v1121
        %v1123 = vrot.slane %v765, %v1122
        %v1124 = vlaneseq
        %v1125 = vshrl.u32 %v1124, 7
        %v1126 = vsub.s32 6, %v1125
        %v1127 = vrot.slane %v765, %v1126
        %v1128 = vlaneseq
        %v1129 = vshrl.u32 %v1128, 7
        %v1130 = vsub.s32 7, %v1129
        %v1131 = vrot.slane %v765, %v1130
        %v1132 = vlaneseq
        %v1133 = vshrl.u32 %v1132, 7
        %v1134 = vsub.s32 0, %v1133
        %v1135 = vrot.slane %v767, %v1134
        %v1136 = vlaneseq
        %v1137 = vshrl.u32 %v1136, 7
        %v1138 = vsub.s32 1, %v1137
        %v1139 = vrot.slane %v767, %v1138
        %v1140 = vlaneseq
        %v1141 = vshrl.u32 %v1140, 7
        %v1142 = vsub.s32 2, %v1141
        %v1143 = vrot.slane %v767, %v1142
        %v1144 = vlaneseq
        %v1145 = vshrl.u32 %v1144, 7
        %v1146 = vsub.s32 3, %v1145
        %v1147 = vrot.slane %v767, %v1146
        %v1148 = vlaneseq
        %v1149 = vshrl.u32 %v1148, 7
        %v1150 = vsub.s32 4, %v1149
        %v1151 = vrot.slane %v767, %v1150
        %v1152 = vlaneseq
        %v1153 = vshrl.u32 %v1152, 7
        %v1154 = vsub.s32 5, %v1153
        %v1155 = vrot.slane %v767, %v1154
        %v1156 = vlaneseq
        %v1157 = vshrl.u32 %v1156, 7
        %v1158 = vsub.s32 6, %v1157
        %v1159 = vrot.slane %v767, %v1158
        %v1160 = vlaneseq
        %v1161 = vshrl.u32 %v1160, 7
        %v1162 = vsub.s32 7, %v1161
        %v1163 = vrot.slane %v767, %v1162
        %v1164 = vlaneseq
        %v1165 = vshrl.u32 %v1164, 7
        %v1166 = vsub.s32 0, %v1165
        %v1167 = vrot.slane %v769, %v1166
        %v1168 = vlaneseq
        %v1169 = vshrl.u32 %v1168, 7
        %v1170 = vsub.s32 1, %v1169
        %v1171 = vrot.slane %v769, %v1170
        %v1172 = vlaneseq
        %v1173 = vshrl.u32 %v1172, 7
        %v1174 = vsub.s32 2, %v1173
        %v1175 = vrot.slane %v769, %v1174
        %v1176 = vlaneseq
        %v1177 = vshrl.u32 %v1176, 7
        %v1178 = vsub.s32 3, %v1177
        %v1179 = vrot.slane %v769, %v1178
        %v1180 = vlaneseq
        %v1181 = vshrl.u32 %v1180, 7
        %v1182 = vsub.s32 4, %v1181
        %v1183 = vrot.slane %v769, %v1182
        %v1184 = vlaneseq
        %v1185 = vshrl.u32 %v1184, 7
        %v1186 = vsub.s32 5, %v1185
        %v1187 = vrot.slane %v769, %v1186
        %v1188 = vlaneseq
        %v1189 = vshrl.u32 %v1188, 7
        %v1190 = vsub.s32 6, %v1189
        %v1191 = vrot.slane %v769, %v1190
        %v1192 = vlaneseq
        %v1193 = vshrl.u32 %v1192, 7
        %v1194 = vsub.s32 7, %v1193
        %v1195 = vrot.slane %v769, %v1194
        %v1196 = vlaneseq
        %v1197 = vshrl.u32 %v1196, 7
        %v1198 = vsub.s32 0, %v1197
        %v1199 = vrot.slane %v771, %v1198
        %v1200 = vlaneseq
        %v1201 = vshrl.u32 %v1200, 7
        %v1202 = vsub.s32 1, %v1201
        %v1203 = vrot.slane %v771, %v1202
        %v1204 = vlaneseq
        %v1205 = vshrl.u32 %v1204, 7
        %v1206 = vsub.s32 2, %v1205
        %v1207 = vrot.slane %v771, %v1206
        %v1208 = vlaneseq
        %v1209 = vshrl.u32 %v1208, 7
        %v1210 = vsub.s32 3, %v1209
        %v1211 = vrot.slane %v771, %v1210
        %v1212 = vlaneseq
        %v1213 = vshrl.u32 %v1212, 7
        %v1214 = vsub.s32 4, %v1213
        %v1215 = vrot.slane %v771, %v1214
        %v1216 = vlaneseq
        %v1217 = vshrl.u32 %v1216, 7
        %v1218 = vsub.s32 5, %v1217
        %v1219 = vrot.slane %v771, %v1218
        %v1220 = vlaneseq
        %v1221 = vshrl.u32 %v1220, 7
        %v1222 = vsub.s32 6, %v1221
        %v1223 = vrot.slane %v771, %v1222
        %v1224 = vlaneseq
        %v1225 = vshrl.u32 %v1224, 7
        %v1226 = vsub.s32 7, %v1225
        %v1227 = vrot.slane %v771, %v1226
        %v1228 = vlaneseq
        %v1229 = vshrl.u32 %v1228, 7
        %v1230 = vsub.s32 0, %v1229
        %v1231 = vrot.slane %v773, %v1230
        %v1232 = vlaneseq
        %v1233 = vshrl.u32 %v1232, 7
        %v1234 = vsub.s32 1, %v1233
        %v1235 = vrot.slane %v773, %v1234
        %v1236 = vlaneseq
        %v1237 = vshrl.u32 %v1236, 7
        %v1238 = vsub.s32 2, %v1237
        %v1239 = vrot.slane %v773, %v1238
        %v1240 = vlaneseq
        %v1241 = vshrl.u32 %v1240, 7
        %v1242 = vsub.s32 3, %v1241
        %v1243 = vrot.slane %v773, %v1242
        %v1244 = vlaneseq
        %v1245 = vshrl.u32 %v1244, 7
        %v1246 = vsub.s32 4, %v1245
        %v1247 = vrot.slane %v773, %v1246
        %v1248 = vlaneseq
        %v1249 = vshrl.u32 %v1248, 7
        %v1250 = vsub.s32 5, %v1249
        %v1251 = vrot.slane %v773, %v1250
        %v1252 = vlaneseq
        %v1253 = vshrl.u32 %v1252, 7
        %v1254 = vsub.s32 6, %v1253
        %v1255 = vrot.slane %v773, %v1254
        %v1256 = vlaneseq
        %v1257 = vshrl.u32 %v1256, 7
        %v1258 = vsub.s32 7, %v1257
        %v1259 = vrot.slane %v773, %v1258
        %v1260 = vlaneseq
        %v1261 = vshrl.u32 %v1260, 7
        %v1262 = vsub.s32 0, %v1261
        %v1263 = vrot.slane %v775, %v1262
        %v1264 = vlaneseq
        %v1265 = vshrl.u32 %v1264, 7
        %v1266 = vsub.s32 1, %v1265
        %v1267 = vrot.slane %v775, %v1266
        %v1268 = vlaneseq
        %v1269 = vshrl.u32 %v1268, 7
        %v1270 = vsub.s32 2, %v1269
        %v1271 = vrot.slane %v775, %v1270
        %v1272 = vlaneseq
        %v1273 = vshrl.u32 %v1272, 7
        %v1274 = vsub.s32 3, %v1273
        %v1275 = vrot.slane %v775, %v1274
        %v1276 = vlaneseq
        %v1277 = vshrl.u32 %v1276, 7
        %v1278 = vsub.s32 4, %v1277
        %v1279 = vrot.slane %v775, %v1278
        %v1280 = vlaneseq
        %v1281 = vshrl.u32 %v1280, 7
        %v1282 = vsub.s32 5, %v1281
        %v1283 = vrot.slane %v775, %v1282
        %v1284 = vlaneseq
        %v1285 = vshrl.u32 %v1284, 7
        %v1286 = vsub.s32 6, %v1285
        %v1287 = vrot.slane %v775, %v1286
        %v1288 = vlaneseq
        %v1289 = vshrl.u32 %v1288, 7
        %v1290 = vsub.s32 7, %v1289
        %v1291 = vrot.slane %v775, %v1290
        %v1292 = vlaneseq
        %v1293 = vshrl.u32 %v1292, 7
        %v1294 = vsub.s32 0, %v1293
        %v1295 = vrot.slane %v777, %v1294
        %v1296 = vlaneseq
        %v1297 = vshrl.u32 %v1296, 7
        %v1298 = vsub.s32 1, %v1297
        %v1299 = vrot.slane %v777, %v1298
        %v1300 = vlaneseq
        %v1301 = vshrl.u32 %v1300, 7
        %v1302 = vsub.s32 2, %v1301
        %v1303 = vrot.slane %v777, %v1302
        %v1304 = vlaneseq
        %v1305 = vshrl.u32 %v1304, 7
        %v1306 = vsub.s32 3, %v1305
        %v1307 = vrot.slane %v777, %v1306
        %v1308 = vlaneseq
        %v1309 = vshrl.u32 %v1308, 7
        %v1310 = vsub.s32 4, %v1309
        %v1311 = vrot.slane %v777, %v1310
        %v1312 = vlaneseq
        %v1313 = vshrl.u32 %v1312, 7
        %v1314 = vsub.s32 5, %v1313
        %v1315 = vrot.slane %v777, %v1314
        %v1316 = vlaneseq
        %v1317 = vshrl.u32 %v1316, 7
        %v1318 = vsub.s32 6, %v1317
        %v1319 = vrot.slane %v777, %v1318
        %v1320 = vlaneseq
        %v1321 = vshrl.u32 %v1320, 7
        %v1322 = vsub.s32 7, %v1321
        %v1323 = vrot.slane %v777, %v1322
        %v1324 = vlaneseq
        %v1325 = vshrl.u32 %v1324, 7
        %v1326 = vsub.s32 0, %v1325
        %v1327 = vrot.slane %v779, %v1326
        %v1328 = vlaneseq
        %v1329 = vshrl.u32 %v1328, 7
        %v1330 = vsub.s32 1, %v1329
        %v1331 = vrot.slane %v779, %v1330
        %v1332 = vlaneseq
        %v1333 = vshrl.u32 %v1332, 7
        %v1334 = vsub.s32 2, %v1333
        %v1335 = vrot.slane %v779, %v1334
        %v1336 = vlaneseq
        %v1337 = vshrl.u32 %v1336, 7
        %v1338 = vsub.s32 3, %v1337
        %v1339 = vrot.slane %v779, %v1338
        %v1340 = vlaneseq
        %v1341 = vshrl.u32 %v1340, 7
        %v1342 = vsub.s32 4, %v1341
        %v1343 = vrot.slane %v779, %v1342
        %v1344 = vlaneseq
        %v1345 = vshrl.u32 %v1344, 7
        %v1346 = vsub.s32 5, %v1345
        %v1347 = vrot.slane %v779, %v1346
        %v1348 = vlaneseq
        %v1349 = vshrl.u32 %v1348, 7
        %v1350 = vsub.s32 6, %v1349
        %v1351 = vrot.slane %v779, %v1350
        %v1352 = vlaneseq
        %v1353 = vshrl.u32 %v1352, 7
        %v1354 = vsub.s32 7, %v1353
        %v1355 = vrot.slane %v779, %v1354
        %v1356 = vlaneseq
        %v1357 = vshrl.u32 %v1356, 7
        %v1358 = vsub.s32 0, %v1357
        %v1359 = vrot.slane %v781, %v1358
        %v1360 = vlaneseq
        %v1361 = vshrl.u32 %v1360, 7
        %v1362 = vsub.s32 1, %v1361
        %v1363 = vrot.slane %v781, %v1362
        %v1364 = vlaneseq
        %v1365 = vshrl.u32 %v1364, 7
        %v1366 = vsub.s32 2, %v1365
        %v1367 = vrot.slane %v781, %v1366
        %v1368 = vlaneseq
        %v1369 = vshrl.u32 %v1368, 7
        %v1370 = vsub.s32 3, %v1369
        %v1371 = vrot.slane %v781, %v1370
        %v1372 = vlaneseq
        %v1373 = vshrl.u32 %v1372, 7
        %v1374 = vsub.s32 4, %v1373
        %v1375 = vrot.slane %v781, %v1374
        %v1376 = vlaneseq
        %v1377 = vshrl.u32 %v1376, 7
        %v1378 = vsub.s32 5, %v1377
        %v1379 = vrot.slane %v781, %v1378
        %v1380 = vlaneseq
        %v1381 = vshrl.u32 %v1380, 7
        %v1382 = vsub.s32 6, %v1381
        %v1383 = vrot.slane %v781, %v1382
        %v1384 = vlaneseq
        %v1385 = vshrl.u32 %v1384, 7
        %v1386 = vsub.s32 7, %v1385
        %v1387 = vrot.slane %v781, %v1386
        %v1388 = vlaneseq
        %v1389 = vshrl.u32 %v1388, 7
        %v1390 = vsub.s32 0, %v1389
        %v1391 = vrot.slane %v783, %v1390
        %v1392 = vlaneseq
        %v1393 = vshrl.u32 %v1392, 7
        %v1394 = vsub.s32 1, %v1393
        %v1395 = vrot.slane %v783, %v1394
        %v1396 = vlaneseq
        %v1397 = vshrl.u32 %v1396, 7
        %v1398 = vsub.s32 2, %v1397
        %v1399 = vrot.slane %v783, %v1398
        %v1400 = vlaneseq
        %v1401 = vshrl.u32 %v1400, 7
        %v1402 = vsub.s32 3, %v1401
        %v1403 = vrot.slane %v783, %v1402
        %v1404 = vlaneseq
        %v1405 = vshrl.u32 %v1404, 7
        %v1406 = vsub.s32 4, %v1405
        %v1407 = vrot.slane %v783, %v1406
        %v1408 = vlaneseq
        %v1409 = vshrl.u32 %v1408, 7
        %v1410 = vsub.s32 5, %v1409
        %v1411 = vrot.slane %v783, %v1410
        %v1412 = vlaneseq
        %v1413 = vshrl.u32 %v1412, 7
        %v1414 = vsub.s32 6, %v1413
        %v1415 = vrot.slane %v783, %v1414
        %v1416 = vlaneseq
        %v1417 = vshrl.u32 %v1416, 7
        %v1418 = vsub.s32 7, %v1417
        %v1419 = vrot.slane %v783, %v1418
        %v1420 = vlaneseq
        %v1421 = vshrl.u32 %v1420, 7
        %v1422 = vsub.s32 0, %v1421
        %v1423 = vrot.slane %v785, %v1422
        %v1424 = vlaneseq
        %v1425 = vshrl.u32 %v1424, 7
        %v1426 = vsub.s32 1, %v1425
        %v1427 = vrot.slane %v785, %v1426
        %v1428 = vlaneseq
        %v1429 = vshrl.u32 %v1428, 7
        %v1430 = vsub.s32 2, %v1429
        %v1431 = vrot.slane %v785, %v1430
        %v1432 = vlaneseq
        %v1433 = vshrl.u32 %v1432, 7
        %v1434 = vsub.s32 3, %v1433
        %v1435 = vrot.slane %v785, %v1434
        %v1436 = vlaneseq
        %v1437 = vshrl.u32 %v1436, 7
        %v1438 = vsub.s32 4, %v1437
        %v1439 = vrot.slane %v785, %v1438
        %v1440 = vlaneseq
        %v1441 = vshrl.u32 %v1440, 7
        %v1442 = vsub.s32 5, %v1441
        %v1443 = vrot.slane %v785, %v1442
        %v1444 = vlaneseq
        %v1445 = vshrl.u32 %v1444, 7
        %v1446 = vsub.s32 6, %v1445
        %v1447 = vrot.slane %v785, %v1446
        %v1448 = vlaneseq
        %v1449 = vshrl.u32 %v1448, 7
        %v1450 = vsub.s32 7, %v1449
        %v1451 = vrot.slane %v785, %v1450
        %v1452 = vlaneseq
        %v1453 = vshrl.u32 %v1452, 7
        %v1454 = vsub.s32 0, %v1453
        %v1455 = vrot.slane %v787, %v1454
        %v1456 = vlaneseq
        %v1457 = vshrl.u32 %v1456, 7
        %v1458 = vsub.s32 1, %v1457
        %v1459 = vrot.slane %v787, %v1458
        %v1460 = vlaneseq
        %v1461 = vshrl.u32 %v1460, 7
        %v1462 = vsub.s32 2, %v1461
        %v1463 = vrot.slane %v787, %v1462
        %v1464 = vlaneseq
        %v1465 = vshrl.u32 %v1464, 7
        %v1466 = vsub.s32 3, %v1465
        %v1467 = vrot.slane %v787, %v1466
        %v1468 = vlaneseq
        %v1469 = vshrl.u32 %v1468, 7
        %v1470 = vsub.s32 4, %v1469
        %v1471 = vrot.slane %v787, %v1470
        %v1472 = vlaneseq
        %v1473 = vshrl.u32 %v1472, 7
        %v1474 = vsub.s32 5, %v1473
        %v1475 = vrot.slane %v787, %v1474
        %v1476 = vlaneseq
        %v1477 = vshrl.u32 %v1476, 7
        %v1478 = vsub.s32 6, %v1477
        %v1479 = vrot.slane %v787, %v1478
        %v1480 = vlaneseq
        %v1481 = vshrl.u32 %v1480, 7
        %v1482 = vsub.s32 7, %v1481
        %v1483 = vrot.slane %v787, %v1482
        %v1484 = vlaneseq
        %v1485 = vshrl.u32 %v1484, 7
        %v1486 = vsub.s32 0, %v1485
        %v1487 = vrot.slane %v789, %v1486
        %v1488 = vlaneseq
        %v1489 = vshrl.u32 %v1488, 7
        %v1490 = vsub.s32 1, %v1489
        %v1491 = vrot.slane %v789, %v1490
        %v1492 = vlaneseq
        %v1493 = vshrl.u32 %v1492, 7
        %v1494 = vsub.s32 2, %v1493
        %v1495 = vrot.slane %v789, %v1494
        %v1496 = vlaneseq
        %v1497 = vshrl.u32 %v1496, 7
        %v1498 = vsub.s32 3, %v1497
        %v1499 = vrot.slane %v789, %v1498
        %v1500 = vlaneseq
        %v1501 = vshrl.u32 %v1500, 7
        %v1502 = vsub.s32 4, %v1501
        %v1503 = vrot.slane %v789, %v1502
        %v1504 = vlaneseq
        %v1505 = vshrl.u32 %v1504, 7
        %v1506 = vsub.s32 5, %v1505
        %v1507 = vrot.slane %v789, %v1506
        %v1508 = vlaneseq
        %v1509 = vshrl.u32 %v1508, 7
        %v1510 = vsub.s32 6, %v1509
        %v1511 = vrot.slane %v789, %v1510
        %v1512 = vlaneseq
        %v1513 = vshrl.u32 %v1512, 7
        %v1514 = vsub.s32 7, %v1513
        %v1515 = vrot.slane %v789, %v1514
        %v1516 = vlaneseq
        %v1517 = vshrl.u32 %v1516, 7
        %v1518 = vsub.s32 0, %v1517
        %v1519 = vrot.slane %v791, %v1518
        %v1520 = vlaneseq
        %v1521 = vshrl.u32 %v1520, 7
        %v1522 = vsub.s32 1, %v1521
        %v1523 = vrot.slane %v791, %v1522
        %v1524 = vlaneseq
        %v1525 = vshrl.u32 %v1524, 7
        %v1526 = vsub.s32 2, %v1525
        %v1527 = vrot.slane %v791, %v1526
        %v1528 = vlaneseq
        %v1529 = vshrl.u32 %v1528, 7
        %v1530 = vsub.s32 3, %v1529
        %v1531 = vrot.slane %v791, %v1530
        %v1532 = vlaneseq
        %v1533 = vshrl.u32 %v1532, 7
        %v1534 = vsub.s32 4, %v1533
        %v1535 = vrot.slane %v791, %v1534
        %v1536 = vlaneseq
        %v1537 = vshrl.u32 %v1536, 7
        %v1538 = vsub.s32 5, %v1537
        %v1539 = vrot.slane %v791, %v1538
        %v1540 = vlaneseq
        %v1541 = vshrl.u32 %v1540, 7
        %v1542 = vsub.s32 6, %v1541
        %v1543 = vrot.slane %v791, %v1542
        %v1544 = vlaneseq
        %v1545 = vshrl.u32 %v1544, 7
        %v1546 = vsub.s32 7, %v1545
        %v1547 = vrot.slane %v791, %v1546
        %v1548 = vlaneseq
        %v1549 = vshrl.u32 %v1548, 7
        %v1550 = vsub.s32 0, %v1549
        %v1551 = vrot.slane %v793, %v1550
        %v1552 = vlaneseq
        %v1553 = vshrl.u32 %v1552, 7
        %v1554 = vsub.s32 1, %v1553
        %v1555 = vrot.slane %v793, %v1554
        %v1556 = vlaneseq
        %v1557 = vshrl.u32 %v1556, 7
        %v1558 = vsub.s32 2, %v1557
        %v1559 = vrot.slane %v793, %v1558
        %v1560 = vlaneseq
        %v1561 = vshrl.u32 %v1560, 7
        %v1562 = vsub.s32 3, %v1561
        %v1563 = vrot.slane %v793, %v1562
        %v1564 = vlaneseq
        %v1565 = vshrl.u32 %v1564, 7
        %v1566 = vsub.s32 4, %v1565
        %v1567 = vrot.slane %v793, %v1566
        %v1568 = vlaneseq
        %v1569 = vshrl.u32 %v1568, 7
        %v1570 = vsub.s32 5, %v1569
        %v1571 = vrot.slane %v793, %v1570
        %v1572 = vlaneseq
        %v1573 = vshrl.u32 %v1572, 7
        %v1574 = vsub.s32 6, %v1573
        %v1575 = vrot.slane %v793, %v1574
        %v1576 = vlaneseq
        %v1577 = vshrl.u32 %v1576, 7
        %v1578 = vsub.s32 7, %v1577
        %v1579 = vrot.slane %v793, %v1578
        %v1580 = vlaneseq
        %v1581 = vshrl.u32 %v1580, 7
        %v1582 = vsub.s32 0, %v1581
        %v1583 = vrot.slane %v795, %v1582
        %v1584 = vlaneseq
        %v1585 = vshrl.u32 %v1584, 7
        %v1586 = vsub.s32 1, %v1585
        %v1587 = vrot.slane %v795, %v1586
        %v1588 = vlaneseq
        %v1589 = vshrl.u32 %v1588, 7
        %v1590 = vsub.s32 2, %v1589
        %v1591 = vrot.slane %v795, %v1590
        %v1592 = vlaneseq
        %v1593 = vshrl.u32 %v1592, 7
        %v1594 = vsub.s32 3, %v1593
        %v1595 = vrot.slane %v795, %v1594
        %v1596 = vlaneseq
        %v1597 = vshrl.u32 %v1596, 7
        %v1598 = vsub.s32 4, %v1597
        %v1599 = vrot.slane %v795, %v1598
        %v1600 = vlaneseq
        %v1601 = vshrl.u32 %v1600, 7
        %v1602 = vsub.s32 5, %v1601
        %v1603 = vrot.slane %v795, %v1602
        %v1604 = vlaneseq
        %v1605 = vshrl.u32 %v1604, 7
        %v1606 = vsub.s32 6, %v1605
        %v1607 = vrot.slane %v795, %v1606
        %v1608 = vlaneseq
        %v1609 = vshrl.u32 %v1608, 7
        %v1610 = vsub.s32 7, %v1609
        %v1611 = vrot.slane %v795, %v1610
        %v1612 = vlaneseq
        %v1613 = vshrl.u32 %v1612, 7
        %v1614 = vsub.s32 0, %v1613
        %v1615 = vrot.slane %v797, %v1614
        %v1616 = vlaneseq
        %v1617 = vshrl.u32 %v1616, 7
        %v1618 = vsub.s32 1, %v1617
        %v1619 = vrot.slane %v797, %v1618
        %v1620 = vlaneseq
        %v1621 = vshrl.u32 %v1620, 7
        %v1622 = vsub.s32 2, %v1621
        %v1623 = vrot.slane %v797, %v1622
        %v1624 = vlaneseq
        %v1625 = vshrl.u32 %v1624, 7
        %v1626 = vsub.s32 3, %v1625
        %v1627 = vrot.slane %v797, %v1626
        %v1628 = vlaneseq
        %v1629 = vshrl.u32 %v1628, 7
        %v1630 = vsub.s32 4, %v1629
        %v1631 = vrot.slane %v797, %v1630
        %v1632 = vlaneseq
        %v1633 = vshrl.u32 %v1632, 7
        %v1634 = vsub.s32 5, %v1633
        %v1635 = vrot.slane %v797, %v1634
        %v1636 = vlaneseq
        %v1637 = vshrl.u32 %v1636, 7
        %v1638 = vsub.s32 6, %v1637
        %v1639 = vrot.slane %v797, %v1638
        %v1640 = vlaneseq
        %v1641 = vshrl.u32 %v1640, 7
        %v1642 = vsub.s32 7, %v1641
        %v1643 = vrot.slane %v797, %v1642
        %v1644 = vlaneseq
        %v1645 = vshrl.u32 %v1644, 7
        %v1646 = vsub.s32 0, %v1645
        %v1647 = vrot.slane %v799, %v1646
        %v1648 = vlaneseq
        %v1649 = vshrl.u32 %v1648, 7
        %v1650 = vsub.s32 1, %v1649
        %v1651 = vrot.slane %v799, %v1650
        %v1652 = vlaneseq
        %v1653 = vshrl.u32 %v1652, 7
        %v1654 = vsub.s32 2, %v1653
        %v1655 = vrot.slane %v799, %v1654
        %v1656 = vlaneseq
        %v1657 = vshrl.u32 %v1656, 7
        %v1658 = vsub.s32 3, %v1657
        %v1659 = vrot.slane %v799, %v1658
        %v1660 = vlaneseq
        %v1661 = vshrl.u32 %v1660, 7
        %v1662 = vsub.s32 4, %v1661
        %v1663 = vrot.slane %v799, %v1662
        %v1664 = vlaneseq
        %v1665 = vshrl.u32 %v1664, 7
        %v1666 = vsub.s32 5, %v1665
        %v1667 = vrot.slane %v799, %v1666
        %v1668 = vlaneseq
        %v1669 = vshrl.u32 %v1668, 7
        %v1670 = vsub.s32 6, %v1669
        %v1671 = vrot.slane %v799, %v1670
        %v1672 = vlaneseq
        %v1673 = vshrl.u32 %v1672, 7
        %v1674 = vsub.s32 7, %v1673
        %v1675 = vrot.slane %v799, %v1674
        %v1676 = vlaneseq
        %v1677 = vshrl.u32 %v1676, 7
        %v1678 = vsub.s32 0, %v1677
        %v1679 = vrot.slane %v801, %v1678
        %v1680 = vlaneseq
        %v1681 = vshrl.u32 %v1680, 7
        %v1682 = vsub.s32 1, %v1681
        %v1683 = vrot.slane %v801, %v1682
        %v1684 = vlaneseq
        %v1685 = vshrl.u32 %v1684, 7
        %v1686 = vsub.s32 2, %v1685
        %v1687 = vrot.slane %v801, %v1686
        %v1688 = vlaneseq
        %v1689 = vshrl.u32 %v1688, 7
        %v1690 = vsub.s32 3, %v1689
        %v1691 = vrot.slane %v801, %v1690
        %v1692 = vlaneseq
        %v1693 = vshrl.u32 %v1692, 7
        %v1694 = vsub.s32 4, %v1693
        %v1695 = vrot.slane %v801, %v1694
        %v1696 = vlaneseq
        %v1697 = vshrl.u32 %v1696, 7
        %v1698 = vsub.s32 5, %v1697
        %v1699 = vrot.slane %v801, %v1698
        %v1700 = vlaneseq
        %v1701 = vshrl.u32 %v1700, 7
        %v1702 = vsub.s32 6, %v1701
        %v1703 = vrot.slane %v801, %v1702
        %v1704 = vlaneseq
        %v1705 = vshrl.u32 %v1704, 7
        %v1706 = vsub.s32 7, %v1705
        %v1707 = vrot.slane %v801, %v1706
        %v1708 = vlaneseq
        %v1709 = vshrl.u32 %v1708, 7
        %v1710 = vsub.s32 0, %v1709
        %v1711 = vrot.slane %v803, %v1710
        %v1712 = vlaneseq
        %v1713 = vshrl.u32 %v1712, 7
        %v1714 = vsub.s32 1, %v1713
        %v1715 = vrot.slane %v803, %v1714
        %v1716 = vlaneseq
        %v1717 = vshrl.u32 %v1716, 7
        %v1718 = vsub.s32 2, %v1717
        %v1719 = vrot.slane %v803, %v1718
        %v1720 = vlaneseq
        %v1721 = vshrl.u32 %v1720, 7
        %v1722 = vsub.s32 3, %v1721
        %v1723 = vrot.slane %v803, %v1722
        %v1724 = vlaneseq
        %v1725 = vshrl.u32 %v1724, 7
        %v1726 = vsub.s32 4, %v1725
        %v1727 = vrot.slane %v803, %v1726
        %v1728 = vlaneseq
        %v1729 = vshrl.u32 %v1728, 7
        %v1730 = vsub.s32 5, %v1729
        %v1731 = vrot.slane %v803, %v1730
        %v1732 = vlaneseq
        %v1733 = vshrl.u32 %v1732, 7
        %v1734 = vsub.s32 6, %v1733
        %v1735 = vrot.slane %v803, %v1734
        %v1736 = vlaneseq
        %v1737 = vshrl.u32 %v1736, 7
        %v1738 = vsub.s32 7, %v1737
        %v1739 = vrot.slane %v803, %v1738
        %v1740 = vlaneseq
        %v1741 = vshrl.u32 %v1740, 7
        %v1742 = vsub.s32 0, %v1741
        %v1743 = vrot.slane %v805, %v1742
        %v1744 = vlaneseq
        %v1745 = vshrl.u32 %v1744, 7
        %v1746 = vsub.s32 1, %v1745
        %v1747 = vrot.slane %v805, %v1746
        %v1748 = vlaneseq
        %v1749 = vshrl.u32 %v1748, 7
        %v1750 = vsub.s32 2, %v1749
        %v1751 = vrot.slane %v805, %v1750
        %v1752 = vlaneseq
        %v1753 = vshrl.u32 %v1752, 7
        %v1754 = vsub.s32 3, %v1753
        %v1755 = vrot.slane %v805, %v1754
        %v1756 = vlaneseq
        %v1757 = vshrl.u32 %v1756, 7
        %v1758 = vsub.s32 4, %v1757
        %v1759 = vrot.slane %v805, %v1758
        %v1760 = vlaneseq
        %v1761 = vshrl.u32 %v1760, 7
        %v1762 = vsub.s32 5, %v1761
        %v1763 = vrot.slane %v805, %v1762
        %v1764 = vlaneseq
        %v1765 = vshrl.u32 %v1764, 7
        %v1766 = vsub.s32 6, %v1765
        %v1767 = vrot.slane %v805, %v1766
        %v1768 = vlaneseq
        %v1769 = vshrl.u32 %v1768, 7
        %v1770 = vsub.s32 7, %v1769
        %v1771 = vrot.slane %v805, %v1770
        %v1772 = vlaneseq
        %v1773 = vshrl.u32 %v1772, 7
        %v1774 = vsub.s32 0, %v1773
        %v1775 = vrot.slane %v807, %v1774
        %v1776 = vlaneseq
        %v1777 = vshrl.u32 %v1776, 7
        %v1778 = vsub.s32 1, %v1777
        %v1779 = vrot.slane %v807, %v1778
        %v1780 = vlaneseq
        %v1781 = vshrl.u32 %v1780, 7
        %v1782 = vsub.s32 2, %v1781
        %v1783 = vrot.slane %v807, %v1782
        %v1784 = vlaneseq
        %v1785 = vshrl.u32 %v1784, 7
        %v1786 = vsub.s32 3, %v1785
        %v1787 = vrot.slane %v807, %v1786
        %v1788 = vlaneseq
        %v1789 = vshrl.u32 %v1788, 7
        %v1790 = vsub.s32 4, %v1789
        %v1791 = vrot.slane %v807, %v1790
        %v1792 = vlaneseq
        %v1793 = vshrl.u32 %v1792, 7
        %v1794 = vsub.s32 5, %v1793
        %v1795 = vrot.slane %v807, %v1794
        %v1796 = vlaneseq
        %v1797 = vshrl.u32 %v1796, 7
        %v1798 = vsub.s32 6, %v1797
        %v1799 = vrot.slane %v807, %v1798
        %v1800 = vlaneseq
        %v1801 = vshrl.u32 %v1800, 7
        %v1802 = vsub.s32 7, %v1801
        %v1803 = vrot.slane %v807, %v1802
        %v1804 = vlaneseq
        %v1805 = vshrl.u32 %v1804, 7
        %v1806 = vsub.s32 0, %v1805
        %v1807 = vrot.slane %v809, %v1806
        %v1808 = vlaneseq
        %v1809 = vshrl.u32 %v1808, 7
        %v1810 = vsub.s32 1, %v1809
        %v1811 = vrot.slane %v809, %v1810
        %v1812 = vlaneseq
        %v1813 = vshrl.u32 %v1812, 7
        %v1814 = vsub.s32 2, %v1813
        %v1815 = vrot.slane %v809, %v1814
        %v1816 = vlaneseq
        %v1817 = vshrl.u32 %v1816, 7
        %v1818 = vsub.s32 3, %v1817
        %v1819 = vrot.slane %v809, %v1818
        %v1820 = vlaneseq
        %v1821 = vshrl.u32 %v1820, 7
        %v1822 = vsub.s32 4, %v1821
        %v1823 = vrot.slane %v809, %v1822
        %v1824 = vlaneseq
        %v1825 = vshrl.u32 %v1824, 7
        %v1826 = vsub.s32 5, %v1825
        %v1827 = vrot.slane %v809, %v1826
        %v1828 = vlaneseq
        %v1829 = vshrl.u32 %v1828, 7
        %v1830 = vsub.s32 6, %v1829
        %v1831 = vrot.slane %v809, %v1830
        %v1832 = vlaneseq
        %v1833 = vshrl.u32 %v1832, 7
        %v1834 = vsub.s32 7, %v1833
        %v1835 = vrot.slane %v809, %v1834
        %v1836 = vlaneseq
        %v1837 = vshrl.u32 %v1836, 7
        %v1838 = vsub.s32 0, %v1837
        %v1839 = vrot.slane %v811, %v1838
        %v1840 = vlaneseq
        %v1841 = vshrl.u32 %v1840, 7
        %v1842 = vsub.s32 1, %v1841
        %v1843 = vrot.slane %v811, %v1842
        %v1844 = vlaneseq
        %v1845 = vshrl.u32 %v1844, 7
        %v1846 = vsub.s32 2, %v1845
        %v1847 = vrot.slane %v811, %v1846
        %v1848 = vlaneseq
        %v1849 = vshrl.u32 %v1848, 7
        %v1850 = vsub.s32 3, %v1849
        %v1851 = vrot.slane %v811, %v1850
        %v1852 = vlaneseq
        %v1853 = vshrl.u32 %v1852, 7
        %v1854 = vsub.s32 4, %v1853
        %v1855 = vrot.slane %v811, %v1854
        %v1856 = vlaneseq
        %v1857 = vshrl.u32 %v1856, 7
        %v1858 = vsub.s32 5, %v1857
        %v1859 = vrot.slane %v811, %v1858
        %v1860 = vlaneseq
        %v1861 = vshrl.u32 %v1860, 7
        %v1862 = vsub.s32 6, %v1861
        %v1863 = vrot.slane %v811, %v1862
        %v1864 = vlaneseq
        %v1865 = vshrl.u32 %v1864, 7
        %v1866 = vsub.s32 7, %v1865
        %v1867 = vrot.slane %v811, %v1866
        %v2124 = vmul.f32 %v847, %v237
        %v2125 = vmul.f32 %v851, %v238
        %v2126 = vmul.f32 %v855, %v239
        %v2127 = vmul.f32 %v859, %v240
        %v2128 = vmul.f32 %v863, %v241
        %v2129 = vmul.f32 %v867, %v242
        %v2130 = vmul.f32 %v871, %v243
        %v2131 = vmul.f32 %v875, %v244
        %v2132 = vmul.f32 %v879, %v245
        %v2133 = vmul.f32 %v883, %v246
        %v2134 = vmul.f32 %v887, %v247
        %v2135 = vmul.f32 %v891, %v248
        %v2136 = vmul.f32 %v895, %v249
        %v2137 = vmul.f32 %v899, %v250
        %v2138 = vmul.f32 %v903, %v251
        %v2139 = vmul.f32 %v907, %v252
        %v2140 = vmul.f32 %v911, %v253
        %v2141 = vmul.f32 %v915, %v254
        %v2142 = vmul.f32 %v919, %v255
        %v2143 = vmul.f32 %v923, %v256
        %v2144 = vmul.f32 %v927, %v257
        %v2145 = vmul.f32 %v931, %v258
        %v2146 = vmul.f32 %v935, %v259
        %v2147 = vmul.f32 %v939, %v260
        %v2148 = vmul.f32 %v943, %v261
        %v2149 = vmul.f32 %v947, %v262
        %v2150 = vmul.f32 %v951, %v263
        %v2151 = vmul.f32 %v955, %v264
        %v2152 = vmul.f32 %v959, %v265
        %v2153 = vmul.f32 %v963, %v266
        %v2154 = vmul.f32 %v967, %v267
        %v2155 = vmul.f32 %v971, %v268
        %v2156 = vmul.f32 %v975, %v269
        %v2157 = vmul.f32 %v979, %v270
        %v2158 = vmul.f32 %v983, %v271
        %v2159 = vmul.f32 %v987, %v272
        %v2160 = vmul.f32 %v991, %v273
        %v2161 = vmul.f32 %v995, %v274
        %v2162 = vmul.f32 %v999, %v275
        %v2163 = vmul.f32 %v1003, %v276
        %v2164 = vmul.f32 %v1007, %v277
        %v2165 = vmul.f32 %v1011, %v278
        %v2166 = vmul.f32 %v1015, %v279
        %v2167 = vmul.f32 %v1019, %v280
        %v2168 = vmul.f32 %v1023, %v281
        %v2169 = vmul.f32 %v1027, %v282
        %v2170 = vmul.f32 %v1031, %v283
        %v2171 = vmul.f32 %v1035, %v284
        %v2172 = vmul.f32 %v1039, %v285
        %v2173 = vmul.f32 %v1043, %v286
        %v2174 = vmul.f32 %v1047, %v287
        %v2175 = vmul.f32 %v1051, %v288
        %v2176 = vmul.f32 %v1055, %v289
        %v2177 = vmul.f32 %v1059, %v290
        %v2178 = vmul.f32 %v1063, %v291
        %v2179 = vmul.f32 %v1067, %v292
        %v2180 = vmul.f32 %v1071, %v293
        %v2181 = vmul.f32 %v1075, %v294
        %v2182 = vmul.f32 %v1079, %v295
        %v2183 = vmul.f32 %v1083, %v296
        %v2184 = vmul.f32 %v1087, %v297
        %v2185 = vmul.f32 %v1091, %v298
        %v2186 = vmul.f32 %v1095, %v299
        %v2187 = vmul.f32 %v1099, %v300
        %v2188 = vmul.f32 %v1103, %v301
        %v2189 = vmul.f32 %v1107, %v302
        %v2190 = vmul.f32 %v1111, %v303
        %v2191 = vmul.f32 %v1115, %v304
        %v2192 = vmul.f32 %v1119, %v305
        %v2193 = vmul.f32 %v1123, %v306
        %v2194 = vmul.f32 %v1127, %v307
        %v2195 = vmul.f32 %v1131, %v308
        %v2196 = vmul.f32 %v1135, %v309
        %v2197 = vmul.f32 %v1139, %v310
        %v2198 = vmul.f32 %v1143, %v311
        %v2199 = vmul.f32 %v1147, %v312
        %v2200 = vmul.f32 %v1151, %v313
        %v2201 = vmul.f32 %v1155, %v314
        %v2202 = vmul.f32 %v1159, %v315
        %v2203 = vmul.f32 %v1163, %v316
        %v2204 = vmul.f32 %v1167, %v317
        %v2205 = vmul.f32 %v1171, %v318
        %v2206 = vmul.f32 %v1175, %v319
        %v2207 = vmul.f32 %v1179, %v320
        %v2208 = vmul.f32 %v1183, %v321
        %v2209 = vmul.f32 %v1187, %v322
        %v2210 = vmul.f32 %v1191, %v323
        %v2211 = vmul.f32 %v1195, %v324
        %v2212 = vmul.f32 %v1199, %v325
        %v2213 = vmul.f32 %v1203, %v326
        %v2214 = vmul.f32 %v1207, %v327
        %v2215 = vmul.f32 %v1211, %v328
        %v2216 = vmul.f32 %v1215, %v329
        %v2217 = vmul.f32 %v1219, %v330
        %v2218 = vmul.f32 %v1223, %v331
        %v2219 = vmul.f32 %v1227, %v332
        %v2220 = vmul.f32 %v1231, %v333
        %v2221 = vmul.f32 %v1235, %v334
        %v2222 = vmul.f32 %v1239, %v335
        %v2223 = vmul.f32 %v1243, %v336
        %v2224 = vmul.f32 %v1247, %v337
        %v2225 = vmul.f32 %v1251, %v338
        %v2226 = vmul.f32 %v1255, %v339
        %v2227 = vmul.f32 %v1259, %v340
        %v2228 = vmul.f32 %v1263, %v341
        %v2229 = vmul.f32 %v1267, %v342
        %v2230 = vmul.f32 %v1271, %v343
        %v2231 = vmul.f32 %v1275, %v344
        %v2232 = vmul.f32 %v1279, %v345
        %v2233 = vmul.f32 %v1283, %v346
        %v2234 = vmul.f32 %v1287, %v347
        %v2235 = vmul.f32 %v1291, %v348
        %v2236 = vmul.f32 %v1295, %v349
        %v2237 = vmul.f32 %v1299, %v350
        %v2238 = vmul.f32 %v1303, %v351
        %v2239 = vmul.f32 %v1307, %v352
        %v2240 = vmul.f32 %v1311, %v353
        %v2241 = vmul.f32 %v1315, %v354
        %v2242 = vmul.f32 %v1319, %v355
        %v2243 = vmul.f32 %v1323, %v356
        %v2244 = vmul.f32 %v1327, %v357
        %v2245 = vmul.f32 %v1331, %v358
        %v2246 = vmul.f32 %v1335, %v359
        %v2247 = vmul.f32 %v1339, %v360
        %v2248 = vmul.f32 %v1343, %v361
        %v2249 = vmul.f32 %v1347, %v362
        %v2250 = vmul.f32 %v1351, %v363
        %v2251 = vmul.f32 %v1355, %v364
        %v2252 = vmul.f32 %v1359, %v365
        %v2253 = vmul.f32 %v1363, %v366
        %v2254 = vmul.f32 %v1367, %v367
        %v2255 = vmul.f32 %v1371, %v368
        %v2256 = vmul.f32 %v1375, %v369
        %v2257 = vmul.f32 %v1379, %v370
        %v2258 = vmul.f32 %v1383, %v371
        %v2259 = vmul.f32 %v1387, %v372
        %v2260 = vmul.f32 %v1391, %v373
        %v2261 = vmul.f32 %v1395, %v374
        %v2262 = vmul.f32 %v1399, %v375
        %v2263 = vmul.f32 %v1403, %v376
        %v2264 = vmul.f32 %v1407, %v377
        %v2265 = vmul.f32 %v1411, %v378
        %v2266 = vmul.f32 %v1415, %v379
        %v2267 = vmul.f32 %v1419, %v380
        %v2268 = vmul.f32 %v1423, %v381
        %v2269 = vmul.f32 %v1427, %v382
        %v2270 = vmul.f32 %v1431, %v383
        %v2271 = vmul.f32 %v1435, %v384
        %v2272 = vmul.f32 %v1439, %v385
        %v2273 = vmul.f32 %v1443, %v386
        %v2274 = vmul.f32 %v1447, %v387
        %v2275 = vmul.f32 %v1451, %v388
        %v2276 = vmul.f32 %v1455, %v389
        %v2277 = vmul.f32 %v1459, %v390
        %v2278 = vmul.f32 %v1463, %v391
        %v2279 = vmul.f32 %v1467, %v392
        %v2280 = vmul.f32 %v1471, %v393
        %v2281 = vmul.f32 %v1475, %v394
        %v2282 = vmul.f32 %v1479, %v395
        %v2283 = vmul.f32 %v1483, %v396
        %v2284 = vmul.f32 %v1487, %v397
        %v2285 = vmul.f32 %v1491, %v398
        %v2286 = vmul.f32 %v1495, %v399
        %v2287 = vmul.f32 %v1499, %v400
        %v2288 = vmul.f32 %v1503, %v401
        %v2289 = vmul.f32 %v1507, %v402
        %v2290 = vmul.f32 %v1511, %v403
        %v2291 = vmul.f32 %v1515, %v404
        %v2292 = vmul.f32 %v1519, %v405
        %v2293 = vmul.f32 %v1523, %v406
        %v2294 = vmul.f32 %v1527, %v407
        %v2295 = vmul.f32 %v1531, %v408
        %v2296 = vmul.f32 %v1535, %v409
        %v2297 = vmul.f32 %v1539, %v410
        %v2298 = vmul.f32 %v1543, %v411
        %v2299 = vmul.f32 %v1547, %v412
        %v2300 = vmul.f32 %v1551, %v413
        %v2301 = vmul.f32 %v1555, %v414
        %v2302 = vmul.f32 %v1559, %v415
        %v2303 = vmul.f32 %v1563, %v416
        %v2304 = vmul.f32 %v1567, %v417
        %v2305 = vmul.f32 %v1571, %v418
        %v2306 = vmul.f32 %v1575, %v419
        %v2307 = vmul.f32 %v1579, %v420
        %v2308 = vmul.f32 %v1583, %v421
        %v2309 = vmul.f32 %v1587, %v422
        %v2310 = vmul.f32 %v1591, %v423
        %v2311 = vmul.f32 %v1595, %v424
        %v2312 = vmul.f32 %v1599, %v425
        %v2313 = vmul.f32 %v1603, %v426
        %v2314 = vmul.f32 %v1607, %v427
        %v2315 = vmul.f32 %v1611, %v428
        %v2316 = vmul.f32 %v1615, %v429
        %v2317 = vmul.f32 %v1619, %v430
        %v2318 = vmul.f32 %v1623, %v431
        %v2319 = vmul.f32 %v1627, %v432
        %v2320 = vmul.f32 %v1631, %v433
        %v2321 = vmul.f32 %v1635, %v434
        %v2322 = vmul.f32 %v1639, %v435
        %v2323 = vmul.f32 %v1643, %v436
        %v2324 = vmul.f32 %v1647, %v437
        %v2325 = vmul.f32 %v1651, %v438
        %v2326 = vmul.f32 %v1655, %v439
        %v2327 = vmul.f32 %v1659, %v440
        %v2328 = vmul.f32 %v1663, %v441
        %v2329 = vmul.f32 %v1667, %v442
        %v2330 = vmul.f32 %v1671, %v443
        %v2331 = vmul.f32 %v1675, %v444
        %v2332 = vmul.f32 %v1679, %v445
        %v2333 = vmul.f32 %v1683, %v446
        %v2334 = vmul.f32 %v1687, %v447
        %v2335 = vmul.f32 %v1691, %v448
        %v2336 = vmul.f32 %v1695, %v449
        %v2337 = vmul.f32 %v1699, %v450
        %v2338 = vmul.f32 %v1703, %v451
        %v2339 = vmul.f32 %v1707, %v452
        %v2340 = vmul.f32 %v1711, %v453
        %v2341 = vmul.f32 %v1715, %v454
        %v2342 = vmul.f32 %v1719, %v455
        %v2343 = vmul.f32 %v1723, %v456
        %v2344 = vmul.f32 %v1727, %v457
        %v2345 = vmul.f32 %v1731, %v458
        %v2346 = vmul.f32 %v1735, %v459
        %v2347 = vmul.f32 %v1739, %v460
        %v2348 = vmul.f32 %v1743, %v461
        %v2349 = vmul.f32 %v1747, %v462
        %v2350 = vmul.f32 %v1751, %v463
        %v2351 = vmul.f32 %v1755, %v464
        %v2352 = vmul.f32 %v1759, %v465
        %v2353 = vmul.f32 %v1763, %v466
        %v2354 = vmul.f32 %v1767, %v467
        %v2355 = vmul.f32 %v1771, %v468
        %v2356 = vmul.f32 %v1775, %v469
        %v2357 = vmul.f32 %v1779, %v470
        %v2358 = vmul.f32 %v1783, %v471
        %v2359 = vmul.f32 %v1787, %v472
        %v2360 = vmul.f32 %v1791, %v473
        %v2361 = vmul.f32 %v1795, %v474
        %v2362 = vmul.f32 %v1799, %v475
        %v2363 = vmul.f32 %v1803, %v476
        %v2364 = vmul.f32 %v1807, %v477
        %v2365 = vmul.f32 %v1811, %v478
        %v2366 = vmul.f32 %v1815, %v479
        %v2367 = vmul.f32 %v1819, %v480
        %v2368 = vmul.f32 %v1823, %v481
        %v2369 = vmul.f32 %v1827, %v482
        %v2370 = vmul.f32 %v1831, %v483
        %v2371 = vmul.f32 %v1835, %v484
        %v2372 = vmul.f32 %v1839, %v485
        %v2373 = vmul.f32 %v1843, %v486
        %v2374 = vmul.f32 %v1847, %v487
        %v2375 = vmul.f32 %v1851, %v488
        %v2376 = vmul.f32 %v1855, %v489
        %v2377 = vmul.f32 %v1859, %v490
        %v2378 = vmul.f32 %v1863, %v491
        %v2379 = vmul.f32 %v1867, %v492
        %v2380 = vmul.f32 %v847, %v493
        %v2381 = vmul.f32 %v851, %v494
        %v2382 = vmul.f32 %v855, %v495
        %v2383 = vmul.f32 %v859, %v496
        %v2384 = vmul.f32 %v863, %v497
        %v2385 = vmul.f32 %v867, %v498
        %v2386 = vmul.f32 %v871, %v499
        %v2387 = vmul.f32 %v875, %v500
        %v2388 = vmul.f32 %v879, %v501
        %v2389 = vmul.f32 %v883, %v502
        %v2390 = vmul.f32 %v887, %v503
        %v2391 = vmul.f32 %v891, %v504
        %v2392 = vmul.f32 %v895, %v505
        %v2393 = vmul.f32 %v899, %v506
        %v2394 = vmul.f32 %v903, %v507
        %v2395 = vmul.f32 %v907, %v508
        %v2396 = vmul.f32 %v911, %v509
        %v2397 = vmul.f32 %v915, %v510
        %v2398 = vmul.f32 %v919, %v511
        %v2399 = vmul.f32 %v923, %v512
        %v2400 = vmul.f32 %v927, %v513
        %v2401 = vmul.f32 %v931, %v514
        %v2402 = vmul.f32 %v935, %v515
        %v2403 = vmul.f32 %v939, %v516
        %v2404 = vmul.f32 %v943, %v517
        %v2405 = vmul.f32 %v947, %v518
        %v2406 = vmul.f32 %v951, %v519
        %v2407 = vmul.f32 %v955, %v520
        %v2408 = vmul.f32 %v959, %v521
        %v2409 = vmul.f32 %v963, %v522
        %v2410 = vmul.f32 %v967, %v523
        %v2411 = vmul.f32 %v971, %v524
        %v2412 = vmul.f32 %v975, %v525
        %v2413 = vmul.f32 %v979, %v526
        %v2414 = vmul.f32 %v983, %v527
        %v2415 = vmul.f32 %v987, %v528
        %v2416 = vmul.f32 %v991, %v529
        %v2417 = vmul.f32 %v995, %v530
        %v2418 = vmul.f32 %v999, %v531
        %v2419 = vmul.f32 %v1003, %v532
        %v2420 = vmul.f32 %v1007, %v533
        %v2421 = vmul.f32 %v1011, %v534
        %v2422 = vmul.f32 %v1015, %v535
        %v2423 = vmul.f32 %v1019, %v536
        %v2424 = vmul.f32 %v1023, %v537
        %v2425 = vmul.f32 %v1027, %v538
        %v2426 = vmul.f32 %v1031, %v539
        %v2427 = vmul.f32 %v1035, %v540
        %v2428 = vmul.f32 %v1039, %v541
        %v2429 = vmul.f32 %v1043, %v542
        %v2430 = vmul.f32 %v1047, %v543
        %v2431 = vmul.f32 %v1051, %v544
        %v2432 = vmul.f32 %v1055, %v545
        %v2433 = vmul.f32 %v1059, %v546
        %v2434 = vmul.f32 %v1063, %v547
        %v2435 = vmul.f32 %v1067, %v548
        %v2436 = vmul.f32 %v1071, %v549
        %v2437 = vmul.f32 %v1075, %v550
        %v2438 = vmul.f32 %v1079, %v551
        %v2439 = vmul.f32 %v1083, %v552
        %v2440 = vmul.f32 %v1087, %v553
        %v2441 = vmul.f32 %v1091, %v554
        %v2442 = vmul.f32 %v1095, %v555
        %v2443 = vmul.f32 %v1099, %v556
        %v2444 = vmul.f32 %v1103, %v557
        %v2445 = vmul.f32 %v1107, %v558
        %v2446 = vmul.f32 %v1111, %v559
        %v2447 = vmul.f32 %v1115, %v560
        %v2448 = vmul.f32 %v1119, %v561
        %v2449 = vmul.f32 %v1123, %v562
        %v2450 = vmul.f32 %v1127, %v563
        %v2451 = vmul.f32 %v1131, %v564
        %v2452 = vmul.f32 %v1135, %v565
        %v2453 = vmul.f32 %v1139, %v566
        %v2454 = vmul.f32 %v1143, %v567
        %v2455 = vmul.f32 %v1147, %v568
        %v2456 = vmul.f32 %v1151, %v569
        %v2457 = vmul.f32 %v1155, %v570
        %v2458 = vmul.f32 %v1159, %v571
        %v2459 = vmul.f32 %v1163, %v572
        %v2460 = vmul.f32 %v1167, %v573
        %v2461 = vmul.f32 %v1171, %v574
        %v2462 = vmul.f32 %v1175, %v575
        %v2463 = vmul.f32 %v1179, %v576
        %v2464 = vmul.f32 %v1183, %v577
        %v2465 = vmul.f32 %v1187, %v578
        %v2466 = vmul.f32 %v1191, %v579
        %v2467 = vmul.f32 %v1195, %v580
        %v2468 = vmul.f32 %v1199, %v581
        %v2469 = vmul.f32 %v1203, %v582
        %v2470 = vmul.f32 %v1207, %v583
        %v2471 = vmul.f32 %v1211, %v584
        %v2472 = vmul.f32 %v1215, %v585
        %v2473 = vmul.f32 %v1219, %v586
        %v2474 = vmul.f32 %v1223, %v587
        %v2475 = vmul.f32 %v1227, %v588
        %v2476 = vmul.f32 %v1231, %v589
        %v2477 = vmul.f32 %v1235, %v590
        %v2478 = vmul.f32 %v1239, %v591
        %v2479 = vmul.f32 %v1243, %v592
        %v2480 = vmul.f32 %v1247, %v593
        %v2481 = vmul.f32 %v1251, %v594
        %v2482 = vmul.f32 %v1255, %v595
        %v2483 = vmul.f32 %v1259, %v596
        %v2484 = vmul.f32 %v1263, %v597
        %v2485 = vmul.f32 %v1267, %v598
        %v2486 = vmul.f32 %v1271, %v599
        %v2487 = vmul.f32 %v1275, %v600
        %v2488 = vmul.f32 %v1279, %v601
        %v2489 = vmul.f32 %v1283, %v602
        %v2490 = vmul.f32 %v1287, %v603
        %v2491 = vmul.f32 %v1291, %v604
        %v2492 = vmul.f32 %v1295, %v605
        %v2493 = vmul.f32 %v1299, %v606
        %v2494 = vmul.f32 %v1303, %v607
        %v2495 = vmul.f32 %v1307, %v608
        %v2496 = vmul.f32 %v1311, %v609
        %v2497 = vmul.f32 %v1315, %v610
        %v2498 = vmul.f32 %v1319, %v611
        %v2499 = vmul.f32 %v1323, %v612
        %v2500 = vmul.f32 %v1327, %v613
        %v2501 = vmul.f32 %v1331, %v614
        %v2502 = vmul.f32 %v1335, %v615
        %v2503 = vmul.f32 %v1339, %v616
        %v2504 = vmul.f32 %v1343, %v617
        %v2505 = vmul.f32 %v1347, %v618
        %v2506 = vmul.f32 %v1351, %v619
        %v2507 = vmul.f32 %v1355, %v620
        %v2508 = vmul.f32 %v1359, %v621
        %v2509 = vmul.f32 %v1363, %v622
        %v2510 = vmul.f32 %v1367, %v623
        %v2511 = vmul.f32 %v1371, %v624
        %v2512 = vmul.f32 %v1375, %v625
        %v2513 = vmul.f32 %v1379, %v626
        %v2514 = vmul.f32 %v1383, %v627
        %v2515 = vmul.f32 %v1387, %v628
        %v2516 = vmul.f32 %v1391, %v629
        %v2517 = vmul.f32 %v1395, %v630
        %v2518 = vmul.f32 %v1399, %v631
        %v2519 = vmul.f32 %v1403, %v632
        %v2520 = vmul.f32 %v1407, %v633
        %v2521 = vmul.f32 %v1411, %v634
        %v2522 = vmul.f32 %v1415, %v635
        %v2523 = vmul.f32 %v1419, %v636
        %v2524 = vmul.f32 %v1423, %v637
        %v2525 = vmul.f32 %v1427, %v638
        %v2526 = vmul.f32 %v1431, %v639
        %v2527 = vmul.f32 %v1435, %v640
        %v2528 = vmul.f32 %v1439, %v641
        %v2529 = vmul.f32 %v1443, %v642
        %v2530 = vmul.f32 %v1447, %v643
        %v2531 = vmul.f32 %v1451, %v644
        %v2532 = vmul.f32 %v1455, %v645
        %v2533 = vmul.f32 %v1459, %v646
        %v2534 = vmul.f32 %v1463, %v647
        %v2535 = vmul.f32 %v1467, %v648
        %v2536 = vmul.f32 %v1471, %v649
        %v2537 = vmul.f32 %v1475, %v650
        %v2538 = vmul.f32 %v1479, %v651
        %v2539 = vmul.f32 %v1483, %v652
        %v2540 = vmul.f32 %v1487, %v653
        %v2541 = vmul.f32 %v1491, %v654
        %v2542 = vmul.f32 %v1495, %v655
        %v2543 = vmul.f32 %v1499, %v656
        %v2544 = vmul.f32 %v1503, %v657
        %v2545 = vmul.f32 %v1507, %v658
        %v2546 = vmul.f32 %v1511, %v659
        %v2547 = vmul.f32 %v1515, %v660
        %v2548 = vmul.f32 %v1519, %v661
        %v2549 = vmul.f32 %v1523, %v662
        %v2550 = vmul.f32 %v1527, %v663
        %v2551 = vmul.f32 %v1531, %v664
        %v2552 = vmul.f32 %v1535, %v665
        %v2553 = vmul.f32 %v1539, %v666
        %v2554 = vmul.f32 %v1543, %v667
        %v2555 = vmul.f32 %v1547, %v668
        %v2556 = vmul.f32 %v1551, %v669
        %v2557 = vmul.f32 %v1555, %v670
        %v2558 = vmul.f32 %v1559, %v671
        %v2559 = vmul.f32 %v1563, %v672
        %v2560 = vmul.f32 %v1567, %v673
        %v2561 = vmul.f32 %v1571, %v674
        %v2562 = vmul.f32 %v1575, %v675
        %v2563 = vmul.f32 %v1579, %v676
        %v2564 = vmul.f32 %v1583, %v677
        %v2565 = vmul.f32 %v1587, %v678
        %v2566 = vmul.f32 %v1591, %v679
        %v2567 = vmul.f32 %v1595, %v680
        %v2568 = vmul.f32 %v1599, %v681
        %v2569 = vmul.f32 %v1603, %v682
        %v2570 = vmul.f32 %v1607, %v683
        %v2571 = vmul.f32 %v1611, %v684
        %v2572 = vmul.f32 %v1615, %v685
        %v2573 = vmul.f32 %v1619, %v686
        %v2574 = vmul.f32 %v1623, %v687
        %v2575 = vmul.f32 %v1627, %v688
        %v2576 = vmul.f32 %v1631, %v689
        %v2577 = vmul.f32 %v1635, %v690
        %v2578 = vmul.f32 %v1639, %v691
        %v2579 = vmul.f32 %v1643, %v692
        %v2580 = vmul.f32 %v1647, %v693
        %v2581 = vmul.f32 %v1651, %v694
        %v2582 = vmul.f32 %v1655, %v695
        %v2583 = vmul.f32 %v1659, %v696
        %v2584 = vmul.f32 %v1663, %v697
        %v2585 = vmul.f32 %v1667, %v698
        %v2586 = vmul.f32 %v1671, %v699
        %v2587 = vmul.f32 %v1675, %v700
        %v2588 = vmul.f32 %v1679, %v701
        %v2589 = vmul.f32 %v1683, %v702
        %v2590 = vmul.f32 %v1687, %v703
        %v2591 = vmul.f32 %v1691, %v704
        %v2592 = vmul.f32 %v1695, %v705
        %v2593 = vmul.f32 %v1699, %v706
        %v2594 = vmul.f32 %v1703, %v707
        %v2595 = vmul.f32 %v1707, %v708
        %v2596 = vmul.f32 %v1711, %v709
        %v2597 = vmul.f32 %v1715, %v710
        %v2598 = vmul.f32 %v1719, %v711
        %v2599 = vmul.f32 %v1723, %v712
        %v2600 = vmul.f32 %v1727, %v713
        %v2601 = vmul.f32 %v1731, %v714
        %v2602 = vmul.f32 %v1735, %v715
        %v2603 = vmul.f32 %v1739, %v716
        %v2604 = vmul.f32 %v1743, %v717
        %v2605 = vmul.f32 %v1747, %v718
        %v2606 = vmul.f32 %v1751, %v719
        %v2607 = vmul.f32 %v1755, %v720
        %v2608 = vmul.f32 %v1759, %v721
        %v2609 = vmul.f32 %v1763, %v722
        %v2610 = vmul.f32 %v1767, %v723
        %v2611 = vmul.f32 %v1771, %v724
        %v2612 = vmul.f32 %v1775, %v725
        %v2613 = vmul.f32 %v1779, %v726
        %v2614 = vmul.f32 %v1783, %v727
        %v2615 = vmul.f32 %v1787, %v728
        %v2616 = vmul.f32 %v1791, %v729
        %v2617 = vmul.f32 %v1795, %v730
        %v2618 = vmul.f32 %v1799, %v731
        %v2619 = vmul.f32 %v1803, %v732
        %v2620 = vmul.f32 %v1807, %v733
        %v2621 = vmul.f32 %v1811, %v734
        %v2622 = vmul.f32 %v1815, %v735
        %v2623 = vmul.f32 %v1819, %v736
        %v2624 = vmul.f32 %v1823, %v737
        %v2625 = vmul.f32 %v1827, %v738
        %v2626 = vmul.f32 %v1831, %v739
        %v2627 = vmul.f32 %v1835, %v740
        %v2628 = vmul.f32 %v1839, %v741
        %v2629 = vmul.f32 %v1843, %v742
        %v2630 = vmul.f32 %v1847, %v743
        %v2631 = vmul.f32 %v1851, %v744
        %v2632 = vmul.f32 %v1855, %v745
        %v2633 = vmul.f32 %v1859, %v746
        %v2634 = vmul.f32 %v1863, %v747
        %v2635 = vmul.f32 %v1867, %v748
        %v2636 = vld [vmem:[#allocation2] sm:$0xff]
        %v2637 = vld [vmem:[#allocation2 + $0x8] sm:$0x3]
        %v2638 = vadd.f32 %v2124, %v2125
        %v2639 = vadd.f32 %v2638, %v2126
        %v2640 = vadd.f32 %v2639, %v2127
        %v2641 = vadd.f32 %v2640, %v2128
        %v2642 = vadd.f32 %v2641, %v2129
        %v2643 = vadd.f32 %v2642, %v2130
        %v2644 = vadd.f32 %v2643, %v2131
        %v2645 = vadd.f32 %v2644, %v2132
        %v2646 = vadd.f32 %v2645, %v2133
        %v2647 = vadd.f32 %v2646, %v2134
        %v2648 = vadd.f32 %v2647, %v2135
        %v2649 = vadd.f32 %v2648, %v2136
        %v2650 = vadd.f32 %v2649, %v2137
        %v2651 = vadd.f32 %v2650, %v2138
        %v2652 = vadd.f32 %v2651, %v2139
        %v2653 = vadd.f32 %v2652, %v2140
        %v2654 = vadd.f32 %v2653, %v2141
        %v2655 = vadd.f32 %v2654, %v2142
        %v2656 = vadd.f32 %v2655, %v2143
        %v2657 = vadd.f32 %v2656, %v2144
        %v2658 = vadd.f32 %v2657, %v2145
        %v2659 = vadd.f32 %v2658, %v2146
        %v2660 = vadd.f32 %v2659, %v2147
        %v2661 = vadd.f32 %v2660, %v2148
        %v2662 = vadd.f32 %v2661, %v2149
        %v2663 = vadd.f32 %v2662, %v2150
        %v2664 = vadd.f32 %v2663, %v2151
        %v2665 = vadd.f32 %v2664, %v2152
        %v2666 = vadd.f32 %v2665, %v2153
        %v2667 = vadd.f32 %v2666, %v2154
        %v2668 = vadd.f32 %v2667, %v2155
        %v2669 = vadd.f32 %v2668, %v2156
        %v2670 = vadd.f32 %v2669, %v2157
        %v2671 = vadd.f32 %v2670, %v2158
        %v2672 = vadd.f32 %v2671, %v2159
        %v2673 = vadd.f32 %v2672, %v2160
        %v2674 = vadd.f32 %v2673, %v2161
        %v2675 = vadd.f32 %v2674, %v2162
        %v2676 = vadd.f32 %v2675, %v2163
        %v2677 = vadd.f32 %v2676, %v2164
        %v2678 = vadd.f32 %v2677, %v2165
        %v2679 = vadd.f32 %v2678, %v2166
        %v2680 = vadd.f32 %v2679, %v2167
        %v2681 = vadd.f32 %v2680, %v2168
        %v2682 = vadd.f32 %v2681, %v2169
        %v2683 = vadd.f32 %v2682, %v2170
        %v2684 = vadd.f32 %v2683, %v2171
        %v2685 = vadd.f32 %v2684, %v2172
        %v2686 = vadd.f32 %v2685, %v2173
        %v2687 = vadd.f32 %v2686, %v2174
        %v2688 = vadd.f32 %v2687, %v2175
        %v2689 = vadd.f32 %v2688, %v2176
        %v2690 = vadd.f32 %v2689, %v2177
        %v2691 = vadd.f32 %v2690, %v2178
        %v2692 = vadd.f32 %v2691, %v2179
        %v2693 = vadd.f32 %v2692, %v2180
        %v2694 = vadd.f32 %v2693, %v2181
        %v2695 = vadd.f32 %v2694, %v2182
        %v2696 = vadd.f32 %v2695, %v2183
        %v2697 = vadd.f32 %v2696, %v2184
        %v2698 = vadd.f32 %v2697, %v2185
        %v2699 = vadd.f32 %v2698, %v2186
        %v2700 = vadd.f32 %v2699, %v2187
        %v2701 = vadd.f32 %v2700, %v2188
        %v2702 = vadd.f32 %v2701, %v2189
        %v2703 = vadd.f32 %v2702, %v2190
        %v2704 = vadd.f32 %v2703, %v2191
        %v2705 = vadd.f32 %v2704, %v2192
        %v2706 = vadd.f32 %v2705, %v2193
        %v2707 = vadd.f32 %v2706, %v2194
        %v2708 = vadd.f32 %v2707, %v2195
        %v2709 = vadd.f32 %v2708, %v2196
        %v2710 = vadd.f32 %v2709, %v2197
        %v2711 = vadd.f32 %v2710, %v2198
        %v2712 = vadd.f32 %v2711, %v2199
        %v2713 = vadd.f32 %v2712, %v2200
        %v2714 = vadd.f32 %v2713, %v2201
        %v2715 = vadd.f32 %v2714, %v2202
        %v2716 = vadd.f32 %v2715, %v2203
        %v2717 = vadd.f32 %v2716, %v2204
        %v2718 = vadd.f32 %v2717, %v2205
        %v2719 = vadd.f32 %v2718, %v2206
        %v2720 = vadd.f32 %v2719, %v2207
        %v2721 = vadd.f32 %v2720, %v2208
        %v2722 = vadd.f32 %v2721, %v2209
        %v2723 = vadd.f32 %v2722, %v2210
        %v2724 = vadd.f32 %v2723, %v2211
        %v2725 = vadd.f32 %v2724, %v2212
        %v2726 = vadd.f32 %v2725, %v2213
        %v2727 = vadd.f32 %v2726, %v2214
        %v2728 = vadd.f32 %v2727, %v2215
        %v2729 = vadd.f32 %v2728, %v2216
        %v2730 = vadd.f32 %v2729, %v2217
        %v2731 = vadd.f32 %v2730, %v2218
        %v2732 = vadd.f32 %v2731, %v2219
        %v2733 = vadd.f32 %v2732, %v2220
        %v2734 = vadd.f32 %v2733, %v2221
        %v2735 = vadd.f32 %v2734, %v2222
        %v2736 = vadd.f32 %v2735, %v2223
        %v2737 = vadd.f32 %v2736, %v2224
        %v2738 = vadd.f32 %v2737, %v2225
        %v2739 = vadd.f32 %v2738, %v2226
        %v2740 = vadd.f32 %v2739, %v2227
        %v2741 = vadd.f32 %v2740, %v2228
        %v2742 = vadd.f32 %v2741, %v2229
        %v2743 = vadd.f32 %v2742, %v2230
        %v2744 = vadd.f32 %v2743, %v2231
        %v2745 = vadd.f32 %v2744, %v2232
        %v2746 = vadd.f32 %v2745, %v2233
        %v2747 = vadd.f32 %v2746, %v2234
        %v2748 = vadd.f32 %v2747, %v2235
        %v2749 = vadd.f32 %v2748, %v2236
        %v2750 = vadd.f32 %v2749, %v2237
        %v2751 = vadd.f32 %v2750, %v2238
        %v2752 = vadd.f32 %v2751, %v2239
        %v2753 = vadd.f32 %v2752, %v2240
        %v2754 = vadd.f32 %v2753, %v2241
        %v2755 = vadd.f32 %v2754, %v2242
        %v2756 = vadd.f32 %v2755, %v2243
        %v2757 = vadd.f32 %v2756, %v2244
        %v2758 = vadd.f32 %v2757, %v2245
        %v2759 = vadd.f32 %v2758, %v2246
        %v2760 = vadd.f32 %v2759, %v2247
        %v2761 = vadd.f32 %v2760, %v2248
        %v2762 = vadd.f32 %v2761, %v2249
        %v2763 = vadd.f32 %v2762, %v2250
        %v2764 = vadd.f32 %v2763, %v2251
        %v2765 = vadd.f32 %v2764, %v2252
        %v2766 = vadd.f32 %v2765, %v2253
        %v2767 = vadd.f32 %v2766, %v2254
        %v2768 = vadd.f32 %v2767, %v2255
        %v2769 = vadd.f32 %v2768, %v2256
        %v2770 = vadd.f32 %v2769, %v2257
        %v2771 = vadd.f32 %v2770, %v2258
        %v2772 = vadd.f32 %v2771, %v2259
        %v2773 = vadd.f32 %v2772, %v2260
        %v2774 = vadd.f32 %v2773, %v2261
        %v2775 = vadd.f32 %v2774, %v2262
        %v2776 = vadd.f32 %v2775, %v2263
        %v2777 = vadd.f32 %v2776, %v2264
        %v2778 = vadd.f32 %v2777, %v2265
        %v2779 = vadd.f32 %v2778, %v2266
        %v2780 = vadd.f32 %v2779, %v2267
        %v2781 = vadd.f32 %v2780, %v2268
        %v2782 = vadd.f32 %v2781, %v2269
        %v2783 = vadd.f32 %v2782, %v2270
        %v2784 = vadd.f32 %v2783, %v2271
        %v2785 = vadd.f32 %v2784, %v2272
        %v2786 = vadd.f32 %v2785, %v2273
        %v2787 = vadd.f32 %v2786, %v2274
        %v2788 = vadd.f32 %v2787, %v2275
        %v2789 = vadd.f32 %v2788, %v2276
        %v2790 = vadd.f32 %v2789, %v2277
        %v2791 = vadd.f32 %v2790, %v2278
        %v2792 = vadd.f32 %v2791, %v2279
        %v2793 = vadd.f32 %v2792, %v2280
        %v2794 = vadd.f32 %v2793, %v2281
        %v2795 = vadd.f32 %v2794, %v2282
        %v2796 = vadd.f32 %v2795, %v2283
        %v2797 = vadd.f32 %v2796, %v2284
        %v2798 = vadd.f32 %v2797, %v2285
        %v2799 = vadd.f32 %v2798, %v2286
        %v2800 = vadd.f32 %v2799, %v2287
        %v2801 = vadd.f32 %v2800, %v2288
        %v2802 = vadd.f32 %v2801, %v2289
        %v2803 = vadd.f32 %v2802, %v2290
        %v2804 = vadd.f32 %v2803, %v2291
        %v2805 = vadd.f32 %v2804, %v2292
        %v2806 = vadd.f32 %v2805, %v2293
        %v2807 = vadd.f32 %v2806, %v2294
        %v2808 = vadd.f32 %v2807, %v2295
        %v2809 = vadd.f32 %v2808, %v2296
        %v2810 = vadd.f32 %v2809, %v2297
        %v2811 = vadd.f32 %v2810, %v2298
        %v2812 = vadd.f32 %v2811, %v2299
        %v2813 = vadd.f32 %v2812, %v2300
        %v2814 = vadd.f32 %v2813, %v2301
        %v2815 = vadd.f32 %v2814, %v2302
        %v2816 = vadd.f32 %v2815, %v2303
        %v2817 = vadd.f32 %v2816, %v2304
        %v2818 = vadd.f32 %v2817, %v2305
        %v2819 = vadd.f32 %v2818, %v2306
        %v2820 = vadd.f32 %v2819, %v2307
        %v2821 = vadd.f32 %v2820, %v2308
        %v2822 = vadd.f32 %v2821, %v2309
        %v2823 = vadd.f32 %v2822, %v2310
        %v2824 = vadd.f32 %v2823, %v2311
        %v2825 = vadd.f32 %v2824, %v2312
        %v2826 = vadd.f32 %v2825, %v2313
        %v2827 = vadd.f32 %v2826, %v2314
        %v2828 = vadd.f32 %v2827, %v2315
        %v2829 = vadd.f32 %v2828, %v2316
        %v2830 = vadd.f32 %v2829, %v2317
        %v2831 = vadd.f32 %v2830, %v2318
        %v2832 = vadd.f32 %v2831, %v2319
        %v2833 = vadd.f32 %v2832, %v2320
        %v2834 = vadd.f32 %v2833, %v2321
        %v2835 = vadd.f32 %v2834, %v2322
        %v2836 = vadd.f32 %v2835, %v2323
        %v2837 = vadd.f32 %v2836, %v2324
        %v2838 = vadd.f32 %v2837, %v2325
        %v2839 = vadd.f32 %v2838, %v2326
        %v2840 = vadd.f32 %v2839, %v2327
        %v2841 = vadd.f32 %v2840, %v2328
        %v2842 = vadd.f32 %v2841, %v2329
        %v2843 = vadd.f32 %v2842, %v2330
        %v2844 = vadd.f32 %v2843, %v2331
        %v2845 = vadd.f32 %v2844, %v2332
        %v2846 = vadd.f32 %v2845, %v2333
        %v2847 = vadd.f32 %v2846, %v2334
        %v2848 = vadd.f32 %v2847, %v2335
        %v2849 = vadd.f32 %v2848, %v2336
        %v2850 = vadd.f32 %v2849, %v2337
        %v2851 = vadd.f32 %v2850, %v2338
        %v2852 = vadd.f32 %v2851, %v2339
        %v2853 = vadd.f32 %v2852, %v2340
        %v2854 = vadd.f32 %v2853, %v2341
        %v2855 = vadd.f32 %v2854, %v2342
        %v2856 = vadd.f32 %v2855, %v2343
        %v2857 = vadd.f32 %v2856, %v2344
        %v2858 = vadd.f32 %v2857, %v2345
        %v2859 = vadd.f32 %v2858, %v2346
        %v2860 = vadd.f32 %v2859, %v2347
        %v2861 = vadd.f32 %v2860, %v2348
        %v2862 = vadd.f32 %v2861, %v2349
        %v2863 = vadd.f32 %v2862, %v2350
        %v2864 = vadd.f32 %v2863, %v2351
        %v2865 = vadd.f32 %v2864, %v2352
        %v2866 = vadd.f32 %v2865, %v2353
        %v2867 = vadd.f32 %v2866, %v2354
        %v2868 = vadd.f32 %v2867, %v2355
        %v2869 = vadd.f32 %v2868, %v2356
        %v2870 = vadd.f32 %v2869, %v2357
        %v2871 = vadd.f32 %v2870, %v2358
        %v2872 = vadd.f32 %v2871, %v2359
        %v2873 = vadd.f32 %v2872, %v2360
        %v2874 = vadd.f32 %v2873, %v2361
        %v2875 = vadd.f32 %v2874, %v2362
        %v2876 = vadd.f32 %v2875, %v2363
        %v2877 = vadd.f32 %v2876, %v2364
        %v2878 = vadd.f32 %v2877, %v2365
        %v2879 = vadd.f32 %v2878, %v2366
        %v2880 = vadd.f32 %v2879, %v2367
        %v2881 = vadd.f32 %v2880, %v2368
        %v2882 = vadd.f32 %v2881, %v2369
        %v2883 = vadd.f32 %v2882, %v2370
        %v2884 = vadd.f32 %v2883, %v2371
        %v2885 = vadd.f32 %v2884, %v2372
        %v2886 = vadd.f32 %v2885, %v2373
        %v2887 = vadd.f32 %v2886, %v2374
        %v2888 = vadd.f32 %v2887, %v2375
        %v2889 = vadd.f32 %v2888, %v2376
        %v2890 = vadd.f32 %v2889, %v2377
        %v2891 = vadd.f32 %v2890, %v2378
        %v2892 = vadd.f32 %v2891, %v2379
        %2893 = vadd.xlane.f32.xlu0 %v2892
        %v2894 = vpop.xlane.xlu0 %2893
        %vm2895 = vcmask 1041408
        %v2896 = vsel %vm2895, %v2380, 0.0
        %v2897 = vsel %vm2895, %v2381, 0.0
        %v2898 = vadd.f32 %v2896, %v2897
        %v2899 = vsel %vm2895, %v2382, 0.0
        %v2900 = vadd.f32 %v2898, %v2899
        %v2901 = vsel %vm2895, %v2383, 0.0
        %v2902 = vadd.f32 %v2900, %v2901
        %v2903 = vsel %vm2895, %v2384, 0.0
        %v2904 = vadd.f32 %v2902, %v2903
        %v2905 = vsel %vm2895, %v2385, 0.0
        %v2906 = vadd.f32 %v2904, %v2905
        %v2907 = vsel %vm2895, %v2386, 0.0
        %v2908 = vadd.f32 %v2906, %v2907
        %v2909 = vsel %vm2895, %v2387, 0.0
        %v2910 = vadd.f32 %v2908, %v2909
        %v2911 = vsel %vm2895, %v2388, 0.0
        %v2912 = vadd.f32 %v2910, %v2911
        %v2913 = vsel %vm2895, %v2389, 0.0
        %v2914 = vadd.f32 %v2912, %v2913
        %v2915 = vsel %vm2895, %v2390, 0.0
        %v2916 = vadd.f32 %v2914, %v2915
        %v2917 = vsel %vm2895, %v2391, 0.0
        %v2918 = vadd.f32 %v2916, %v2917
        %v2919 = vsel %vm2895, %v2392, 0.0
        %v2920 = vadd.f32 %v2918, %v2919
        %v2921 = vsel %vm2895, %v2393, 0.0
        %v2922 = vadd.f32 %v2920, %v2921
        %v2923 = vsel %vm2895, %v2394, 0.0
        %v2924 = vadd.f32 %v2922, %v2923
        %v2925 = vsel %vm2895, %v2395, 0.0
        %v2926 = vadd.f32 %v2924, %v2925
        %v2927 = vsel %vm2895, %v2396, 0.0
        %v2928 = vadd.f32 %v2926, %v2927
        %v2929 = vsel %vm2895, %v2397, 0.0
        %v2930 = vadd.f32 %v2928, %v2929
        %v2931 = vsel %vm2895, %v2398, 0.0
        %v2932 = vadd.f32 %v2930, %v2931
        %v2933 = vsel %vm2895, %v2399, 0.0
        %v2934 = vadd.f32 %v2932, %v2933
        %v2935 = vsel %vm2895, %v2400, 0.0
        %v2936 = vadd.f32 %v2934, %v2935
        %v2937 = vsel %vm2895, %v2401, 0.0
        %v2938 = vadd.f32 %v2936, %v2937
        %v2939 = vsel %vm2895, %v2402, 0.0
        %v2940 = vadd.f32 %v2938, %v2939
        %v2941 = vsel %vm2895, %v2403, 0.0
        %v2942 = vadd.f32 %v2940, %v2941
        %v2943 = vsel %vm2895, %v2404, 0.0
        %v2944 = vadd.f32 %v2942, %v2943
        %v2945 = vsel %vm2895, %v2405, 0.0
        %v2946 = vadd.f32 %v2944, %v2945
        %v2947 = vsel %vm2895, %v2406, 0.0
        %v2948 = vadd.f32 %v2946, %v2947
        %v2949 = vsel %vm2895, %v2407, 0.0
        %v2950 = vadd.f32 %v2948, %v2949
        %v2951 = vsel %vm2895, %v2408, 0.0
        %v2952 = vadd.f32 %v2950, %v2951
        %v2953 = vsel %vm2895, %v2409, 0.0
        %v2954 = vadd.f32 %v2952, %v2953
        %v2955 = vsel %vm2895, %v2410, 0.0
        %v2956 = vadd.f32 %v2954, %v2955
        %v2957 = vsel %vm2895, %v2411, 0.0
        %v2958 = vadd.f32 %v2956, %v2957
        %v2959 = vsel %vm2895, %v2412, 0.0
        %v2960 = vadd.f32 %v2958, %v2959
        %v2961 = vsel %vm2895, %v2413, 0.0
        %v2962 = vadd.f32 %v2960, %v2961
        %v2963 = vsel %vm2895, %v2414, 0.0
        %v2964 = vadd.f32 %v2962, %v2963
        %v2965 = vsel %vm2895, %v2415, 0.0
        %v2966 = vadd.f32 %v2964, %v2965
        %v2967 = vsel %vm2895, %v2416, 0.0
        %v2968 = vadd.f32 %v2966, %v2967
        %v2969 = vsel %vm2895, %v2417, 0.0
        %v2970 = vadd.f32 %v2968, %v2969
        %v2971 = vsel %vm2895, %v2418, 0.0
        %v2972 = vadd.f32 %v2970, %v2971
        %v2973 = vsel %vm2895, %v2419, 0.0
        %v2974 = vadd.f32 %v2972, %v2973
        %v2975 = vsel %vm2895, %v2420, 0.0
        %v2976 = vadd.f32 %v2974, %v2975
        %v2977 = vsel %vm2895, %v2421, 0.0
        %v2978 = vadd.f32 %v2976, %v2977
        %v2979 = vsel %vm2895, %v2422, 0.0
        %v2980 = vadd.f32 %v2978, %v2979
        %v2981 = vsel %vm2895, %v2423, 0.0
        %v2982 = vadd.f32 %v2980, %v2981
        %v2983 = vsel %vm2895, %v2424, 0.0
        %v2984 = vadd.f32 %v2982, %v2983
        %v2985 = vsel %vm2895, %v2425, 0.0
        %v2986 = vadd.f32 %v2984, %v2985
        %v2987 = vsel %vm2895, %v2426, 0.0
        %v2988 = vadd.f32 %v2986, %v2987
        %v2989 = vsel %vm2895, %v2427, 0.0
        %v2990 = vadd.f32 %v2988, %v2989
        %v2991 = vsel %vm2895, %v2428, 0.0
        %v2992 = vadd.f32 %v2990, %v2991
        %v2993 = vsel %vm2895, %v2429, 0.0
        %v2994 = vadd.f32 %v2992, %v2993
        %v2995 = vsel %vm2895, %v2430, 0.0
        %v2996 = vadd.f32 %v2994, %v2995
        %v2997 = vsel %vm2895, %v2431, 0.0
        %v2998 = vadd.f32 %v2996, %v2997
        %v2999 = vsel %vm2895, %v2432, 0.0
        %v3000 = vadd.f32 %v2998, %v2999
        %v3001 = vsel %vm2895, %v2433, 0.0
        %v3002 = vadd.f32 %v3000, %v3001
        %v3003 = vsel %vm2895, %v2434, 0.0
        %v3004 = vadd.f32 %v3002, %v3003
        %v3005 = vsel %vm2895, %v2435, 0.0
        %v3006 = vadd.f32 %v3004, %v3005
        %v3007 = vsel %vm2895, %v2436, 0.0
        %v3008 = vadd.f32 %v3006, %v3007
        %v3009 = vsel %vm2895, %v2437, 0.0
        %v3010 = vadd.f32 %v3008, %v3009
        %v3011 = vsel %vm2895, %v2438, 0.0
        %v3012 = vadd.f32 %v3010, %v3011
        %v3013 = vsel %vm2895, %v2439, 0.0
        %v3014 = vadd.f32 %v3012, %v3013
        %v3015 = vsel %vm2895, %v2440, 0.0
        %v3016 = vadd.f32 %v3014, %v3015
        %v3017 = vsel %vm2895, %v2441, 0.0
        %v3018 = vadd.f32 %v3016, %v3017
        %v3019 = vsel %vm2895, %v2442, 0.0
        %v3020 = vadd.f32 %v3018, %v3019
        %v3021 = vsel %vm2895, %v2443, 0.0
        %v3022 = vadd.f32 %v3020, %v3021
        %v3023 = vsel %vm2895, %v2444, 0.0
        %v3024 = vadd.f32 %v3022, %v3023
        %v3025 = vsel %vm2895, %v2445, 0.0
        %v3026 = vadd.f32 %v3024, %v3025
        %v3027 = vsel %vm2895, %v2446, 0.0
        %v3028 = vadd.f32 %v3026, %v3027
        %v3029 = vsel %vm2895, %v2447, 0.0
        %v3030 = vadd.f32 %v3028, %v3029
        %v3031 = vsel %vm2895, %v2448, 0.0
        %v3032 = vadd.f32 %v3030, %v3031
        %v3033 = vsel %vm2895, %v2449, 0.0
        %v3034 = vadd.f32 %v3032, %v3033
        %v3035 = vsel %vm2895, %v2450, 0.0
        %v3036 = vadd.f32 %v3034, %v3035
        %v3037 = vsel %vm2895, %v2451, 0.0
        %v3038 = vadd.f32 %v3036, %v3037
        %v3039 = vsel %vm2895, %v2452, 0.0
        %v3040 = vadd.f32 %v3038, %v3039
        %v3041 = vsel %vm2895, %v2453, 0.0
        %v3042 = vadd.f32 %v3040, %v3041
        %v3043 = vsel %vm2895, %v2454, 0.0
        %v3044 = vadd.f32 %v3042, %v3043
        %v3045 = vsel %vm2895, %v2455, 0.0
        %v3046 = vadd.f32 %v3044, %v3045
        %v3047 = vsel %vm2895, %v2456, 0.0
        %v3048 = vadd.f32 %v3046, %v3047
        %v3049 = vsel %vm2895, %v2457, 0.0
        %v3050 = vadd.f32 %v3048, %v3049
        %v3051 = vsel %vm2895, %v2458, 0.0
        %v3052 = vadd.f32 %v3050, %v3051
        %v3053 = vsel %vm2895, %v2459, 0.0
        %v3054 = vadd.f32 %v3052, %v3053
        %v3055 = vsel %vm2895, %v2460, 0.0
        %v3056 = vadd.f32 %v3054, %v3055
        %v3057 = vsel %vm2895, %v2461, 0.0
        %v3058 = vadd.f32 %v3056, %v3057
        %v3059 = vsel %vm2895, %v2462, 0.0
        %v3060 = vadd.f32 %v3058, %v3059
        %v3061 = vsel %vm2895, %v2463, 0.0
        %v3062 = vadd.f32 %v3060, %v3061
        %v3063 = vsel %vm2895, %v2464, 0.0
        %v3064 = vadd.f32 %v3062, %v3063
        %v3065 = vsel %vm2895, %v2465, 0.0
        %v3066 = vadd.f32 %v3064, %v3065
        %v3067 = vsel %vm2895, %v2466, 0.0
        %v3068 = vadd.f32 %v3066, %v3067
        %v3069 = vsel %vm2895, %v2467, 0.0
        %v3070 = vadd.f32 %v3068, %v3069
        %v3071 = vsel %vm2895, %v2468, 0.0
        %v3072 = vadd.f32 %v3070, %v3071
        %v3073 = vsel %vm2895, %v2469, 0.0
        %v3074 = vadd.f32 %v3072, %v3073
        %v3075 = vsel %vm2895, %v2470, 0.0
        %v3076 = vadd.f32 %v3074, %v3075
        %v3077 = vsel %vm2895, %v2471, 0.0
        %v3078 = vadd.f32 %v3076, %v3077
        %v3079 = vsel %vm2895, %v2472, 0.0
        %v3080 = vadd.f32 %v3078, %v3079
        %v3081 = vsel %vm2895, %v2473, 0.0
        %v3082 = vadd.f32 %v3080, %v3081
        %v3083 = vsel %vm2895, %v2474, 0.0
        %v3084 = vadd.f32 %v3082, %v3083
        %v3085 = vsel %vm2895, %v2475, 0.0
        %v3086 = vadd.f32 %v3084, %v3085
        %v3087 = vsel %vm2895, %v2476, 0.0
        %v3088 = vadd.f32 %v3086, %v3087
        %v3089 = vsel %vm2895, %v2477, 0.0
        %v3090 = vadd.f32 %v3088, %v3089
        %v3091 = vsel %vm2895, %v2478, 0.0
        %v3092 = vadd.f32 %v3090, %v3091
        %v3093 = vsel %vm2895, %v2479, 0.0
        %v3094 = vadd.f32 %v3092, %v3093
        %v3095 = vsel %vm2895, %v2480, 0.0
        %v3096 = vadd.f32 %v3094, %v3095
        %v3097 = vsel %vm2895, %v2481, 0.0
        %v3098 = vadd.f32 %v3096, %v3097
        %v3099 = vsel %vm2895, %v2482, 0.0
        %v3100 = vadd.f32 %v3098, %v3099
        %v3101 = vsel %vm2895, %v2483, 0.0
        %v3102 = vadd.f32 %v3100, %v3101
        %v3103 = vsel %vm2895, %v2484, 0.0
        %v3104 = vadd.f32 %v3102, %v3103
        %v3105 = vsel %vm2895, %v2485, 0.0
        %v3106 = vadd.f32 %v3104, %v3105
        %v3107 = vsel %vm2895, %v2486, 0.0
        %v3108 = vadd.f32 %v3106, %v3107
        %v3109 = vsel %vm2895, %v2487, 0.0
        %v3110 = vadd.f32 %v3108, %v3109
        %v3111 = vsel %vm2895, %v2488, 0.0
        %v3112 = vadd.f32 %v3110, %v3111
        %v3113 = vsel %vm2895, %v2489, 0.0
        %v3114 = vadd.f32 %v3112, %v3113
        %v3115 = vsel %vm2895, %v2490, 0.0
        %v3116 = vadd.f32 %v3114, %v3115
        %v3117 = vsel %vm2895, %v2491, 0.0
        %v3118 = vadd.f32 %v3116, %v3117
        %v3119 = vsel %vm2895, %v2492, 0.0
        %v3120 = vadd.f32 %v3118, %v3119
        %v3121 = vsel %vm2895, %v2493, 0.0
        %v3122 = vadd.f32 %v3120, %v3121
        %v3123 = vsel %vm2895, %v2494, 0.0
        %v3124 = vadd.f32 %v3122, %v3123
        %v3125 = vsel %vm2895, %v2495, 0.0
        %v3126 = vadd.f32 %v3124, %v3125
        %v3127 = vsel %vm2895, %v2496, 0.0
        %v3128 = vadd.f32 %v3126, %v3127
        %v3129 = vsel %vm2895, %v2497, 0.0
        %v3130 = vadd.f32 %v3128, %v3129
        %v3131 = vsel %vm2895, %v2498, 0.0
        %v3132 = vadd.f32 %v3130, %v3131
        %v3133 = vsel %vm2895, %v2499, 0.0
        %v3134 = vadd.f32 %v3132, %v3133
        %v3135 = vsel %vm2895, %v2500, 0.0
        %v3136 = vadd.f32 %v3134, %v3135
        %v3137 = vsel %vm2895, %v2501, 0.0
        %v3138 = vadd.f32 %v3136, %v3137
        %v3139 = vsel %vm2895, %v2502, 0.0
        %v3140 = vadd.f32 %v3138, %v3139
        %v3141 = vsel %vm2895, %v2503, 0.0
        %v3142 = vadd.f32 %v3140, %v3141
        %v3143 = vsel %vm2895, %v2504, 0.0
        %v3144 = vadd.f32 %v3142, %v3143
        %v3145 = vsel %vm2895, %v2505, 0.0
        %v3146 = vadd.f32 %v3144, %v3145
        %v3147 = vsel %vm2895, %v2506, 0.0
        %v3148 = vadd.f32 %v3146, %v3147
        %v3149 = vsel %vm2895, %v2507, 0.0
        %v3150 = vadd.f32 %v3148, %v3149
        %v3151 = vsel %vm2895, %v2508, 0.0
        %v3152 = vadd.f32 %v3150, %v3151
        %v3153 = vsel %vm2895, %v2509, 0.0
        %v3154 = vadd.f32 %v3152, %v3153
        %v3155 = vsel %vm2895, %v2510, 0.0
        %v3156 = vadd.f32 %v3154, %v3155
        %v3157 = vsel %vm2895, %v2511, 0.0
        %v3158 = vadd.f32 %v3156, %v3157
        %v3159 = vsel %vm2895, %v2512, 0.0
        %v3160 = vadd.f32 %v3158, %v3159
        %v3161 = vsel %vm2895, %v2513, 0.0
        %v3162 = vadd.f32 %v3160, %v3161
        %v3163 = vsel %vm2895, %v2514, 0.0
        %v3164 = vadd.f32 %v3162, %v3163
        %v3165 = vsel %vm2895, %v2515, 0.0
        %v3166 = vadd.f32 %v3164, %v3165
        %v3167 = vsel %vm2895, %v2516, 0.0
        %v3168 = vadd.f32 %v3166, %v3167
        %v3169 = vsel %vm2895, %v2517, 0.0
        %v3170 = vadd.f32 %v3168, %v3169
        %v3171 = vsel %vm2895, %v2518, 0.0
        %v3172 = vadd.f32 %v3170, %v3171
        %v3173 = vsel %vm2895, %v2519, 0.0
        %v3174 = vadd.f32 %v3172, %v3173
        %v3175 = vsel %vm2895, %v2520, 0.0
        %v3176 = vadd.f32 %v3174, %v3175
        %v3177 = vsel %vm2895, %v2521, 0.0
        %v3178 = vadd.f32 %v3176, %v3177
        %v3179 = vsel %vm2895, %v2522, 0.0
        %v3180 = vadd.f32 %v3178, %v3179
        %v3181 = vsel %vm2895, %v2523, 0.0
        %v3182 = vadd.f32 %v3180, %v3181
        %v3183 = vsel %vm2895, %v2524, 0.0
        %v3184 = vadd.f32 %v3182, %v3183
        %v3185 = vsel %vm2895, %v2525, 0.0
        %v3186 = vadd.f32 %v3184, %v3185
        %v3187 = vsel %vm2895, %v2526, 0.0
        %v3188 = vadd.f32 %v3186, %v3187
        %v3189 = vsel %vm2895, %v2527, 0.0
        %v3190 = vadd.f32 %v3188, %v3189
        %v3191 = vsel %vm2895, %v2528, 0.0
        %v3192 = vadd.f32 %v3190, %v3191
        %v3193 = vsel %vm2895, %v2529, 0.0
        %v3194 = vadd.f32 %v3192, %v3193
        %v3195 = vsel %vm2895, %v2530, 0.0
        %v3196 = vadd.f32 %v3194, %v3195
        %v3197 = vsel %vm2895, %v2531, 0.0
        %v3198 = vadd.f32 %v3196, %v3197
        %v3199 = vsel %vm2895, %v2532, 0.0
        %v3200 = vadd.f32 %v3198, %v3199
        %v3201 = vsel %vm2895, %v2533, 0.0
        %v3202 = vadd.f32 %v3200, %v3201
        %v3203 = vsel %vm2895, %v2534, 0.0
        %v3204 = vadd.f32 %v3202, %v3203
        %v3205 = vsel %vm2895, %v2535, 0.0
        %v3206 = vadd.f32 %v3204, %v3205
        %v3207 = vsel %vm2895, %v2536, 0.0
        %v3208 = vadd.f32 %v3206, %v3207
        %v3209 = vsel %vm2895, %v2537, 0.0
        %v3210 = vadd.f32 %v3208, %v3209
        %v3211 = vsel %vm2895, %v2538, 0.0
        %v3212 = vadd.f32 %v3210, %v3211
        %v3213 = vsel %vm2895, %v2539, 0.0
        %v3214 = vadd.f32 %v3212, %v3213
        %v3215 = vsel %vm2895, %v2540, 0.0
        %v3216 = vadd.f32 %v3214, %v3215
        %v3217 = vsel %vm2895, %v2541, 0.0
        %v3218 = vadd.f32 %v3216, %v3217
        %v3219 = vsel %vm2895, %v2542, 0.0
        %v3220 = vadd.f32 %v3218, %v3219
        %v3221 = vsel %vm2895, %v2543, 0.0
        %v3222 = vadd.f32 %v3220, %v3221
        %v3223 = vsel %vm2895, %v2544, 0.0
        %v3224 = vadd.f32 %v3222, %v3223
        %v3225 = vsel %vm2895, %v2545, 0.0
        %v3226 = vadd.f32 %v3224, %v3225
        %v3227 = vsel %vm2895, %v2546, 0.0
        %v3228 = vadd.f32 %v3226, %v3227
        %v3229 = vsel %vm2895, %v2547, 0.0
        %v3230 = vadd.f32 %v3228, %v3229
        %v3231 = vsel %vm2895, %v2548, 0.0
        %v3232 = vadd.f32 %v3230, %v3231
        %v3233 = vsel %vm2895, %v2549, 0.0
        %v3234 = vadd.f32 %v3232, %v3233
        %v3235 = vsel %vm2895, %v2550, 0.0
        %v3236 = vadd.f32 %v3234, %v3235
        %v3237 = vsel %vm2895, %v2551, 0.0
        %v3238 = vadd.f32 %v3236, %v3237
        %v3239 = vsel %vm2895, %v2552, 0.0
        %v3240 = vadd.f32 %v3238, %v3239
        %v3241 = vsel %vm2895, %v2553, 0.0
        %v3242 = vadd.f32 %v3240, %v3241
        %v3243 = vsel %vm2895, %v2554, 0.0
        %v3244 = vadd.f32 %v3242, %v3243
        %v3245 = vsel %vm2895, %v2555, 0.0
        %v3246 = vadd.f32 %v3244, %v3245
        %v3247 = vsel %vm2895, %v2556, 0.0
        %v3248 = vadd.f32 %v3246, %v3247
        %v3249 = vsel %vm2895, %v2557, 0.0
        %v3250 = vadd.f32 %v3248, %v3249
        %v3251 = vsel %vm2895, %v2558, 0.0
        %v3252 = vadd.f32 %v3250, %v3251
        %v3253 = vsel %vm2895, %v2559, 0.0
        %v3254 = vadd.f32 %v3252, %v3253
        %v3255 = vsel %vm2895, %v2560, 0.0
        %v3256 = vadd.f32 %v3254, %v3255
        %v3257 = vsel %vm2895, %v2561, 0.0
        %v3258 = vadd.f32 %v3256, %v3257
        %v3259 = vsel %vm2895, %v2562, 0.0
        %v3260 = vadd.f32 %v3258, %v3259
        %v3261 = vsel %vm2895, %v2563, 0.0
        %v3262 = vadd.f32 %v3260, %v3261
        %v3263 = vsel %vm2895, %v2564, 0.0
        %v3264 = vadd.f32 %v3262, %v3263
        %v3265 = vsel %vm2895, %v2565, 0.0
        %v3266 = vadd.f32 %v3264, %v3265
        %v3267 = vsel %vm2895, %v2566, 0.0
        %v3268 = vadd.f32 %v3266, %v3267
        %v3269 = vsel %vm2895, %v2567, 0.0
        %v3270 = vadd.f32 %v3268, %v3269
        %v3271 = vsel %vm2895, %v2568, 0.0
        %v3272 = vadd.f32 %v3270, %v3271
        %v3273 = vsel %vm2895, %v2569, 0.0
        %v3274 = vadd.f32 %v3272, %v3273
        %v3275 = vsel %vm2895, %v2570, 0.0
        %v3276 = vadd.f32 %v3274, %v3275
        %v3277 = vsel %vm2895, %v2571, 0.0
        %v3278 = vadd.f32 %v3276, %v3277
        %v3279 = vsel %vm2895, %v2572, 0.0
        %v3280 = vadd.f32 %v3278, %v3279
        %v3281 = vsel %vm2895, %v2573, 0.0
        %v3282 = vadd.f32 %v3280, %v3281
        %v3283 = vsel %vm2895, %v2574, 0.0
        %v3284 = vadd.f32 %v3282, %v3283
        %v3285 = vsel %vm2895, %v2575, 0.0
        %v3286 = vadd.f32 %v3284, %v3285
        %v3287 = vsel %vm2895, %v2576, 0.0
        %v3288 = vadd.f32 %v3286, %v3287
        %v3289 = vsel %vm2895, %v2577, 0.0
        %v3290 = vadd.f32 %v3288, %v3289
        %v3291 = vsel %vm2895, %v2578, 0.0
        %v3292 = vadd.f32 %v3290, %v3291
        %v3293 = vsel %vm2895, %v2579, 0.0
        %v3294 = vadd.f32 %v3292, %v3293
        %v3295 = vsel %vm2895, %v2580, 0.0
        %v3296 = vadd.f32 %v3294, %v3295
        %v3297 = vsel %vm2895, %v2581, 0.0
        %v3298 = vadd.f32 %v3296, %v3297
        %v3299 = vsel %vm2895, %v2582, 0.0
        %v3300 = vadd.f32 %v3298, %v3299
        %v3301 = vsel %vm2895, %v2583, 0.0
        %v3302 = vadd.f32 %v3300, %v3301
        %v3303 = vsel %vm2895, %v2584, 0.0
        %v3304 = vadd.f32 %v3302, %v3303
        %v3305 = vsel %vm2895, %v2585, 0.0
        %v3306 = vadd.f32 %v3304, %v3305
        %v3307 = vsel %vm2895, %v2586, 0.0
        %v3308 = vadd.f32 %v3306, %v3307
        %v3309 = vsel %vm2895, %v2587, 0.0
        %v3310 = vadd.f32 %v3308, %v3309
        %v3311 = vsel %vm2895, %v2588, 0.0
        %v3312 = vadd.f32 %v3310, %v3311
        %v3313 = vsel %vm2895, %v2589, 0.0
        %v3314 = vadd.f32 %v3312, %v3313
        %v3315 = vsel %vm2895, %v2590, 0.0
        %v3316 = vadd.f32 %v3314, %v3315
        %v3317 = vsel %vm2895, %v2591, 0.0
        %v3318 = vadd.f32 %v3316, %v3317
        %v3319 = vsel %vm2895, %v2592, 0.0
        %v3320 = vadd.f32 %v3318, %v3319
        %v3321 = vsel %vm2895, %v2593, 0.0
        %v3322 = vadd.f32 %v3320, %v3321
        %v3323 = vsel %vm2895, %v2594, 0.0
        %v3324 = vadd.f32 %v3322, %v3323
        %v3325 = vsel %vm2895, %v2595, 0.0
        %v3326 = vadd.f32 %v3324, %v3325
        %v3327 = vsel %vm2895, %v2596, 0.0
        %v3328 = vadd.f32 %v3326, %v3327
        %v3329 = vsel %vm2895, %v2597, 0.0
        %v3330 = vadd.f32 %v3328, %v3329
        %v3331 = vsel %vm2895, %v2598, 0.0
        %v3332 = vadd.f32 %v3330, %v3331
        %v3333 = vsel %vm2895, %v2599, 0.0
        %v3334 = vadd.f32 %v3332, %v3333
        %v3335 = vsel %vm2895, %v2600, 0.0
        %v3336 = vadd.f32 %v3334, %v3335
        %v3337 = vsel %vm2895, %v2601, 0.0
        %v3338 = vadd.f32 %v3336, %v3337
        %v3339 = vsel %vm2895, %v2602, 0.0
        %v3340 = vadd.f32 %v3338, %v3339
        %v3341 = vsel %vm2895, %v2603, 0.0
        %v3342 = vadd.f32 %v3340, %v3341
        %v3343 = vsel %vm2895, %v2604, 0.0
        %v3344 = vadd.f32 %v3342, %v3343
        %v3345 = vsel %vm2895, %v2605, 0.0
        %v3346 = vadd.f32 %v3344, %v3345
        %v3347 = vsel %vm2895, %v2606, 0.0
        %v3348 = vadd.f32 %v3346, %v3347
        %v3349 = vsel %vm2895, %v2607, 0.0
        %v3350 = vadd.f32 %v3348, %v3349
        %v3351 = vsel %vm2895, %v2608, 0.0
        %v3352 = vadd.f32 %v3350, %v3351
        %v3353 = vsel %vm2895, %v2609, 0.0
        %v3354 = vadd.f32 %v3352, %v3353
        %v3355 = vsel %vm2895, %v2610, 0.0
        %v3356 = vadd.f32 %v3354, %v3355
        %v3357 = vsel %vm2895, %v2611, 0.0
        %v3358 = vadd.f32 %v3356, %v3357
        %v3359 = vsel %vm2895, %v2612, 0.0
        %v3360 = vadd.f32 %v3358, %v3359
        %v3361 = vsel %vm2895, %v2613, 0.0
        %v3362 = vadd.f32 %v3360, %v3361
        %v3363 = vsel %vm2895, %v2614, 0.0
        %v3364 = vadd.f32 %v3362, %v3363
        %v3365 = vsel %vm2895, %v2615, 0.0
        %v3366 = vadd.f32 %v3364, %v3365
        %v3367 = vsel %vm2895, %v2616, 0.0
        %v3368 = vadd.f32 %v3366, %v3367
        %v3369 = vsel %vm2895, %v2617, 0.0
        %v3370 = vadd.f32 %v3368, %v3369
        %v3371 = vsel %vm2895, %v2618, 0.0
        %v3372 = vadd.f32 %v3370, %v3371
        %v3373 = vsel %vm2895, %v2619, 0.0
        %v3374 = vadd.f32 %v3372, %v3373
        %v3375 = vsel %vm2895, %v2620, 0.0
        %v3376 = vadd.f32 %v3374, %v3375
        %v3377 = vsel %vm2895, %v2621, 0.0
        %v3378 = vadd.f32 %v3376, %v3377
        %v3379 = vsel %vm2895, %v2622, 0.0
        %v3380 = vadd.f32 %v3378, %v3379
        %v3381 = vsel %vm2895, %v2623, 0.0
        %v3382 = vadd.f32 %v3380, %v3381
        %v3383 = vsel %vm2895, %v2624, 0.0
        %v3384 = vadd.f32 %v3382, %v3383
        %v3385 = vsel %vm2895, %v2625, 0.0
        %v3386 = vadd.f32 %v3384, %v3385
        %v3387 = vsel %vm2895, %v2626, 0.0
        %v3388 = vadd.f32 %v3386, %v3387
        %v3389 = vsel %vm2895, %v2627, 0.0
        %v3390 = vadd.f32 %v3388, %v3389
        %v3391 = vsel %vm2895, %v2628, 0.0
        %v3392 = vadd.f32 %v3390, %v3391
        %v3393 = vsel %vm2895, %v2629, 0.0
        %v3394 = vadd.f32 %v3392, %v3393
        %v3395 = vsel %vm2895, %v2630, 0.0
        %v3396 = vadd.f32 %v3394, %v3395
        %v3397 = vsel %vm2895, %v2631, 0.0
        %v3398 = vadd.f32 %v3396, %v3397
        %v3399 = vsel %vm2895, %v2632, 0.0
        %v3400 = vadd.f32 %v3398, %v3399
        %v3401 = vsel %vm2895, %v2633, 0.0
        %v3402 = vadd.f32 %v3400, %v3401
        %v3403 = vsel %vm2895, %v2634, 0.0
        %v3404 = vadd.f32 %v3402, %v3403
        %v3405 = vsel %vm2895, %v2635, 0.0
        %v3406 = vadd.f32 %v3404, %v3405
        %3407 = vadd.xlane.f32.xlu0 %v3406
        %v3408 = vpop.xlane.xlu0 %3407
        %v3409 = vadd.f32 %v2636, %v2894
        %v3410 = vadd.f32 %v2637, %v3408
        %vm3411 = vcmask 7168
        %3412 = vst.msk [vmem:[#allocation2] sm:$0xff] %vm3411, %v3409
        %vm3413 = vcmask 1024
        %3414 = vst.msk [vmem:[#allocation2 + $0x8] sm:$0x3] %vm3413, %v3410
        %s3415 = scalar_lea.vmem %s191, 1 [#allocation3]
        %v3416 = vld [vmem:[%s3415] ss:$2 sm:$0xff]
        %s3417 = scalar_lea.vmem %s191, 17 [#allocation3]
        %v3418 = vld [vmem:[%s3417] ss:$2 sm:$0xff]
        %s3419 = scalar_lea.vmem %s191, 33 [#allocation3]
        %v3420 = vld [vmem:[%s3419] ss:$2 sm:$0xff]
        %s3421 = scalar_lea.vmem %s191, 49 [#allocation3]
        %v3422 = vld [vmem:[%s3421] ss:$2 sm:$0xff]
        %s3423 = scalar_lea.vmem %s191, 65 [#allocation3]
        %v3424 = vld [vmem:[%s3423] ss:$2 sm:$0xff]
        %s3425 = scalar_lea.vmem %s191, 81 [#allocation3]
        %v3426 = vld [vmem:[%s3425] ss:$2 sm:$0xff]
        %s3427 = scalar_lea.vmem %s191, 97 [#allocation3]
        %v3428 = vld [vmem:[%s3427] ss:$2 sm:$0xff]
        %s3429 = scalar_lea.vmem %s191, 113 [#allocation3]
        %v3430 = vld [vmem:[%s3429] ss:$2 sm:$0xff]
        %s3431 = scalar_lea.vmem %s191, 129 [#allocation3]
        %v3432 = vld [vmem:[%s3431] ss:$2 sm:$0xff]
        %s3433 = scalar_lea.vmem %s191, 145 [#allocation3]
        %v3434 = vld [vmem:[%s3433] ss:$2 sm:$0xff]
        %s3435 = scalar_lea.vmem %s191, 161 [#allocation3]
        %v3436 = vld [vmem:[%s3435] ss:$2 sm:$0xff]
        %s3437 = scalar_lea.vmem %s191, 177 [#allocation3]
        %v3438 = vld [vmem:[%s3437] ss:$2 sm:$0xff]
        %s3439 = scalar_lea.vmem %s191, 193 [#allocation3]
        %v3440 = vld [vmem:[%s3439] ss:$2 sm:$0xff]
        %s3441 = scalar_lea.vmem %s191, 209 [#allocation3]
        %v3442 = vld [vmem:[%s3441] ss:$2 sm:$0xff]
        %s3443 = scalar_lea.vmem %s191, 225 [#allocation3]
        %v3444 = vld [vmem:[%s3443] ss:$2 sm:$0xff]
        %s3445 = scalar_lea.vmem %s191, 241 [#allocation3]
        %v3446 = vld [vmem:[%s3445] ss:$2 sm:$0xff]
        %s3447 = scalar_lea.vmem %s191, 257 [#allocation3]
        %v3448 = vld [vmem:[%s3447] ss:$2 sm:$0xff]
        %s3449 = scalar_lea.vmem %s191, 273 [#allocation3]
        %v3450 = vld [vmem:[%s3449] ss:$2 sm:$0xff]
        %s3451 = scalar_lea.vmem %s191, 289 [#allocation3]
        %v3452 = vld [vmem:[%s3451] ss:$2 sm:$0xff]
        %s3453 = scalar_lea.vmem %s191, 305 [#allocation3]
        %v3454 = vld [vmem:[%s3453] ss:$2 sm:$0xff]
        %s3455 = scalar_lea.vmem %s191, 321 [#allocation3]
        %v3456 = vld [vmem:[%s3455] ss:$2 sm:$0xff]
        %s3457 = scalar_lea.vmem %s191, 337 [#allocation3]
        %v3458 = vld [vmem:[%s3457] ss:$2 sm:$0xff]
        %s3459 = scalar_lea.vmem %s191, 353 [#allocation3]
        %v3460 = vld [vmem:[%s3459] ss:$2 sm:$0xff]
        %s3461 = scalar_lea.vmem %s191, 369 [#allocation3]
        %v3462 = vld [vmem:[%s3461] ss:$2 sm:$0xff]
        %s3463 = scalar_lea.vmem %s191, 385 [#allocation3]
        %v3464 = vld [vmem:[%s3463] ss:$2 sm:$0xff]
        %s3465 = scalar_lea.vmem %s191, 401 [#allocation3]
        %v3466 = vld [vmem:[%s3465] ss:$2 sm:$0xff]
        %s3467 = scalar_lea.vmem %s191, 417 [#allocation3]
        %v3468 = vld [vmem:[%s3467] ss:$2 sm:$0xff]
        %s3469 = scalar_lea.vmem %s191, 433 [#allocation3]
        %v3470 = vld [vmem:[%s3469] ss:$2 sm:$0xff]
        %s3471 = scalar_lea.vmem %s191, 449 [#allocation3]
        %v3472 = vld [vmem:[%s3471] ss:$2 sm:$0xff]
        %s3473 = scalar_lea.vmem %s191, 465 [#allocation3]
        %v3474 = vld [vmem:[%s3473] ss:$2 sm:$0xff]
        %s3475 = scalar_lea.vmem %s191, 481 [#allocation3]
        %v3476 = vld [vmem:[%s3475] ss:$2 sm:$0xff]
        %s3477 = scalar_lea.vmem %s191, 497 [#allocation3]
        %v3478 = vld [vmem:[%s3477] ss:$2 sm:$0xff]
        %v3511 = vlaneseq
        %v3512 = vshrl.u32 %v3511, 7
        %v3513 = vsub.s32 0, %v3512
        %v3514 = vrot.slane %v3416, %v3513
        %v3515 = vlaneseq
        %v3516 = vshrl.u32 %v3515, 7
        %v3517 = vsub.s32 1, %v3516
        %v3518 = vrot.slane %v3416, %v3517
        %v3519 = vlaneseq
        %v3520 = vshrl.u32 %v3519, 7
        %v3521 = vsub.s32 2, %v3520
        %v3522 = vrot.slane %v3416, %v3521
        %v3523 = vlaneseq
        %v3524 = vshrl.u32 %v3523, 7
        %v3525 = vsub.s32 3, %v3524
        %v3526 = vrot.slane %v3416, %v3525
        %v3527 = vlaneseq
        %v3528 = vshrl.u32 %v3527, 7
        %v3529 = vsub.s32 4, %v3528
        %v3530 = vrot.slane %v3416, %v3529
        %v3531 = vlaneseq
        %v3532 = vshrl.u32 %v3531, 7
        %v3533 = vsub.s32 5, %v3532
        %v3534 = vrot.slane %v3416, %v3533
        %v3535 = vlaneseq
        %v3536 = vshrl.u32 %v3535, 7
        %v3537 = vsub.s32 6, %v3536
        %v3538 = vrot.slane %v3416, %v3537
        %v3539 = vlaneseq
        %v3540 = vshrl.u32 %v3539, 7
        %v3541 = vsub.s32 7, %v3540
        %v3542 = vrot.slane %v3416, %v3541
        %v3543 = vlaneseq
        %v3544 = vshrl.u32 %v3543, 7
        %v3545 = vsub.s32 0, %v3544
        %v3546 = vrot.slane %v3418, %v3545
        %v3547 = vlaneseq
        %v3548 = vshrl.u32 %v3547, 7
        %v3549 = vsub.s32 1, %v3548
        %v3550 = vrot.slane %v3418, %v3549
        %v3551 = vlaneseq
        %v3552 = vshrl.u32 %v3551, 7
        %v3553 = vsub.s32 2, %v3552
        %v3554 = vrot.slane %v3418, %v3553
        %v3555 = vlaneseq
        %v3556 = vshrl.u32 %v3555, 7
        %v3557 = vsub.s32 3, %v3556
        %v3558 = vrot.slane %v3418, %v3557
        %v3559 = vlaneseq
        %v3560 = vshrl.u32 %v3559, 7
        %v3561 = vsub.s32 4, %v3560
        %v3562 = vrot.slane %v3418, %v3561
        %v3563 = vlaneseq
        %v3564 = vshrl.u32 %v3563, 7
        %v3565 = vsub.s32 5, %v3564
        %v3566 = vrot.slane %v3418, %v3565
        %v3567 = vlaneseq
        %v3568 = vshrl.u32 %v3567, 7
        %v3569 = vsub.s32 6, %v3568
        %v3570 = vrot.slane %v3418, %v3569
        %v3571 = vlaneseq
        %v3572 = vshrl.u32 %v3571, 7
        %v3573 = vsub.s32 7, %v3572
        %v3574 = vrot.slane %v3418, %v3573
        %v3575 = vlaneseq
        %v3576 = vshrl.u32 %v3575, 7
        %v3577 = vsub.s32 0, %v3576
        %v3578 = vrot.slane %v3420, %v3577
        %v3579 = vlaneseq
        %v3580 = vshrl.u32 %v3579, 7
        %v3581 = vsub.s32 1, %v3580
        %v3582 = vrot.slane %v3420, %v3581
        %v3583 = vlaneseq
        %v3584 = vshrl.u32 %v3583, 7
        %v3585 = vsub.s32 2, %v3584
        %v3586 = vrot.slane %v3420, %v3585
        %v3587 = vlaneseq
        %v3588 = vshrl.u32 %v3587, 7
        %v3589 = vsub.s32 3, %v3588
        %v3590 = vrot.slane %v3420, %v3589
        %v3591 = vlaneseq
        %v3592 = vshrl.u32 %v3591, 7
        %v3593 = vsub.s32 4, %v3592
        %v3594 = vrot.slane %v3420, %v3593
        %v3595 = vlaneseq
        %v3596 = vshrl.u32 %v3595, 7
        %v3597 = vsub.s32 5, %v3596
        %v3598 = vrot.slane %v3420, %v3597
        %v3599 = vlaneseq
        %v3600 = vshrl.u32 %v3599, 7
        %v3601 = vsub.s32 6, %v3600
        %v3602 = vrot.slane %v3420, %v3601
        %v3603 = vlaneseq
        %v3604 = vshrl.u32 %v3603, 7
        %v3605 = vsub.s32 7, %v3604
        %v3606 = vrot.slane %v3420, %v3605
        %v3607 = vlaneseq
        %v3608 = vshrl.u32 %v3607, 7
        %v3609 = vsub.s32 0, %v3608
        %v3610 = vrot.slane %v3422, %v3609
        %v3611 = vlaneseq
        %v3612 = vshrl.u32 %v3611, 7
        %v3613 = vsub.s32 1, %v3612
        %v3614 = vrot.slane %v3422, %v3613
        %v3615 = vlaneseq
        %v3616 = vshrl.u32 %v3615, 7
        %v3617 = vsub.s32 2, %v3616
        %v3618 = vrot.slane %v3422, %v3617
        %v3619 = vlaneseq
        %v3620 = vshrl.u32 %v3619, 7
        %v3621 = vsub.s32 3, %v3620
        %v3622 = vrot.slane %v3422, %v3621
        %v3623 = vlaneseq
        %v3624 = vshrl.u32 %v3623, 7
        %v3625 = vsub.s32 4, %v3624
        %v3626 = vrot.slane %v3422, %v3625
        %v3627 = vlaneseq
        %v3628 = vshrl.u32 %v3627, 7
        %v3629 = vsub.s32 5, %v3628
        %v3630 = vrot.slane %v3422, %v3629
        %v3631 = vlaneseq
        %v3632 = vshrl.u32 %v3631, 7
        %v3633 = vsub.s32 6, %v3632
        %v3634 = vrot.slane %v3422, %v3633
        %v3635 = vlaneseq
        %v3636 = vshrl.u32 %v3635, 7
        %v3637 = vsub.s32 7, %v3636
        %v3638 = vrot.slane %v3422, %v3637
        %v3639 = vlaneseq
        %v3640 = vshrl.u32 %v3639, 7
        %v3641 = vsub.s32 0, %v3640
        %v3642 = vrot.slane %v3424, %v3641
        %v3643 = vlaneseq
        %v3644 = vshrl.u32 %v3643, 7
        %v3645 = vsub.s32 1, %v3644
        %v3646 = vrot.slane %v3424, %v3645
        %v3647 = vlaneseq
        %v3648 = vshrl.u32 %v3647, 7
        %v3649 = vsub.s32 2, %v3648
        %v3650 = vrot.slane %v3424, %v3649
        %v3651 = vlaneseq
        %v3652 = vshrl.u32 %v3651, 7
        %v3653 = vsub.s32 3, %v3652
        %v3654 = vrot.slane %v3424, %v3653
        %v3655 = vlaneseq
        %v3656 = vshrl.u32 %v3655, 7
        %v3657 = vsub.s32 4, %v3656
        %v3658 = vrot.slane %v3424, %v3657
        %v3659 = vlaneseq
        %v3660 = vshrl.u32 %v3659, 7
        %v3661 = vsub.s32 5, %v3660
        %v3662 = vrot.slane %v3424, %v3661
        %v3663 = vlaneseq
        %v3664 = vshrl.u32 %v3663, 7
        %v3665 = vsub.s32 6, %v3664
        %v3666 = vrot.slane %v3424, %v3665
        %v3667 = vlaneseq
        %v3668 = vshrl.u32 %v3667, 7
        %v3669 = vsub.s32 7, %v3668
        %v3670 = vrot.slane %v3424, %v3669
        %v3671 = vlaneseq
        %v3672 = vshrl.u32 %v3671, 7
        %v3673 = vsub.s32 0, %v3672
        %v3674 = vrot.slane %v3426, %v3673
        %v3675 = vlaneseq
        %v3676 = vshrl.u32 %v3675, 7
        %v3677 = vsub.s32 1, %v3676
        %v3678 = vrot.slane %v3426, %v3677
        %v3679 = vlaneseq
        %v3680 = vshrl.u32 %v3679, 7
        %v3681 = vsub.s32 2, %v3680
        %v3682 = vrot.slane %v3426, %v3681
        %v3683 = vlaneseq
        %v3684 = vshrl.u32 %v3683, 7
        %v3685 = vsub.s32 3, %v3684
        %v3686 = vrot.slane %v3426, %v3685
        %v3687 = vlaneseq
        %v3688 = vshrl.u32 %v3687, 7
        %v3689 = vsub.s32 4, %v3688
        %v3690 = vrot.slane %v3426, %v3689
        %v3691 = vlaneseq
        %v3692 = vshrl.u32 %v3691, 7
        %v3693 = vsub.s32 5, %v3692
        %v3694 = vrot.slane %v3426, %v3693
        %v3695 = vlaneseq
        %v3696 = vshrl.u32 %v3695, 7
        %v3697 = vsub.s32 6, %v3696
        %v3698 = vrot.slane %v3426, %v3697
        %v3699 = vlaneseq
        %v3700 = vshrl.u32 %v3699, 7
        %v3701 = vsub.s32 7, %v3700
        %v3702 = vrot.slane %v3426, %v3701
        %v3703 = vlaneseq
        %v3704 = vshrl.u32 %v3703, 7
        %v3705 = vsub.s32 0, %v3704
        %v3706 = vrot.slane %v3428, %v3705
        %v3707 = vlaneseq
        %v3708 = vshrl.u32 %v3707, 7
        %v3709 = vsub.s32 1, %v3708
        %v3710 = vrot.slane %v3428, %v3709
        %v3711 = vlaneseq
        %v3712 = vshrl.u32 %v3711, 7
        %v3713 = vsub.s32 2, %v3712
        %v3714 = vrot.slane %v3428, %v3713
        %v3715 = vlaneseq
        %v3716 = vshrl.u32 %v3715, 7
        %v3717 = vsub.s32 3, %v3716
        %v3718 = vrot.slane %v3428, %v3717
        %v3719 = vlaneseq
        %v3720 = vshrl.u32 %v3719, 7
        %v3721 = vsub.s32 4, %v3720
        %v3722 = vrot.slane %v3428, %v3721
        %v3723 = vlaneseq
        %v3724 = vshrl.u32 %v3723, 7
        %v3725 = vsub.s32 5, %v3724
        %v3726 = vrot.slane %v3428, %v3725
        %v3727 = vlaneseq
        %v3728 = vshrl.u32 %v3727, 7
        %v3729 = vsub.s32 6, %v3728
        %v3730 = vrot.slane %v3428, %v3729
        %v3731 = vlaneseq
        %v3732 = vshrl.u32 %v3731, 7
        %v3733 = vsub.s32 7, %v3732
        %v3734 = vrot.slane %v3428, %v3733
        %v3735 = vlaneseq
        %v3736 = vshrl.u32 %v3735, 7
        %v3737 = vsub.s32 0, %v3736
        %v3738 = vrot.slane %v3430, %v3737
        %v3739 = vlaneseq
        %v3740 = vshrl.u32 %v3739, 7
        %v3741 = vsub.s32 1, %v3740
        %v3742 = vrot.slane %v3430, %v3741
        %v3743 = vlaneseq
        %v3744 = vshrl.u32 %v3743, 7
        %v3745 = vsub.s32 2, %v3744
        %v3746 = vrot.slane %v3430, %v3745
        %v3747 = vlaneseq
        %v3748 = vshrl.u32 %v3747, 7
        %v3749 = vsub.s32 3, %v3748
        %v3750 = vrot.slane %v3430, %v3749
        %v3751 = vlaneseq
        %v3752 = vshrl.u32 %v3751, 7
        %v3753 = vsub.s32 4, %v3752
        %v3754 = vrot.slane %v3430, %v3753
        %v3755 = vlaneseq
        %v3756 = vshrl.u32 %v3755, 7
        %v3757 = vsub.s32 5, %v3756
        %v3758 = vrot.slane %v3430, %v3757
        %v3759 = vlaneseq
        %v3760 = vshrl.u32 %v3759, 7
        %v3761 = vsub.s32 6, %v3760
        %v3762 = vrot.slane %v3430, %v3761
        %v3763 = vlaneseq
        %v3764 = vshrl.u32 %v3763, 7
        %v3765 = vsub.s32 7, %v3764
        %v3766 = vrot.slane %v3430, %v3765
        %v3767 = vlaneseq
        %v3768 = vshrl.u32 %v3767, 7
        %v3769 = vsub.s32 0, %v3768
        %v3770 = vrot.slane %v3432, %v3769
        %v3771 = vlaneseq
        %v3772 = vshrl.u32 %v3771, 7
        %v3773 = vsub.s32 1, %v3772
        %v3774 = vrot.slane %v3432, %v3773
        %v3775 = vlaneseq
        %v3776 = vshrl.u32 %v3775, 7
        %v3777 = vsub.s32 2, %v3776
        %v3778 = vrot.slane %v3432, %v3777
        %v3779 = vlaneseq
        %v3780 = vshrl.u32 %v3779, 7
        %v3781 = vsub.s32 3, %v3780
        %v3782 = vrot.slane %v3432, %v3781
        %v3783 = vlaneseq
        %v3784 = vshrl.u32 %v3783, 7
        %v3785 = vsub.s32 4, %v3784
        %v3786 = vrot.slane %v3432, %v3785
        %v3787 = vlaneseq
        %v3788 = vshrl.u32 %v3787, 7
        %v3789 = vsub.s32 5, %v3788
        %v3790 = vrot.slane %v3432, %v3789
        %v3791 = vlaneseq
        %v3792 = vshrl.u32 %v3791, 7
        %v3793 = vsub.s32 6, %v3792
        %v3794 = vrot.slane %v3432, %v3793
        %v3795 = vlaneseq
        %v3796 = vshrl.u32 %v3795, 7
        %v3797 = vsub.s32 7, %v3796
        %v3798 = vrot.slane %v3432, %v3797
        %v3799 = vlaneseq
        %v3800 = vshrl.u32 %v3799, 7
        %v3801 = vsub.s32 0, %v3800
        %v3802 = vrot.slane %v3434, %v3801
        %v3803 = vlaneseq
        %v3804 = vshrl.u32 %v3803, 7
        %v3805 = vsub.s32 1, %v3804
        %v3806 = vrot.slane %v3434, %v3805
        %v3807 = vlaneseq
        %v3808 = vshrl.u32 %v3807, 7
        %v3809 = vsub.s32 2, %v3808
        %v3810 = vrot.slane %v3434, %v3809
        %v3811 = vlaneseq
        %v3812 = vshrl.u32 %v3811, 7
        %v3813 = vsub.s32 3, %v3812
        %v3814 = vrot.slane %v3434, %v3813
        %v3815 = vlaneseq
        %v3816 = vshrl.u32 %v3815, 7
        %v3817 = vsub.s32 4, %v3816
        %v3818 = vrot.slane %v3434, %v3817
        %v3819 = vlaneseq
        %v3820 = vshrl.u32 %v3819, 7
        %v3821 = vsub.s32 5, %v3820
        %v3822 = vrot.slane %v3434, %v3821
        %v3823 = vlaneseq
        %v3824 = vshrl.u32 %v3823, 7
        %v3825 = vsub.s32 6, %v3824
        %v3826 = vrot.slane %v3434, %v3825
        %v3827 = vlaneseq
        %v3828 = vshrl.u32 %v3827, 7
        %v3829 = vsub.s32 7, %v3828
        %v3830 = vrot.slane %v3434, %v3829
        %v3831 = vlaneseq
        %v3832 = vshrl.u32 %v3831, 7
        %v3833 = vsub.s32 0, %v3832
        %v3834 = vrot.slane %v3436, %v3833
        %v3835 = vlaneseq
        %v3836 = vshrl.u32 %v3835, 7
        %v3837 = vsub.s32 1, %v3836
        %v3838 = vrot.slane %v3436, %v3837
        %v3839 = vlaneseq
        %v3840 = vshrl.u32 %v3839, 7
        %v3841 = vsub.s32 2, %v3840
        %v3842 = vrot.slane %v3436, %v3841
        %v3843 = vlaneseq
        %v3844 = vshrl.u32 %v3843, 7
        %v3845 = vsub.s32 3, %v3844
        %v3846 = vrot.slane %v3436, %v3845
        %v3847 = vlaneseq
        %v3848 = vshrl.u32 %v3847, 7
        %v3849 = vsub.s32 4, %v3848
        %v3850 = vrot.slane %v3436, %v3849
        %v3851 = vlaneseq
        %v3852 = vshrl.u32 %v3851, 7
        %v3853 = vsub.s32 5, %v3852
        %v3854 = vrot.slane %v3436, %v3853
        %v3855 = vlaneseq
        %v3856 = vshrl.u32 %v3855, 7
        %v3857 = vsub.s32 6, %v3856
        %v3858 = vrot.slane %v3436, %v3857
        %v3859 = vlaneseq
        %v3860 = vshrl.u32 %v3859, 7
        %v3861 = vsub.s32 7, %v3860
        %v3862 = vrot.slane %v3436, %v3861
        %v3863 = vlaneseq
        %v3864 = vshrl.u32 %v3863, 7
        %v3865 = vsub.s32 0, %v3864
        %v3866 = vrot.slane %v3438, %v3865
        %v3867 = vlaneseq
        %v3868 = vshrl.u32 %v3867, 7
        %v3869 = vsub.s32 1, %v3868
        %v3870 = vrot.slane %v3438, %v3869
        %v3871 = vlaneseq
        %v3872 = vshrl.u32 %v3871, 7
        %v3873 = vsub.s32 2, %v3872
        %v3874 = vrot.slane %v3438, %v3873
        %v3875 = vlaneseq
        %v3876 = vshrl.u32 %v3875, 7
        %v3877 = vsub.s32 3, %v3876
        %v3878 = vrot.slane %v3438, %v3877
        %v3879 = vlaneseq
        %v3880 = vshrl.u32 %v3879, 7
        %v3881 = vsub.s32 4, %v3880
        %v3882 = vrot.slane %v3438, %v3881
        %v3883 = vlaneseq
        %v3884 = vshrl.u32 %v3883, 7
        %v3885 = vsub.s32 5, %v3884
        %v3886 = vrot.slane %v3438, %v3885
        %v3887 = vlaneseq
        %v3888 = vshrl.u32 %v3887, 7
        %v3889 = vsub.s32 6, %v3888
        %v3890 = vrot.slane %v3438, %v3889
        %v3891 = vlaneseq
        %v3892 = vshrl.u32 %v3891, 7
        %v3893 = vsub.s32 7, %v3892
        %v3894 = vrot.slane %v3438, %v3893
        %v3895 = vlaneseq
        %v3896 = vshrl.u32 %v3895, 7
        %v3897 = vsub.s32 0, %v3896
        %v3898 = vrot.slane %v3440, %v3897
        %v3899 = vlaneseq
        %v3900 = vshrl.u32 %v3899, 7
        %v3901 = vsub.s32 1, %v3900
        %v3902 = vrot.slane %v3440, %v3901
        %v3903 = vlaneseq
        %v3904 = vshrl.u32 %v3903, 7
        %v3905 = vsub.s32 2, %v3904
        %v3906 = vrot.slane %v3440, %v3905
        %v3907 = vlaneseq
        %v3908 = vshrl.u32 %v3907, 7
        %v3909 = vsub.s32 3, %v3908
        %v3910 = vrot.slane %v3440, %v3909
        %v3911 = vlaneseq
        %v3912 = vshrl.u32 %v3911, 7
        %v3913 = vsub.s32 4, %v3912
        %v3914 = vrot.slane %v3440, %v3913
        %v3915 = vlaneseq
        %v3916 = vshrl.u32 %v3915, 7
        %v3917 = vsub.s32 5, %v3916
        %v3918 = vrot.slane %v3440, %v3917
        %v3919 = vlaneseq
        %v3920 = vshrl.u32 %v3919, 7
        %v3921 = vsub.s32 6, %v3920
        %v3922 = vrot.slane %v3440, %v3921
        %v3923 = vlaneseq
        %v3924 = vshrl.u32 %v3923, 7
        %v3925 = vsub.s32 7, %v3924
        %v3926 = vrot.slane %v3440, %v3925
        %v3927 = vlaneseq
        %v3928 = vshrl.u32 %v3927, 7
        %v3929 = vsub.s32 0, %v3928
        %v3930 = vrot.slane %v3442, %v3929
        %v3931 = vlaneseq
        %v3932 = vshrl.u32 %v3931, 7
        %v3933 = vsub.s32 1, %v3932
        %v3934 = vrot.slane %v3442, %v3933
        %v3935 = vlaneseq
        %v3936 = vshrl.u32 %v3935, 7
        %v3937 = vsub.s32 2, %v3936
        %v3938 = vrot.slane %v3442, %v3937
        %v3939 = vlaneseq
        %v3940 = vshrl.u32 %v3939, 7
        %v3941 = vsub.s32 3, %v3940
        %v3942 = vrot.slane %v3442, %v3941
        %v3943 = vlaneseq
        %v3944 = vshrl.u32 %v3943, 7
        %v3945 = vsub.s32 4, %v3944
        %v3946 = vrot.slane %v3442, %v3945
        %v3947 = vlaneseq
        %v3948 = vshrl.u32 %v3947, 7
        %v3949 = vsub.s32 5, %v3948
        %v3950 = vrot.slane %v3442, %v3949
        %v3951 = vlaneseq
        %v3952 = vshrl.u32 %v3951, 7
        %v3953 = vsub.s32 6, %v3952
        %v3954 = vrot.slane %v3442, %v3953
        %v3955 = vlaneseq
        %v3956 = vshrl.u32 %v3955, 7
        %v3957 = vsub.s32 7, %v3956
        %v3958 = vrot.slane %v3442, %v3957
        %v3959 = vlaneseq
        %v3960 = vshrl.u32 %v3959, 7
        %v3961 = vsub.s32 0, %v3960
        %v3962 = vrot.slane %v3444, %v3961
        %v3963 = vlaneseq
        %v3964 = vshrl.u32 %v3963, 7
        %v3965 = vsub.s32 1, %v3964
        %v3966 = vrot.slane %v3444, %v3965
        %v3967 = vlaneseq
        %v3968 = vshrl.u32 %v3967, 7
        %v3969 = vsub.s32 2, %v3968
        %v3970 = vrot.slane %v3444, %v3969
        %v3971 = vlaneseq
        %v3972 = vshrl.u32 %v3971, 7
        %v3973 = vsub.s32 3, %v3972
        %v3974 = vrot.slane %v3444, %v3973
        %v3975 = vlaneseq
        %v3976 = vshrl.u32 %v3975, 7
        %v3977 = vsub.s32 4, %v3976
        %v3978 = vrot.slane %v3444, %v3977
        %v3979 = vlaneseq
        %v3980 = vshrl.u32 %v3979, 7
        %v3981 = vsub.s32 5, %v3980
        %v3982 = vrot.slane %v3444, %v3981
        %v3983 = vlaneseq
        %v3984 = vshrl.u32 %v3983, 7
        %v3985 = vsub.s32 6, %v3984
        %v3986 = vrot.slane %v3444, %v3985
        %v3987 = vlaneseq
        %v3988 = vshrl.u32 %v3987, 7
        %v3989 = vsub.s32 7, %v3988
        %v3990 = vrot.slane %v3444, %v3989
        %v3991 = vlaneseq
        %v3992 = vshrl.u32 %v3991, 7
        %v3993 = vsub.s32 0, %v3992
        %v3994 = vrot.slane %v3446, %v3993
        %v3995 = vlaneseq
        %v3996 = vshrl.u32 %v3995, 7
        %v3997 = vsub.s32 1, %v3996
        %v3998 = vrot.slane %v3446, %v3997
        %v3999 = vlaneseq
        %v4000 = vshrl.u32 %v3999, 7
        %v4001 = vsub.s32 2, %v4000
        %v4002 = vrot.slane %v3446, %v4001
        %v4003 = vlaneseq
        %v4004 = vshrl.u32 %v4003, 7
        %v4005 = vsub.s32 3, %v4004
        %v4006 = vrot.slane %v3446, %v4005
        %v4007 = vlaneseq
        %v4008 = vshrl.u32 %v4007, 7
        %v4009 = vsub.s32 4, %v4008
        %v4010 = vrot.slane %v3446, %v4009
        %v4011 = vlaneseq
        %v4012 = vshrl.u32 %v4011, 7
        %v4013 = vsub.s32 5, %v4012
        %v4014 = vrot.slane %v3446, %v4013
        %v4015 = vlaneseq
        %v4016 = vshrl.u32 %v4015, 7
        %v4017 = vsub.s32 6, %v4016
        %v4018 = vrot.slane %v3446, %v4017
        %v4019 = vlaneseq
        %v4020 = vshrl.u32 %v4019, 7
        %v4021 = vsub.s32 7, %v4020
        %v4022 = vrot.slane %v3446, %v4021
        %v4023 = vlaneseq
        %v4024 = vshrl.u32 %v4023, 7
        %v4025 = vsub.s32 0, %v4024
        %v4026 = vrot.slane %v3448, %v4025
        %v4027 = vlaneseq
        %v4028 = vshrl.u32 %v4027, 7
        %v4029 = vsub.s32 1, %v4028
        %v4030 = vrot.slane %v3448, %v4029
        %v4031 = vlaneseq
        %v4032 = vshrl.u32 %v4031, 7
        %v4033 = vsub.s32 2, %v4032
        %v4034 = vrot.slane %v3448, %v4033
        %v4035 = vlaneseq
        %v4036 = vshrl.u32 %v4035, 7
        %v4037 = vsub.s32 3, %v4036
        %v4038 = vrot.slane %v3448, %v4037
        %v4039 = vlaneseq
        %v4040 = vshrl.u32 %v4039, 7
        %v4041 = vsub.s32 4, %v4040
        %v4042 = vrot.slane %v3448, %v4041
        %v4043 = vlaneseq
        %v4044 = vshrl.u32 %v4043, 7
        %v4045 = vsub.s32 5, %v4044
        %v4046 = vrot.slane %v3448, %v4045
        %v4047 = vlaneseq
        %v4048 = vshrl.u32 %v4047, 7
        %v4049 = vsub.s32 6, %v4048
        %v4050 = vrot.slane %v3448, %v4049
        %v4051 = vlaneseq
        %v4052 = vshrl.u32 %v4051, 7
        %v4053 = vsub.s32 7, %v4052
        %v4054 = vrot.slane %v3448, %v4053
        %v4055 = vlaneseq
        %v4056 = vshrl.u32 %v4055, 7
        %v4057 = vsub.s32 0, %v4056
        %v4058 = vrot.slane %v3450, %v4057
        %v4059 = vlaneseq
        %v4060 = vshrl.u32 %v4059, 7
        %v4061 = vsub.s32 1, %v4060
        %v4062 = vrot.slane %v3450, %v4061
        %v4063 = vlaneseq
        %v4064 = vshrl.u32 %v4063, 7
        %v4065 = vsub.s32 2, %v4064
        %v4066 = vrot.slane %v3450, %v4065
        %v4067 = vlaneseq
        %v4068 = vshrl.u32 %v4067, 7
        %v4069 = vsub.s32 3, %v4068
        %v4070 = vrot.slane %v3450, %v4069
        %v4071 = vlaneseq
        %v4072 = vshrl.u32 %v4071, 7
        %v4073 = vsub.s32 4, %v4072
        %v4074 = vrot.slane %v3450, %v4073
        %v4075 = vlaneseq
        %v4076 = vshrl.u32 %v4075, 7
        %v4077 = vsub.s32 5, %v4076
        %v4078 = vrot.slane %v3450, %v4077
        %v4079 = vlaneseq
        %v4080 = vshrl.u32 %v4079, 7
        %v4081 = vsub.s32 6, %v4080
        %v4082 = vrot.slane %v3450, %v4081
        %v4083 = vlaneseq
        %v4084 = vshrl.u32 %v4083, 7
        %v4085 = vsub.s32 7, %v4084
        %v4086 = vrot.slane %v3450, %v4085
        %v4087 = vlaneseq
        %v4088 = vshrl.u32 %v4087, 7
        %v4089 = vsub.s32 0, %v4088
        %v4090 = vrot.slane %v3452, %v4089
        %v4091 = vlaneseq
        %v4092 = vshrl.u32 %v4091, 7
        %v4093 = vsub.s32 1, %v4092
        %v4094 = vrot.slane %v3452, %v4093
        %v4095 = vlaneseq
        %v4096 = vshrl.u32 %v4095, 7
        %v4097 = vsub.s32 2, %v4096
        %v4098 = vrot.slane %v3452, %v4097
        %v4099 = vlaneseq
        %v4100 = vshrl.u32 %v4099, 7
        %v4101 = vsub.s32 3, %v4100
        %v4102 = vrot.slane %v3452, %v4101
        %v4103 = vlaneseq
        %v4104 = vshrl.u32 %v4103, 7
        %v4105 = vsub.s32 4, %v4104
        %v4106 = vrot.slane %v3452, %v4105
        %v4107 = vlaneseq
        %v4108 = vshrl.u32 %v4107, 7
        %v4109 = vsub.s32 5, %v4108
        %v4110 = vrot.slane %v3452, %v4109
        %v4111 = vlaneseq
        %v4112 = vshrl.u32 %v4111, 7
        %v4113 = vsub.s32 6, %v4112
        %v4114 = vrot.slane %v3452, %v4113
        %v4115 = vlaneseq
        %v4116 = vshrl.u32 %v4115, 7
        %v4117 = vsub.s32 7, %v4116
        %v4118 = vrot.slane %v3452, %v4117
        %v4119 = vlaneseq
        %v4120 = vshrl.u32 %v4119, 7
        %v4121 = vsub.s32 0, %v4120
        %v4122 = vrot.slane %v3454, %v4121
        %v4123 = vlaneseq
        %v4124 = vshrl.u32 %v4123, 7
        %v4125 = vsub.s32 1, %v4124
        %v4126 = vrot.slane %v3454, %v4125
        %v4127 = vlaneseq
        %v4128 = vshrl.u32 %v4127, 7
        %v4129 = vsub.s32 2, %v4128
        %v4130 = vrot.slane %v3454, %v4129
        %v4131 = vlaneseq
        %v4132 = vshrl.u32 %v4131, 7
        %v4133 = vsub.s32 3, %v4132
        %v4134 = vrot.slane %v3454, %v4133
        %v4135 = vlaneseq
        %v4136 = vshrl.u32 %v4135, 7
        %v4137 = vsub.s32 4, %v4136
        %v4138 = vrot.slane %v3454, %v4137
        %v4139 = vlaneseq
        %v4140 = vshrl.u32 %v4139, 7
        %v4141 = vsub.s32 5, %v4140
        %v4142 = vrot.slane %v3454, %v4141
        %v4143 = vlaneseq
        %v4144 = vshrl.u32 %v4143, 7
        %v4145 = vsub.s32 6, %v4144
        %v4146 = vrot.slane %v3454, %v4145
        %v4147 = vlaneseq
        %v4148 = vshrl.u32 %v4147, 7
        %v4149 = vsub.s32 7, %v4148
        %v4150 = vrot.slane %v3454, %v4149
        %v4151 = vlaneseq
        %v4152 = vshrl.u32 %v4151, 7
        %v4153 = vsub.s32 0, %v4152
        %v4154 = vrot.slane %v3456, %v4153
        %v4155 = vlaneseq
        %v4156 = vshrl.u32 %v4155, 7
        %v4157 = vsub.s32 1, %v4156
        %v4158 = vrot.slane %v3456, %v4157
        %v4159 = vlaneseq
        %v4160 = vshrl.u32 %v4159, 7
        %v4161 = vsub.s32 2, %v4160
        %v4162 = vrot.slane %v3456, %v4161
        %v4163 = vlaneseq
        %v4164 = vshrl.u32 %v4163, 7
        %v4165 = vsub.s32 3, %v4164
        %v4166 = vrot.slane %v3456, %v4165
        %v4167 = vlaneseq
        %v4168 = vshrl.u32 %v4167, 7
        %v4169 = vsub.s32 4, %v4168
        %v4170 = vrot.slane %v3456, %v4169
        %v4171 = vlaneseq
        %v4172 = vshrl.u32 %v4171, 7
        %v4173 = vsub.s32 5, %v4172
        %v4174 = vrot.slane %v3456, %v4173
        %v4175 = vlaneseq
        %v4176 = vshrl.u32 %v4175, 7
        %v4177 = vsub.s32 6, %v4176
        %v4178 = vrot.slane %v3456, %v4177
        %v4179 = vlaneseq
        %v4180 = vshrl.u32 %v4179, 7
        %v4181 = vsub.s32 7, %v4180
        %v4182 = vrot.slane %v3456, %v4181
        %v4183 = vlaneseq
        %v4184 = vshrl.u32 %v4183, 7
        %v4185 = vsub.s32 0, %v4184
        %v4186 = vrot.slane %v3458, %v4185
        %v4187 = vlaneseq
        %v4188 = vshrl.u32 %v4187, 7
        %v4189 = vsub.s32 1, %v4188
        %v4190 = vrot.slane %v3458, %v4189
        %v4191 = vlaneseq
        %v4192 = vshrl.u32 %v4191, 7
        %v4193 = vsub.s32 2, %v4192
        %v4194 = vrot.slane %v3458, %v4193
        %v4195 = vlaneseq
        %v4196 = vshrl.u32 %v4195, 7
        %v4197 = vsub.s32 3, %v4196
        %v4198 = vrot.slane %v3458, %v4197
        %v4199 = vlaneseq
        %v4200 = vshrl.u32 %v4199, 7
        %v4201 = vsub.s32 4, %v4200
        %v4202 = vrot.slane %v3458, %v4201
        %v4203 = vlaneseq
        %v4204 = vshrl.u32 %v4203, 7
        %v4205 = vsub.s32 5, %v4204
        %v4206 = vrot.slane %v3458, %v4205
        %v4207 = vlaneseq
        %v4208 = vshrl.u32 %v4207, 7
        %v4209 = vsub.s32 6, %v4208
        %v4210 = vrot.slane %v3458, %v4209
        %v4211 = vlaneseq
        %v4212 = vshrl.u32 %v4211, 7
        %v4213 = vsub.s32 7, %v4212
        %v4214 = vrot.slane %v3458, %v4213
        %v4215 = vlaneseq
        %v4216 = vshrl.u32 %v4215, 7
        %v4217 = vsub.s32 0, %v4216
        %v4218 = vrot.slane %v3460, %v4217
        %v4219 = vlaneseq
        %v4220 = vshrl.u32 %v4219, 7
        %v4221 = vsub.s32 1, %v4220
        %v4222 = vrot.slane %v3460, %v4221
        %v4223 = vlaneseq
        %v4224 = vshrl.u32 %v4223, 7
        %v4225 = vsub.s32 2, %v4224
        %v4226 = vrot.slane %v3460, %v4225
        %v4227 = vlaneseq
        %v4228 = vshrl.u32 %v4227, 7
        %v4229 = vsub.s32 3, %v4228
        %v4230 = vrot.slane %v3460, %v4229
        %v4231 = vlaneseq
        %v4232 = vshrl.u32 %v4231, 7
        %v4233 = vsub.s32 4, %v4232
        %v4234 = vrot.slane %v3460, %v4233
        %v4235 = vlaneseq
        %v4236 = vshrl.u32 %v4235, 7
        %v4237 = vsub.s32 5, %v4236
        %v4238 = vrot.slane %v3460, %v4237
        %v4239 = vlaneseq
        %v4240 = vshrl.u32 %v4239, 7
        %v4241 = vsub.s32 6, %v4240
        %v4242 = vrot.slane %v3460, %v4241
        %v4243 = vlaneseq
        %v4244 = vshrl.u32 %v4243, 7
        %v4245 = vsub.s32 7, %v4244
        %v4246 = vrot.slane %v3460, %v4245
        %v4247 = vlaneseq
        %v4248 = vshrl.u32 %v4247, 7
        %v4249 = vsub.s32 0, %v4248
        %v4250 = vrot.slane %v3462, %v4249
        %v4251 = vlaneseq
        %v4252 = vshrl.u32 %v4251, 7
        %v4253 = vsub.s32 1, %v4252
        %v4254 = vrot.slane %v3462, %v4253
        %v4255 = vlaneseq
        %v4256 = vshrl.u32 %v4255, 7
        %v4257 = vsub.s32 2, %v4256
        %v4258 = vrot.slane %v3462, %v4257
        %v4259 = vlaneseq
        %v4260 = vshrl.u32 %v4259, 7
        %v4261 = vsub.s32 3, %v4260
        %v4262 = vrot.slane %v3462, %v4261
        %v4263 = vlaneseq
        %v4264 = vshrl.u32 %v4263, 7
        %v4265 = vsub.s32 4, %v4264
        %v4266 = vrot.slane %v3462, %v4265
        %v4267 = vlaneseq
        %v4268 = vshrl.u32 %v4267, 7
        %v4269 = vsub.s32 5, %v4268
        %v4270 = vrot.slane %v3462, %v4269
        %v4271 = vlaneseq
        %v4272 = vshrl.u32 %v4271, 7
        %v4273 = vsub.s32 6, %v4272
        %v4274 = vrot.slane %v3462, %v4273
        %v4275 = vlaneseq
        %v4276 = vshrl.u32 %v4275, 7
        %v4277 = vsub.s32 7, %v4276
        %v4278 = vrot.slane %v3462, %v4277
        %v4279 = vlaneseq
        %v4280 = vshrl.u32 %v4279, 7
        %v4281 = vsub.s32 0, %v4280
        %v4282 = vrot.slane %v3464, %v4281
        %v4283 = vlaneseq
        %v4284 = vshrl.u32 %v4283, 7
        %v4285 = vsub.s32 1, %v4284
        %v4286 = vrot.slane %v3464, %v4285
        %v4287 = vlaneseq
        %v4288 = vshrl.u32 %v4287, 7
        %v4289 = vsub.s32 2, %v4288
        %v4290 = vrot.slane %v3464, %v4289
        %v4291 = vlaneseq
        %v4292 = vshrl.u32 %v4291, 7
        %v4293 = vsub.s32 3, %v4292
        %v4294 = vrot.slane %v3464, %v4293
        %v4295 = vlaneseq
        %v4296 = vshrl.u32 %v4295, 7
        %v4297 = vsub.s32 4, %v4296
        %v4298 = vrot.slane %v3464, %v4297
        %v4299 = vlaneseq
        %v4300 = vshrl.u32 %v4299, 7
        %v4301 = vsub.s32 5, %v4300
        %v4302 = vrot.slane %v3464, %v4301
        %v4303 = vlaneseq
        %v4304 = vshrl.u32 %v4303, 7
        %v4305 = vsub.s32 6, %v4304
        %v4306 = vrot.slane %v3464, %v4305
        %v4307 = vlaneseq
        %v4308 = vshrl.u32 %v4307, 7
        %v4309 = vsub.s32 7, %v4308
        %v4310 = vrot.slane %v3464, %v4309
        %v4311 = vlaneseq
        %v4312 = vshrl.u32 %v4311, 7
        %v4313 = vsub.s32 0, %v4312
        %v4314 = vrot.slane %v3466, %v4313
        %v4315 = vlaneseq
        %v4316 = vshrl.u32 %v4315, 7
        %v4317 = vsub.s32 1, %v4316
        %v4318 = vrot.slane %v3466, %v4317
        %v4319 = vlaneseq
        %v4320 = vshrl.u32 %v4319, 7
        %v4321 = vsub.s32 2, %v4320
        %v4322 = vrot.slane %v3466, %v4321
        %v4323 = vlaneseq
        %v4324 = vshrl.u32 %v4323, 7
        %v4325 = vsub.s32 3, %v4324
        %v4326 = vrot.slane %v3466, %v4325
        %v4327 = vlaneseq
        %v4328 = vshrl.u32 %v4327, 7
        %v4329 = vsub.s32 4, %v4328
        %v4330 = vrot.slane %v3466, %v4329
        %v4331 = vlaneseq
        %v4332 = vshrl.u32 %v4331, 7
        %v4333 = vsub.s32 5, %v4332
        %v4334 = vrot.slane %v3466, %v4333
        %v4335 = vlaneseq
        %v4336 = vshrl.u32 %v4335, 7
        %v4337 = vsub.s32 6, %v4336
        %v4338 = vrot.slane %v3466, %v4337
        %v4339 = vlaneseq
        %v4340 = vshrl.u32 %v4339, 7
        %v4341 = vsub.s32 7, %v4340
        %v4342 = vrot.slane %v3466, %v4341
        %v4343 = vlaneseq
        %v4344 = vshrl.u32 %v4343, 7
        %v4345 = vsub.s32 0, %v4344
        %v4346 = vrot.slane %v3468, %v4345
        %v4347 = vlaneseq
        %v4348 = vshrl.u32 %v4347, 7
        %v4349 = vsub.s32 1, %v4348
        %v4350 = vrot.slane %v3468, %v4349
        %v4351 = vlaneseq
        %v4352 = vshrl.u32 %v4351, 7
        %v4353 = vsub.s32 2, %v4352
        %v4354 = vrot.slane %v3468, %v4353
        %v4355 = vlaneseq
        %v4356 = vshrl.u32 %v4355, 7
        %v4357 = vsub.s32 3, %v4356
        %v4358 = vrot.slane %v3468, %v4357
        %v4359 = vlaneseq
        %v4360 = vshrl.u32 %v4359, 7
        %v4361 = vsub.s32 4, %v4360
        %v4362 = vrot.slane %v3468, %v4361
        %v4363 = vlaneseq
        %v4364 = vshrl.u32 %v4363, 7
        %v4365 = vsub.s32 5, %v4364
        %v4366 = vrot.slane %v3468, %v4365
        %v4367 = vlaneseq
        %v4368 = vshrl.u32 %v4367, 7
        %v4369 = vsub.s32 6, %v4368
        %v4370 = vrot.slane %v3468, %v4369
        %v4371 = vlaneseq
        %v4372 = vshrl.u32 %v4371, 7
        %v4373 = vsub.s32 7, %v4372
        %v4374 = vrot.slane %v3468, %v4373
        %v4375 = vlaneseq
        %v4376 = vshrl.u32 %v4375, 7
        %v4377 = vsub.s32 0, %v4376
        %v4378 = vrot.slane %v3470, %v4377
        %v4379 = vlaneseq
        %v4380 = vshrl.u32 %v4379, 7
        %v4381 = vsub.s32 1, %v4380
        %v4382 = vrot.slane %v3470, %v4381
        %v4383 = vlaneseq
        %v4384 = vshrl.u32 %v4383, 7
        %v4385 = vsub.s32 2, %v4384
        %v4386 = vrot.slane %v3470, %v4385
        %v4387 = vlaneseq
        %v4388 = vshrl.u32 %v4387, 7
        %v4389 = vsub.s32 3, %v4388
        %v4390 = vrot.slane %v3470, %v4389
        %v4391 = vlaneseq
        %v4392 = vshrl.u32 %v4391, 7
        %v4393 = vsub.s32 4, %v4392
        %v4394 = vrot.slane %v3470, %v4393
        %v4395 = vlaneseq
        %v4396 = vshrl.u32 %v4395, 7
        %v4397 = vsub.s32 5, %v4396
        %v4398 = vrot.slane %v3470, %v4397
        %v4399 = vlaneseq
        %v4400 = vshrl.u32 %v4399, 7
        %v4401 = vsub.s32 6, %v4400
        %v4402 = vrot.slane %v3470, %v4401
        %v4403 = vlaneseq
        %v4404 = vshrl.u32 %v4403, 7
        %v4405 = vsub.s32 7, %v4404
        %v4406 = vrot.slane %v3470, %v4405
        %v4407 = vlaneseq
        %v4408 = vshrl.u32 %v4407, 7
        %v4409 = vsub.s32 0, %v4408
        %v4410 = vrot.slane %v3472, %v4409
        %v4411 = vlaneseq
        %v4412 = vshrl.u32 %v4411, 7
        %v4413 = vsub.s32 1, %v4412
        %v4414 = vrot.slane %v3472, %v4413
        %v4415 = vlaneseq
        %v4416 = vshrl.u32 %v4415, 7
        %v4417 = vsub.s32 2, %v4416
        %v4418 = vrot.slane %v3472, %v4417
        %v4419 = vlaneseq
        %v4420 = vshrl.u32 %v4419, 7
        %v4421 = vsub.s32 3, %v4420
        %v4422 = vrot.slane %v3472, %v4421
        %v4423 = vlaneseq
        %v4424 = vshrl.u32 %v4423, 7
        %v4425 = vsub.s32 4, %v4424
        %v4426 = vrot.slane %v3472, %v4425
        %v4427 = vlaneseq
        %v4428 = vshrl.u32 %v4427, 7
        %v4429 = vsub.s32 5, %v4428
        %v4430 = vrot.slane %v3472, %v4429
        %v4431 = vlaneseq
        %v4432 = vshrl.u32 %v4431, 7
        %v4433 = vsub.s32 6, %v4432
        %v4434 = vrot.slane %v3472, %v4433
        %v4435 = vlaneseq
        %v4436 = vshrl.u32 %v4435, 7
        %v4437 = vsub.s32 7, %v4436
        %v4438 = vrot.slane %v3472, %v4437
        %v4439 = vlaneseq
        %v4440 = vshrl.u32 %v4439, 7
        %v4441 = vsub.s32 0, %v4440
        %v4442 = vrot.slane %v3474, %v4441
        %v4443 = vlaneseq
        %v4444 = vshrl.u32 %v4443, 7
        %v4445 = vsub.s32 1, %v4444
        %v4446 = vrot.slane %v3474, %v4445
        %v4447 = vlaneseq
        %v4448 = vshrl.u32 %v4447, 7
        %v4449 = vsub.s32 2, %v4448
        %v4450 = vrot.slane %v3474, %v4449
        %v4451 = vlaneseq
        %v4452 = vshrl.u32 %v4451, 7
        %v4453 = vsub.s32 3, %v4452
        %v4454 = vrot.slane %v3474, %v4453
        %v4455 = vlaneseq
        %v4456 = vshrl.u32 %v4455, 7
        %v4457 = vsub.s32 4, %v4456
        %v4458 = vrot.slane %v3474, %v4457
        %v4459 = vlaneseq
        %v4460 = vshrl.u32 %v4459, 7
        %v4461 = vsub.s32 5, %v4460
        %v4462 = vrot.slane %v3474, %v4461
        %v4463 = vlaneseq
        %v4464 = vshrl.u32 %v4463, 7
        %v4465 = vsub.s32 6, %v4464
        %v4466 = vrot.slane %v3474, %v4465
        %v4467 = vlaneseq
        %v4468 = vshrl.u32 %v4467, 7
        %v4469 = vsub.s32 7, %v4468
        %v4470 = vrot.slane %v3474, %v4469
        %v4471 = vlaneseq
        %v4472 = vshrl.u32 %v4471, 7
        %v4473 = vsub.s32 0, %v4472
        %v4474 = vrot.slane %v3476, %v4473
        %v4475 = vlaneseq
        %v4476 = vshrl.u32 %v4475, 7
        %v4477 = vsub.s32 1, %v4476
        %v4478 = vrot.slane %v3476, %v4477
        %v4479 = vlaneseq
        %v4480 = vshrl.u32 %v4479, 7
        %v4481 = vsub.s32 2, %v4480
        %v4482 = vrot.slane %v3476, %v4481
        %v4483 = vlaneseq
        %v4484 = vshrl.u32 %v4483, 7
        %v4485 = vsub.s32 3, %v4484
        %v4486 = vrot.slane %v3476, %v4485
        %v4487 = vlaneseq
        %v4488 = vshrl.u32 %v4487, 7
        %v4489 = vsub.s32 4, %v4488
        %v4490 = vrot.slane %v3476, %v4489
        %v4491 = vlaneseq
        %v4492 = vshrl.u32 %v4491, 7
        %v4493 = vsub.s32 5, %v4492
        %v4494 = vrot.slane %v3476, %v4493
        %v4495 = vlaneseq
        %v4496 = vshrl.u32 %v4495, 7
        %v4497 = vsub.s32 6, %v4496
        %v4498 = vrot.slane %v3476, %v4497
        %v4499 = vlaneseq
        %v4500 = vshrl.u32 %v4499, 7
        %v4501 = vsub.s32 7, %v4500
        %v4502 = vrot.slane %v3476, %v4501
        %v4503 = vlaneseq
        %v4504 = vshrl.u32 %v4503, 7
        %v4505 = vsub.s32 0, %v4504
        %v4506 = vrot.slane %v3478, %v4505
        %v4507 = vlaneseq
        %v4508 = vshrl.u32 %v4507, 7
        %v4509 = vsub.s32 1, %v4508
        %v4510 = vrot.slane %v3478, %v4509
        %v4511 = vlaneseq
        %v4512 = vshrl.u32 %v4511, 7
        %v4513 = vsub.s32 2, %v4512
        %v4514 = vrot.slane %v3478, %v4513
        %v4515 = vlaneseq
        %v4516 = vshrl.u32 %v4515, 7
        %v4517 = vsub.s32 3, %v4516
        %v4518 = vrot.slane %v3478, %v4517
        %v4519 = vlaneseq
        %v4520 = vshrl.u32 %v4519, 7
        %v4521 = vsub.s32 4, %v4520
        %v4522 = vrot.slane %v3478, %v4521
        %v4523 = vlaneseq
        %v4524 = vshrl.u32 %v4523, 7
        %v4525 = vsub.s32 5, %v4524
        %v4526 = vrot.slane %v3478, %v4525
        %v4527 = vlaneseq
        %v4528 = vshrl.u32 %v4527, 7
        %v4529 = vsub.s32 6, %v4528
        %v4530 = vrot.slane %v3478, %v4529
        %v4531 = vlaneseq
        %v4532 = vshrl.u32 %v4531, 7
        %v4533 = vsub.s32 7, %v4532
        %v4534 = vrot.slane %v3478, %v4533
        %v4791 = vmul.f32 %v3514, %v237
        %v4792 = vmul.f32 %v3518, %v238
        %v4793 = vmul.f32 %v3522, %v239
        %v4794 = vmul.f32 %v3526, %v240
        %v4795 = vmul.f32 %v3530, %v241
        %v4796 = vmul.f32 %v3534, %v242
        %v4797 = vmul.f32 %v3538, %v243
        %v4798 = vmul.f32 %v3542, %v244
        %v4799 = vmul.f32 %v3546, %v245
        %v4800 = vmul.f32 %v3550, %v246
        %v4801 = vmul.f32 %v3554, %v247
        %v4802 = vmul.f32 %v3558, %v248
        %v4803 = vmul.f32 %v3562, %v249
        %v4804 = vmul.f32 %v3566, %v250
        %v4805 = vmul.f32 %v3570, %v251
        %v4806 = vmul.f32 %v3574, %v252
        %v4807 = vmul.f32 %v3578, %v253
        %v4808 = vmul.f32 %v3582, %v254
        %v4809 = vmul.f32 %v3586, %v255
        %v4810 = vmul.f32 %v3590, %v256
        %v4811 = vmul.f32 %v3594, %v257
        %v4812 = vmul.f32 %v3598, %v258
        %v4813 = vmul.f32 %v3602, %v259
        %v4814 = vmul.f32 %v3606, %v260
        %v4815 = vmul.f32 %v3610, %v261
        %v4816 = vmul.f32 %v3614, %v262
        %v4817 = vmul.f32 %v3618, %v263
        %v4818 = vmul.f32 %v3622, %v264
        %v4819 = vmul.f32 %v3626, %v265
        %v4820 = vmul.f32 %v3630, %v266
        %v4821 = vmul.f32 %v3634, %v267
        %v4822 = vmul.f32 %v3638, %v268
        %v4823 = vmul.f32 %v3642, %v269
        %v4824 = vmul.f32 %v3646, %v270
        %v4825 = vmul.f32 %v3650, %v271
        %v4826 = vmul.f32 %v3654, %v272
        %v4827 = vmul.f32 %v3658, %v273
        %v4828 = vmul.f32 %v3662, %v274
        %v4829 = vmul.f32 %v3666, %v275
        %v4830 = vmul.f32 %v3670, %v276
        %v4831 = vmul.f32 %v3674, %v277
        %v4832 = vmul.f32 %v3678, %v278
        %v4833 = vmul.f32 %v3682, %v279
        %v4834 = vmul.f32 %v3686, %v280
        %v4835 = vmul.f32 %v3690, %v281
        %v4836 = vmul.f32 %v3694, %v282
        %v4837 = vmul.f32 %v3698, %v283
        %v4838 = vmul.f32 %v3702, %v284
        %v4839 = vmul.f32 %v3706, %v285
        %v4840 = vmul.f32 %v3710, %v286
        %v4841 = vmul.f32 %v3714, %v287
        %v4842 = vmul.f32 %v3718, %v288
        %v4843 = vmul.f32 %v3722, %v289
        %v4844 = vmul.f32 %v3726, %v290
        %v4845 = vmul.f32 %v3730, %v291
        %v4846 = vmul.f32 %v3734, %v292
        %v4847 = vmul.f32 %v3738, %v293
        %v4848 = vmul.f32 %v3742, %v294
        %v4849 = vmul.f32 %v3746, %v295
        %v4850 = vmul.f32 %v3750, %v296
        %v4851 = vmul.f32 %v3754, %v297
        %v4852 = vmul.f32 %v3758, %v298
        %v4853 = vmul.f32 %v3762, %v299
        %v4854 = vmul.f32 %v3766, %v300
        %v4855 = vmul.f32 %v3770, %v301
        %v4856 = vmul.f32 %v3774, %v302
        %v4857 = vmul.f32 %v3778, %v303
        %v4858 = vmul.f32 %v3782, %v304
        %v4859 = vmul.f32 %v3786, %v305
        %v4860 = vmul.f32 %v3790, %v306
        %v4861 = vmul.f32 %v3794, %v307
        %v4862 = vmul.f32 %v3798, %v308
        %v4863 = vmul.f32 %v3802, %v309
        %v4864 = vmul.f32 %v3806, %v310
        %v4865 = vmul.f32 %v3810, %v311
        %v4866 = vmul.f32 %v3814, %v312
        %v4867 = vmul.f32 %v3818, %v313
        %v4868 = vmul.f32 %v3822, %v314
        %v4869 = vmul.f32 %v3826, %v315
        %v4870 = vmul.f32 %v3830, %v316
        %v4871 = vmul.f32 %v3834, %v317
        %v4872 = vmul.f32 %v3838, %v318
        %v4873 = vmul.f32 %v3842, %v319
        %v4874 = vmul.f32 %v3846, %v320
        %v4875 = vmul.f32 %v3850, %v321
        %v4876 = vmul.f32 %v3854, %v322
        %v4877 = vmul.f32 %v3858, %v323
        %v4878 = vmul.f32 %v3862, %v324
        %v4879 = vmul.f32 %v3866, %v325
        %v4880 = vmul.f32 %v3870, %v326
        %v4881 = vmul.f32 %v3874, %v327
        %v4882 = vmul.f32 %v3878, %v328
        %v4883 = vmul.f32 %v3882, %v329
        %v4884 = vmul.f32 %v3886, %v330
        %v4885 = vmul.f32 %v3890, %v331
        %v4886 = vmul.f32 %v3894, %v332
        %v4887 = vmul.f32 %v3898, %v333
        %v4888 = vmul.f32 %v3902, %v334
        %v4889 = vmul.f32 %v3906, %v335
        %v4890 = vmul.f32 %v3910, %v336
        %v4891 = vmul.f32 %v3914, %v337
        %v4892 = vmul.f32 %v3918, %v338
        %v4893 = vmul.f32 %v3922, %v339
        %v4894 = vmul.f32 %v3926, %v340
        %v4895 = vmul.f32 %v3930, %v341
        %v4896 = vmul.f32 %v3934, %v342
        %v4897 = vmul.f32 %v3938, %v343
        %v4898 = vmul.f32 %v3942, %v344
        %v4899 = vmul.f32 %v3946, %v345
        %v4900 = vmul.f32 %v3950, %v346
        %v4901 = vmul.f32 %v3954, %v347
        %v4902 = vmul.f32 %v3958, %v348
        %v4903 = vmul.f32 %v3962, %v349
        %v4904 = vmul.f32 %v3966, %v350
        %v4905 = vmul.f32 %v3970, %v351
        %v4906 = vmul.f32 %v3974, %v352
        %v4907 = vmul.f32 %v3978, %v353
        %v4908 = vmul.f32 %v3982, %v354
        %v4909 = vmul.f32 %v3986, %v355
        %v4910 = vmul.f32 %v3990, %v356
        %v4911 = vmul.f32 %v3994, %v357
        %v4912 = vmul.f32 %v3998, %v358
        %v4913 = vmul.f32 %v4002, %v359
        %v4914 = vmul.f32 %v4006, %v360
        %v4915 = vmul.f32 %v4010, %v361
        %v4916 = vmul.f32 %v4014, %v362
        %v4917 = vmul.f32 %v4018, %v363
        %v4918 = vmul.f32 %v4022, %v364
        %v4919 = vmul.f32 %v4026, %v365
        %v4920 = vmul.f32 %v4030, %v366
        %v4921 = vmul.f32 %v4034, %v367
        %v4922 = vmul.f32 %v4038, %v368
        %v4923 = vmul.f32 %v4042, %v369
        %v4924 = vmul.f32 %v4046, %v370
        %v4925 = vmul.f32 %v4050, %v371
        %v4926 = vmul.f32 %v4054, %v372
        %v4927 = vmul.f32 %v4058, %v373
        %v4928 = vmul.f32 %v4062, %v374
        %v4929 = vmul.f32 %v4066, %v375
        %v4930 = vmul.f32 %v4070, %v376
        %v4931 = vmul.f32 %v4074, %v377
        %v4932 = vmul.f32 %v4078, %v378
        %v4933 = vmul.f32 %v4082, %v379
        %v4934 = vmul.f32 %v4086, %v380
        %v4935 = vmul.f32 %v4090, %v381
        %v4936 = vmul.f32 %v4094, %v382
        %v4937 = vmul.f32 %v4098, %v383
        %v4938 = vmul.f32 %v4102, %v384
        %v4939 = vmul.f32 %v4106, %v385
        %v4940 = vmul.f32 %v4110, %v386
        %v4941 = vmul.f32 %v4114, %v387
        %v4942 = vmul.f32 %v4118, %v388
        %v4943 = vmul.f32 %v4122, %v389
        %v4944 = vmul.f32 %v4126, %v390
        %v4945 = vmul.f32 %v4130, %v391
        %v4946 = vmul.f32 %v4134, %v392
        %v4947 = vmul.f32 %v4138, %v393
        %v4948 = vmul.f32 %v4142, %v394
        %v4949 = vmul.f32 %v4146, %v395
        %v4950 = vmul.f32 %v4150, %v396
        %v4951 = vmul.f32 %v4154, %v397
        %v4952 = vmul.f32 %v4158, %v398
        %v4953 = vmul.f32 %v4162, %v399
        %v4954 = vmul.f32 %v4166, %v400
        %v4955 = vmul.f32 %v4170, %v401
        %v4956 = vmul.f32 %v4174, %v402
        %v4957 = vmul.f32 %v4178, %v403
        %v4958 = vmul.f32 %v4182, %v404
        %v4959 = vmul.f32 %v4186, %v405
        %v4960 = vmul.f32 %v4190, %v406
        %v4961 = vmul.f32 %v4194, %v407
        %v4962 = vmul.f32 %v4198, %v408
        %v4963 = vmul.f32 %v4202, %v409
        %v4964 = vmul.f32 %v4206, %v410
        %v4965 = vmul.f32 %v4210, %v411
        %v4966 = vmul.f32 %v4214, %v412
        %v4967 = vmul.f32 %v4218, %v413
        %v4968 = vmul.f32 %v4222, %v414
        %v4969 = vmul.f32 %v4226, %v415
        %v4970 = vmul.f32 %v4230, %v416
        %v4971 = vmul.f32 %v4234, %v417
        %v4972 = vmul.f32 %v4238, %v418
        %v4973 = vmul.f32 %v4242, %v419
        %v4974 = vmul.f32 %v4246, %v420
        %v4975 = vmul.f32 %v4250, %v421
        %v4976 = vmul.f32 %v4254, %v422
        %v4977 = vmul.f32 %v4258, %v423
        %v4978 = vmul.f32 %v4262, %v424
        %v4979 = vmul.f32 %v4266, %v425
        %v4980 = vmul.f32 %v4270, %v426
        %v4981 = vmul.f32 %v4274, %v427
        %v4982 = vmul.f32 %v4278, %v428
        %v4983 = vmul.f32 %v4282, %v429
        %v4984 = vmul.f32 %v4286, %v430
        %v4985 = vmul.f32 %v4290, %v431
        %v4986 = vmul.f32 %v4294, %v432
        %v4987 = vmul.f32 %v4298, %v433
        %v4988 = vmul.f32 %v4302, %v434
        %v4989 = vmul.f32 %v4306, %v435
        %v4990 = vmul.f32 %v4310, %v436
        %v4991 = vmul.f32 %v4314, %v437
        %v4992 = vmul.f32 %v4318, %v438
        %v4993 = vmul.f32 %v4322, %v439
        %v4994 = vmul.f32 %v4326, %v440
        %v4995 = vmul.f32 %v4330, %v441
        %v4996 = vmul.f32 %v4334, %v442
        %v4997 = vmul.f32 %v4338, %v443
        %v4998 = vmul.f32 %v4342, %v444
        %v4999 = vmul.f32 %v4346, %v445
        %v5000 = vmul.f32 %v4350, %v446
        %v5001 = vmul.f32 %v4354, %v447
        %v5002 = vmul.f32 %v4358, %v448
        %v5003 = vmul.f32 %v4362, %v449
        %v5004 = vmul.f32 %v4366, %v450
        %v5005 = vmul.f32 %v4370, %v451
        %v5006 = vmul.f32 %v4374, %v452
        %v5007 = vmul.f32 %v4378, %v453
        %v5008 = vmul.f32 %v4382, %v454
        %v5009 = vmul.f32 %v4386, %v455
        %v5010 = vmul.f32 %v4390, %v456
        %v5011 = vmul.f32 %v4394, %v457
        %v5012 = vmul.f32 %v4398, %v458
        %v5013 = vmul.f32 %v4402, %v459
        %v5014 = vmul.f32 %v4406, %v460
        %v5015 = vmul.f32 %v4410, %v461
        %v5016 = vmul.f32 %v4414, %v462
        %v5017 = vmul.f32 %v4418, %v463
        %v5018 = vmul.f32 %v4422, %v464
        %v5019 = vmul.f32 %v4426, %v465
        %v5020 = vmul.f32 %v4430, %v466
        %v5021 = vmul.f32 %v4434, %v467
        %v5022 = vmul.f32 %v4438, %v468
        %v5023 = vmul.f32 %v4442, %v469
        %v5024 = vmul.f32 %v4446, %v470
        %v5025 = vmul.f32 %v4450, %v471
        %v5026 = vmul.f32 %v4454, %v472
        %v5027 = vmul.f32 %v4458, %v473
        %v5028 = vmul.f32 %v4462, %v474
        %v5029 = vmul.f32 %v4466, %v475
        %v5030 = vmul.f32 %v4470, %v476
        %v5031 = vmul.f32 %v4474, %v477
        %v5032 = vmul.f32 %v4478, %v478
        %v5033 = vmul.f32 %v4482, %v479
        %v5034 = vmul.f32 %v4486, %v480
        %v5035 = vmul.f32 %v4490, %v481
        %v5036 = vmul.f32 %v4494, %v482
        %v5037 = vmul.f32 %v4498, %v483
        %v5038 = vmul.f32 %v4502, %v484
        %v5039 = vmul.f32 %v4506, %v485
        %v5040 = vmul.f32 %v4510, %v486
        %v5041 = vmul.f32 %v4514, %v487
        %v5042 = vmul.f32 %v4518, %v488
        %v5043 = vmul.f32 %v4522, %v489
        %v5044 = vmul.f32 %v4526, %v490
        %v5045 = vmul.f32 %v4530, %v491
        %v5046 = vmul.f32 %v4534, %v492
        %v5047 = vmul.f32 %v3514, %v493
        %v5048 = vmul.f32 %v3518, %v494
        %v5049 = vmul.f32 %v3522, %v495
        %v5050 = vmul.f32 %v3526, %v496
        %v5051 = vmul.f32 %v3530, %v497
        %v5052 = vmul.f32 %v3534, %v498
        %v5053 = vmul.f32 %v3538, %v499
        %v5054 = vmul.f32 %v3542, %v500
        %v5055 = vmul.f32 %v3546, %v501
        %v5056 = vmul.f32 %v3550, %v502
        %v5057 = vmul.f32 %v3554, %v503
        %v5058 = vmul.f32 %v3558, %v504
        %v5059 = vmul.f32 %v3562, %v505
        %v5060 = vmul.f32 %v3566, %v506
        %v5061 = vmul.f32 %v3570, %v507
        %v5062 = vmul.f32 %v3574, %v508
        %v5063 = vmul.f32 %v3578, %v509
        %v5064 = vmul.f32 %v3582, %v510
        %v5065 = vmul.f32 %v3586, %v511
        %v5066 = vmul.f32 %v3590, %v512
        %v5067 = vmul.f32 %v3594, %v513
        %v5068 = vmul.f32 %v3598, %v514
        %v5069 = vmul.f32 %v3602, %v515
        %v5070 = vmul.f32 %v3606, %v516
        %v5071 = vmul.f32 %v3610, %v517
        %v5072 = vmul.f32 %v3614, %v518
        %v5073 = vmul.f32 %v3618, %v519
        %v5074 = vmul.f32 %v3622, %v520
        %v5075 = vmul.f32 %v3626, %v521
        %v5076 = vmul.f32 %v3630, %v522
        %v5077 = vmul.f32 %v3634, %v523
        %v5078 = vmul.f32 %v3638, %v524
        %v5079 = vmul.f32 %v3642, %v525
        %v5080 = vmul.f32 %v3646, %v526
        %v5081 = vmul.f32 %v3650, %v527
        %v5082 = vmul.f32 %v3654, %v528
        %v5083 = vmul.f32 %v3658, %v529
        %v5084 = vmul.f32 %v3662, %v530
        %v5085 = vmul.f32 %v3666, %v531
        %v5086 = vmul.f32 %v3670, %v532
        %v5087 = vmul.f32 %v3674, %v533
        %v5088 = vmul.f32 %v3678, %v534
        %v5089 = vmul.f32 %v3682, %v535
        %v5090 = vmul.f32 %v3686, %v536
        %v5091 = vmul.f32 %v3690, %v537
        %v5092 = vmul.f32 %v3694, %v538
        %v5093 = vmul.f32 %v3698, %v539
        %v5094 = vmul.f32 %v3702, %v540
        %v5095 = vmul.f32 %v3706, %v541
        %v5096 = vmul.f32 %v3710, %v542
        %v5097 = vmul.f32 %v3714, %v543
        %v5098 = vmul.f32 %v3718, %v544
        %v5099 = vmul.f32 %v3722, %v545
        %v5100 = vmul.f32 %v3726, %v546
        %v5101 = vmul.f32 %v3730, %v547
        %v5102 = vmul.f32 %v3734, %v548
        %v5103 = vmul.f32 %v3738, %v549
        %v5104 = vmul.f32 %v3742, %v550
        %v5105 = vmul.f32 %v3746, %v551
        %v5106 = vmul.f32 %v3750, %v552
        %v5107 = vmul.f32 %v3754, %v553
        %v5108 = vmul.f32 %v3758, %v554
        %v5109 = vmul.f32 %v3762, %v555
        %v5110 = vmul.f32 %v3766, %v556
        %v5111 = vmul.f32 %v3770, %v557
        %v5112 = vmul.f32 %v3774, %v558
        %v5113 = vmul.f32 %v3778, %v559
        %v5114 = vmul.f32 %v3782, %v560
        %v5115 = vmul.f32 %v3786, %v561
        %v5116 = vmul.f32 %v3790, %v562
        %v5117 = vmul.f32 %v3794, %v563
        %v5118 = vmul.f32 %v3798, %v564
        %v5119 = vmul.f32 %v3802, %v565
        %v5120 = vmul.f32 %v3806, %v566
        %v5121 = vmul.f32 %v3810, %v567
        %v5122 = vmul.f32 %v3814, %v568
        %v5123 = vmul.f32 %v3818, %v569
        %v5124 = vmul.f32 %v3822, %v570
        %v5125 = vmul.f32 %v3826, %v571
        %v5126 = vmul.f32 %v3830, %v572
        %v5127 = vmul.f32 %v3834, %v573
        %v5128 = vmul.f32 %v3838, %v574
        %v5129 = vmul.f32 %v3842, %v575
        %v5130 = vmul.f32 %v3846, %v576
        %v5131 = vmul.f32 %v3850, %v577
        %v5132 = vmul.f32 %v3854, %v578
        %v5133 = vmul.f32 %v3858, %v579
        %v5134 = vmul.f32 %v3862, %v580
        %v5135 = vmul.f32 %v3866, %v581
        %v5136 = vmul.f32 %v3870, %v582
        %v5137 = vmul.f32 %v3874, %v583
        %v5138 = vmul.f32 %v3878, %v584
        %v5139 = vmul.f32 %v3882, %v585
        %v5140 = vmul.f32 %v3886, %v586
        %v5141 = vmul.f32 %v3890, %v587
        %v5142 = vmul.f32 %v3894, %v588
        %v5143 = vmul.f32 %v3898, %v589
        %v5144 = vmul.f32 %v3902, %v590
        %v5145 = vmul.f32 %v3906, %v591
        %v5146 = vmul.f32 %v3910, %v592
        %v5147 = vmul.f32 %v3914, %v593
        %v5148 = vmul.f32 %v3918, %v594
        %v5149 = vmul.f32 %v3922, %v595
        %v5150 = vmul.f32 %v3926, %v596
        %v5151 = vmul.f32 %v3930, %v597
        %v5152 = vmul.f32 %v3934, %v598
        %v5153 = vmul.f32 %v3938, %v599
        %v5154 = vmul.f32 %v3942, %v600
        %v5155 = vmul.f32 %v3946, %v601
        %v5156 = vmul.f32 %v3950, %v602
        %v5157 = vmul.f32 %v3954, %v603
        %v5158 = vmul.f32 %v3958, %v604
        %v5159 = vmul.f32 %v3962, %v605
        %v5160 = vmul.f32 %v3966, %v606
        %v5161 = vmul.f32 %v3970, %v607
        %v5162 = vmul.f32 %v3974, %v608
        %v5163 = vmul.f32 %v3978, %v609
        %v5164 = vmul.f32 %v3982, %v610
        %v5165 = vmul.f32 %v3986, %v611
        %v5166 = vmul.f32 %v3990, %v612
        %v5167 = vmul.f32 %v3994, %v613
        %v5168 = vmul.f32 %v3998, %v614
        %v5169 = vmul.f32 %v4002, %v615
        %v5170 = vmul.f32 %v4006, %v616
        %v5171 = vmul.f32 %v4010, %v617
        %v5172 = vmul.f32 %v4014, %v618
        %v5173 = vmul.f32 %v4018, %v619
        %v5174 = vmul.f32 %v4022, %v620
        %v5175 = vmul.f32 %v4026, %v621
        %v5176 = vmul.f32 %v4030, %v622
        %v5177 = vmul.f32 %v4034, %v623
        %v5178 = vmul.f32 %v4038, %v624
        %v5179 = vmul.f32 %v4042, %v625
        %v5180 = vmul.f32 %v4046, %v626
        %v5181 = vmul.f32 %v4050, %v627
        %v5182 = vmul.f32 %v4054, %v628
        %v5183 = vmul.f32 %v4058, %v629
        %v5184 = vmul.f32 %v4062, %v630
        %v5185 = vmul.f32 %v4066, %v631
        %v5186 = vmul.f32 %v4070, %v632
        %v5187 = vmul.f32 %v4074, %v633
        %v5188 = vmul.f32 %v4078, %v634
        %v5189 = vmul.f32 %v4082, %v635
        %v5190 = vmul.f32 %v4086, %v636
        %v5191 = vmul.f32 %v4090, %v637
        %v5192 = vmul.f32 %v4094, %v638
        %v5193 = vmul.f32 %v4098, %v639
        %v5194 = vmul.f32 %v4102, %v640
        %v5195 = vmul.f32 %v4106, %v641
        %v5196 = vmul.f32 %v4110, %v642
        %v5197 = vmul.f32 %v4114, %v643
        %v5198 = vmul.f32 %v4118, %v644
        %v5199 = vmul.f32 %v4122, %v645
        %v5200 = vmul.f32 %v4126, %v646
        %v5201 = vmul.f32 %v4130, %v647
        %v5202 = vmul.f32 %v4134, %v648
        %v5203 = vmul.f32 %v4138, %v649
        %v5204 = vmul.f32 %v4142, %v650
        %v5205 = vmul.f32 %v4146, %v651
        %v5206 = vmul.f32 %v4150, %v652
        %v5207 = vmul.f32 %v4154, %v653
        %v5208 = vmul.f32 %v4158, %v654
        %v5209 = vmul.f32 %v4162, %v655
        %v5210 = vmul.f32 %v4166, %v656
        %v5211 = vmul.f32 %v4170, %v657
        %v5212 = vmul.f32 %v4174, %v658
        %v5213 = vmul.f32 %v4178, %v659
        %v5214 = vmul.f32 %v4182, %v660
        %v5215 = vmul.f32 %v4186, %v661
        %v5216 = vmul.f32 %v4190, %v662
        %v5217 = vmul.f32 %v4194, %v663
        %v5218 = vmul.f32 %v4198, %v664
        %v5219 = vmul.f32 %v4202, %v665
        %v5220 = vmul.f32 %v4206, %v666
        %v5221 = vmul.f32 %v4210, %v667
        %v5222 = vmul.f32 %v4214, %v668
        %v5223 = vmul.f32 %v4218, %v669
        %v5224 = vmul.f32 %v4222, %v670
        %v5225 = vmul.f32 %v4226, %v671
        %v5226 = vmul.f32 %v4230, %v672
        %v5227 = vmul.f32 %v4234, %v673
        %v5228 = vmul.f32 %v4238, %v674
        %v5229 = vmul.f32 %v4242, %v675
        %v5230 = vmul.f32 %v4246, %v676
        %v5231 = vmul.f32 %v4250, %v677
        %v5232 = vmul.f32 %v4254, %v678
        %v5233 = vmul.f32 %v4258, %v679
        %v5234 = vmul.f32 %v4262, %v680
        %v5235 = vmul.f32 %v4266, %v681
        %v5236 = vmul.f32 %v4270, %v682
        %v5237 = vmul.f32 %v4274, %v683
        %v5238 = vmul.f32 %v4278, %v684
        %v5239 = vmul.f32 %v4282, %v685
        %v5240 = vmul.f32 %v4286, %v686
        %v5241 = vmul.f32 %v4290, %v687
        %v5242 = vmul.f32 %v4294, %v688
        %v5243 = vmul.f32 %v4298, %v689
        %v5244 = vmul.f32 %v4302, %v690
        %v5245 = vmul.f32 %v4306, %v691
        %v5246 = vmul.f32 %v4310, %v692
        %v5247 = vmul.f32 %v4314, %v693
        %v5248 = vmul.f32 %v4318, %v694
        %v5249 = vmul.f32 %v4322, %v695
        %v5250 = vmul.f32 %v4326, %v696
        %v5251 = vmul.f32 %v4330, %v697
        %v5252 = vmul.f32 %v4334, %v698
        %v5253 = vmul.f32 %v4338, %v699
        %v5254 = vmul.f32 %v4342, %v700
        %v5255 = vmul.f32 %v4346, %v701
        %v5256 = vmul.f32 %v4350, %v702
        %v5257 = vmul.f32 %v4354, %v703
        %v5258 = vmul.f32 %v4358, %v704
        %v5259 = vmul.f32 %v4362, %v705
        %v5260 = vmul.f32 %v4366, %v706
        %v5261 = vmul.f32 %v4370, %v707
        %v5262 = vmul.f32 %v4374, %v708
        %v5263 = vmul.f32 %v4378, %v709
        %v5264 = vmul.f32 %v4382, %v710
        %v5265 = vmul.f32 %v4386, %v711
        %v5266 = vmul.f32 %v4390, %v712
        %v5267 = vmul.f32 %v4394, %v713
        %v5268 = vmul.f32 %v4398, %v714
        %v5269 = vmul.f32 %v4402, %v715
        %v5270 = vmul.f32 %v4406, %v716
        %v5271 = vmul.f32 %v4410, %v717
        %v5272 = vmul.f32 %v4414, %v718
        %v5273 = vmul.f32 %v4418, %v719
        %v5274 = vmul.f32 %v4422, %v720
        %v5275 = vmul.f32 %v4426, %v721
        %v5276 = vmul.f32 %v4430, %v722
        %v5277 = vmul.f32 %v4434, %v723
        %v5278 = vmul.f32 %v4438, %v724
        %v5279 = vmul.f32 %v4442, %v725
        %v5280 = vmul.f32 %v4446, %v726
        %v5281 = vmul.f32 %v4450, %v727
        %v5282 = vmul.f32 %v4454, %v728
        %v5283 = vmul.f32 %v4458, %v729
        %v5284 = vmul.f32 %v4462, %v730
        %v5285 = vmul.f32 %v4466, %v731
        %v5286 = vmul.f32 %v4470, %v732
        %v5287 = vmul.f32 %v4474, %v733
        %v5288 = vmul.f32 %v4478, %v734
        %v5289 = vmul.f32 %v4482, %v735
        %v5290 = vmul.f32 %v4486, %v736
        %v5291 = vmul.f32 %v4490, %v737
        %v5292 = vmul.f32 %v4494, %v738
        %v5293 = vmul.f32 %v4498, %v739
        %v5294 = vmul.f32 %v4502, %v740
        %v5295 = vmul.f32 %v4506, %v741
        %v5296 = vmul.f32 %v4510, %v742
        %v5297 = vmul.f32 %v4514, %v743
        %v5298 = vmul.f32 %v4518, %v744
        %v5299 = vmul.f32 %v4522, %v745
        %v5300 = vmul.f32 %v4526, %v746
        %v5301 = vmul.f32 %v4530, %v747
        %v5302 = vmul.f32 %v4534, %v748
        %v5303 = vld [vmem:[#allocation2] sm:$0xff]
        %v5304 = vld [vmem:[#allocation2 + $0x8] sm:$0x3]
        %v5305 = vadd.f32 %v4791, %v4792
        %v5306 = vadd.f32 %v5305, %v4793
        %v5307 = vadd.f32 %v5306, %v4794
        %v5308 = vadd.f32 %v5307, %v4795
        %v5309 = vadd.f32 %v5308, %v4796
        %v5310 = vadd.f32 %v5309, %v4797
        %v5311 = vadd.f32 %v5310, %v4798
        %v5312 = vadd.f32 %v5311, %v4799
        %v5313 = vadd.f32 %v5312, %v4800
        %v5314 = vadd.f32 %v5313, %v4801
        %v5315 = vadd.f32 %v5314, %v4802
        %v5316 = vadd.f32 %v5315, %v4803
        %v5317 = vadd.f32 %v5316, %v4804
        %v5318 = vadd.f32 %v5317, %v4805
        %v5319 = vadd.f32 %v5318, %v4806
        %v5320 = vadd.f32 %v5319, %v4807
        %v5321 = vadd.f32 %v5320, %v4808
        %v5322 = vadd.f32 %v5321, %v4809
        %v5323 = vadd.f32 %v5322, %v4810
        %v5324 = vadd.f32 %v5323, %v4811
        %v5325 = vadd.f32 %v5324, %v4812
        %v5326 = vadd.f32 %v5325, %v4813
        %v5327 = vadd.f32 %v5326, %v4814
        %v5328 = vadd.f32 %v5327, %v4815
        %v5329 = vadd.f32 %v5328, %v4816
        %v5330 = vadd.f32 %v5329, %v4817
        %v5331 = vadd.f32 %v5330, %v4818
        %v5332 = vadd.f32 %v5331, %v4819
        %v5333 = vadd.f32 %v5332, %v4820
        %v5334 = vadd.f32 %v5333, %v4821
        %v5335 = vadd.f32 %v5334, %v4822
        %v5336 = vadd.f32 %v5335, %v4823
        %v5337 = vadd.f32 %v5336, %v4824
        %v5338 = vadd.f32 %v5337, %v4825
        %v5339 = vadd.f32 %v5338, %v4826
        %v5340 = vadd.f32 %v5339, %v4827
        %v5341 = vadd.f32 %v5340, %v4828
        %v5342 = vadd.f32 %v5341, %v4829
        %v5343 = vadd.f32 %v5342, %v4830
        %v5344 = vadd.f32 %v5343, %v4831
        %v5345 = vadd.f32 %v5344, %v4832
        %v5346 = vadd.f32 %v5345, %v4833
        %v5347 = vadd.f32 %v5346, %v4834
        %v5348 = vadd.f32 %v5347, %v4835
        %v5349 = vadd.f32 %v5348, %v4836
        %v5350 = vadd.f32 %v5349, %v4837
        %v5351 = vadd.f32 %v5350, %v4838
        %v5352 = vadd.f32 %v5351, %v4839
        %v5353 = vadd.f32 %v5352, %v4840
        %v5354 = vadd.f32 %v5353, %v4841
        %v5355 = vadd.f32 %v5354, %v4842
        %v5356 = vadd.f32 %v5355, %v4843
        %v5357 = vadd.f32 %v5356, %v4844
        %v5358 = vadd.f32 %v5357, %v4845
        %v5359 = vadd.f32 %v5358, %v4846
        %v5360 = vadd.f32 %v5359, %v4847
        %v5361 = vadd.f32 %v5360, %v4848
        %v5362 = vadd.f32 %v5361, %v4849
        %v5363 = vadd.f32 %v5362, %v4850
        %v5364 = vadd.f32 %v5363, %v4851
        %v5365 = vadd.f32 %v5364, %v4852
        %v5366 = vadd.f32 %v5365, %v4853
        %v5367 = vadd.f32 %v5366, %v4854
        %v5368 = vadd.f32 %v5367, %v4855
        %v5369 = vadd.f32 %v5368, %v4856
        %v5370 = vadd.f32 %v5369, %v4857
        %v5371 = vadd.f32 %v5370, %v4858
        %v5372 = vadd.f32 %v5371, %v4859
        %v5373 = vadd.f32 %v5372, %v4860
        %v5374 = vadd.f32 %v5373, %v4861
        %v5375 = vadd.f32 %v5374, %v4862
        %v5376 = vadd.f32 %v5375, %v4863
        %v5377 = vadd.f32 %v5376, %v4864
        %v5378 = vadd.f32 %v5377, %v4865
        %v5379 = vadd.f32 %v5378, %v4866
        %v5380 = vadd.f32 %v5379, %v4867
        %v5381 = vadd.f32 %v5380, %v4868
        %v5382 = vadd.f32 %v5381, %v4869
        %v5383 = vadd.f32 %v5382, %v4870
        %v5384 = vadd.f32 %v5383, %v4871
        %v5385 = vadd.f32 %v5384, %v4872
        %v5386 = vadd.f32 %v5385, %v4873
        %v5387 = vadd.f32 %v5386, %v4874
        %v5388 = vadd.f32 %v5387, %v4875
        %v5389 = vadd.f32 %v5388, %v4876
        %v5390 = vadd.f32 %v5389, %v4877
        %v5391 = vadd.f32 %v5390, %v4878
        %v5392 = vadd.f32 %v5391, %v4879
        %v5393 = vadd.f32 %v5392, %v4880
        %v5394 = vadd.f32 %v5393, %v4881
        %v5395 = vadd.f32 %v5394, %v4882
        %v5396 = vadd.f32 %v5395, %v4883
        %v5397 = vadd.f32 %v5396, %v4884
        %v5398 = vadd.f32 %v5397, %v4885
        %v5399 = vadd.f32 %v5398, %v4886
        %v5400 = vadd.f32 %v5399, %v4887
        %v5401 = vadd.f32 %v5400, %v4888
        %v5402 = vadd.f32 %v5401, %v4889
        %v5403 = vadd.f32 %v5402, %v4890
        %v5404 = vadd.f32 %v5403, %v4891
        %v5405 = vadd.f32 %v5404, %v4892
        %v5406 = vadd.f32 %v5405, %v4893
        %v5407 = vadd.f32 %v5406, %v4894
        %v5408 = vadd.f32 %v5407, %v4895
        %v5409 = vadd.f32 %v5408, %v4896
        %v5410 = vadd.f32 %v5409, %v4897
        %v5411 = vadd.f32 %v5410, %v4898
        %v5412 = vadd.f32 %v5411, %v4899
        %v5413 = vadd.f32 %v5412, %v4900
        %v5414 = vadd.f32 %v5413, %v4901
        %v5415 = vadd.f32 %v5414, %v4902
        %v5416 = vadd.f32 %v5415, %v4903
        %v5417 = vadd.f32 %v5416, %v4904
        %v5418 = vadd.f32 %v5417, %v4905
        %v5419 = vadd.f32 %v5418, %v4906
        %v5420 = vadd.f32 %v5419, %v4907
        %v5421 = vadd.f32 %v5420, %v4908
        %v5422 = vadd.f32 %v5421, %v4909
        %v5423 = vadd.f32 %v5422, %v4910
        %v5424 = vadd.f32 %v5423, %v4911
        %v5425 = vadd.f32 %v5424, %v4912
        %v5426 = vadd.f32 %v5425, %v4913
        %v5427 = vadd.f32 %v5426, %v4914
        %v5428 = vadd.f32 %v5427, %v4915
        %v5429 = vadd.f32 %v5428, %v4916
        %v5430 = vadd.f32 %v5429, %v4917
        %v5431 = vadd.f32 %v5430, %v4918
        %v5432 = vadd.f32 %v5431, %v4919
        %v5433 = vadd.f32 %v5432, %v4920
        %v5434 = vadd.f32 %v5433, %v4921
        %v5435 = vadd.f32 %v5434, %v4922
        %v5436 = vadd.f32 %v5435, %v4923
        %v5437 = vadd.f32 %v5436, %v4924
        %v5438 = vadd.f32 %v5437, %v4925
        %v5439 = vadd.f32 %v5438, %v4926
        %v5440 = vadd.f32 %v5439, %v4927
        %v5441 = vadd.f32 %v5440, %v4928
        %v5442 = vadd.f32 %v5441, %v4929
        %v5443 = vadd.f32 %v5442, %v4930
        %v5444 = vadd.f32 %v5443, %v4931
        %v5445 = vadd.f32 %v5444, %v4932
        %v5446 = vadd.f32 %v5445, %v4933
        %v5447 = vadd.f32 %v5446, %v4934
        %v5448 = vadd.f32 %v5447, %v4935
        %v5449 = vadd.f32 %v5448, %v4936
        %v5450 = vadd.f32 %v5449, %v4937
        %v5451 = vadd.f32 %v5450, %v4938
        %v5452 = vadd.f32 %v5451, %v4939
        %v5453 = vadd.f32 %v5452, %v4940
        %v5454 = vadd.f32 %v5453, %v4941
        %v5455 = vadd.f32 %v5454, %v4942
        %v5456 = vadd.f32 %v5455, %v4943
        %v5457 = vadd.f32 %v5456, %v4944
        %v5458 = vadd.f32 %v5457, %v4945
        %v5459 = vadd.f32 %v5458, %v4946
        %v5460 = vadd.f32 %v5459, %v4947
        %v5461 = vadd.f32 %v5460, %v4948
        %v5462 = vadd.f32 %v5461, %v4949
        %v5463 = vadd.f32 %v5462, %v4950
        %v5464 = vadd.f32 %v5463, %v4951
        %v5465 = vadd.f32 %v5464, %v4952
        %v5466 = vadd.f32 %v5465, %v4953
        %v5467 = vadd.f32 %v5466, %v4954
        %v5468 = vadd.f32 %v5467, %v4955
        %v5469 = vadd.f32 %v5468, %v4956
        %v5470 = vadd.f32 %v5469, %v4957
        %v5471 = vadd.f32 %v5470, %v4958
        %v5472 = vadd.f32 %v5471, %v4959
        %v5473 = vadd.f32 %v5472, %v4960
        %v5474 = vadd.f32 %v5473, %v4961
        %v5475 = vadd.f32 %v5474, %v4962
        %v5476 = vadd.f32 %v5475, %v4963
        %v5477 = vadd.f32 %v5476, %v4964
        %v5478 = vadd.f32 %v5477, %v4965
        %v5479 = vadd.f32 %v5478, %v4966
        %v5480 = vadd.f32 %v5479, %v4967
        %v5481 = vadd.f32 %v5480, %v4968
        %v5482 = vadd.f32 %v5481, %v4969
        %v5483 = vadd.f32 %v5482, %v4970
        %v5484 = vadd.f32 %v5483, %v4971
        %v5485 = vadd.f32 %v5484, %v4972
        %v5486 = vadd.f32 %v5485, %v4973
        %v5487 = vadd.f32 %v5486, %v4974
        %v5488 = vadd.f32 %v5487, %v4975
        %v5489 = vadd.f32 %v5488, %v4976
        %v5490 = vadd.f32 %v5489, %v4977
        %v5491 = vadd.f32 %v5490, %v4978
        %v5492 = vadd.f32 %v5491, %v4979
        %v5493 = vadd.f32 %v5492, %v4980
        %v5494 = vadd.f32 %v5493, %v4981
        %v5495 = vadd.f32 %v5494, %v4982
        %v5496 = vadd.f32 %v5495, %v4983
        %v5497 = vadd.f32 %v5496, %v4984
        %v5498 = vadd.f32 %v5497, %v4985
        %v5499 = vadd.f32 %v5498, %v4986
        %v5500 = vadd.f32 %v5499, %v4987
        %v5501 = vadd.f32 %v5500, %v4988
        %v5502 = vadd.f32 %v5501, %v4989
        %v5503 = vadd.f32 %v5502, %v4990
        %v5504 = vadd.f32 %v5503, %v4991
        %v5505 = vadd.f32 %v5504, %v4992
        %v5506 = vadd.f32 %v5505, %v4993
        %v5507 = vadd.f32 %v5506, %v4994
        %v5508 = vadd.f32 %v5507, %v4995
        %v5509 = vadd.f32 %v5508, %v4996
        %v5510 = vadd.f32 %v5509, %v4997
        %v5511 = vadd.f32 %v5510, %v4998
        %v5512 = vadd.f32 %v5511, %v4999
        %v5513 = vadd.f32 %v5512, %v5000
        %v5514 = vadd.f32 %v5513, %v5001
        %v5515 = vadd.f32 %v5514, %v5002
        %v5516 = vadd.f32 %v5515, %v5003
        %v5517 = vadd.f32 %v5516, %v5004
        %v5518 = vadd.f32 %v5517, %v5005
        %v5519 = vadd.f32 %v5518, %v5006
        %v5520 = vadd.f32 %v5519, %v5007
        %v5521 = vadd.f32 %v5520, %v5008
        %v5522 = vadd.f32 %v5521, %v5009
        %v5523 = vadd.f32 %v5522, %v5010
        %v5524 = vadd.f32 %v5523, %v5011
        %v5525 = vadd.f32 %v5524, %v5012
        %v5526 = vadd.f32 %v5525, %v5013
        %v5527 = vadd.f32 %v5526, %v5014
        %v5528 = vadd.f32 %v5527, %v5015
        %v5529 = vadd.f32 %v5528, %v5016
        %v5530 = vadd.f32 %v5529, %v5017
        %v5531 = vadd.f32 %v5530, %v5018
        %v5532 = vadd.f32 %v5531, %v5019
        %v5533 = vadd.f32 %v5532, %v5020
        %v5534 = vadd.f32 %v5533, %v5021
        %v5535 = vadd.f32 %v5534, %v5022
        %v5536 = vadd.f32 %v5535, %v5023
        %v5537 = vadd.f32 %v5536, %v5024
        %v5538 = vadd.f32 %v5537, %v5025
        %v5539 = vadd.f32 %v5538, %v5026
        %v5540 = vadd.f32 %v5539, %v5027
        %v5541 = vadd.f32 %v5540, %v5028
        %v5542 = vadd.f32 %v5541, %v5029
        %v5543 = vadd.f32 %v5542, %v5030
        %v5544 = vadd.f32 %v5543, %v5031
        %v5545 = vadd.f32 %v5544, %v5032
        %v5546 = vadd.f32 %v5545, %v5033
        %v5547 = vadd.f32 %v5546, %v5034
        %v5548 = vadd.f32 %v5547, %v5035
        %v5549 = vadd.f32 %v5548, %v5036
        %v5550 = vadd.f32 %v5549, %v5037
        %v5551 = vadd.f32 %v5550, %v5038
        %v5552 = vadd.f32 %v5551, %v5039
        %v5553 = vadd.f32 %v5552, %v5040
        %v5554 = vadd.f32 %v5553, %v5041
        %v5555 = vadd.f32 %v5554, %v5042
        %v5556 = vadd.f32 %v5555, %v5043
        %v5557 = vadd.f32 %v5556, %v5044
        %v5558 = vadd.f32 %v5557, %v5045
        %v5559 = vadd.f32 %v5558, %v5046
        %5560 = vadd.xlane.f32.xlu0 %v5559
        %v5561 = vpop.xlane.xlu0 %5560
        %v5562 = vsel %vm2895, %v5047, 0.0
        %v5563 = vsel %vm2895, %v5048, 0.0
        %v5564 = vadd.f32 %v5562, %v5563
        %v5565 = vsel %vm2895, %v5049, 0.0
        %v5566 = vadd.f32 %v5564, %v5565
        %v5567 = vsel %vm2895, %v5050, 0.0
        %v5568 = vadd.f32 %v5566, %v5567
        %v5569 = vsel %vm2895, %v5051, 0.0
        %v5570 = vadd.f32 %v5568, %v5569
        %v5571 = vsel %vm2895, %v5052, 0.0
        %v5572 = vadd.f32 %v5570, %v5571
        %v5573 = vsel %vm2895, %v5053, 0.0
        %v5574 = vadd.f32 %v5572, %v5573
        %v5575 = vsel %vm2895, %v5054, 0.0
        %v5576 = vadd.f32 %v5574, %v5575
        %v5577 = vsel %vm2895, %v5055, 0.0
        %v5578 = vadd.f32 %v5576, %v5577
        %v5579 = vsel %vm2895, %v5056, 0.0
        %v5580 = vadd.f32 %v5578, %v5579
        %v5581 = vsel %vm2895, %v5057, 0.0
        %v5582 = vadd.f32 %v5580, %v5581
        %v5583 = vsel %vm2895, %v5058, 0.0
        %v5584 = vadd.f32 %v5582, %v5583
        %v5585 = vsel %vm2895, %v5059, 0.0
        %v5586 = vadd.f32 %v5584, %v5585
        %v5587 = vsel %vm2895, %v5060, 0.0
        %v5588 = vadd.f32 %v5586, %v5587
        %v5589 = vsel %vm2895, %v5061, 0.0
        %v5590 = vadd.f32 %v5588, %v5589
        %v5591 = vsel %vm2895, %v5062, 0.0
        %v5592 = vadd.f32 %v5590, %v5591
        %v5593 = vsel %vm2895, %v5063, 0.0
        %v5594 = vadd.f32 %v5592, %v5593
        %v5595 = vsel %vm2895, %v5064, 0.0
        %v5596 = vadd.f32 %v5594, %v5595
        %v5597 = vsel %vm2895, %v5065, 0.0
        %v5598 = vadd.f32 %v5596, %v5597
        %v5599 = vsel %vm2895, %v5066, 0.0
        %v5600 = vadd.f32 %v5598, %v5599
        %v5601 = vsel %vm2895, %v5067, 0.0
        %v5602 = vadd.f32 %v5600, %v5601
        %v5603 = vsel %vm2895, %v5068, 0.0
        %v5604 = vadd.f32 %v5602, %v5603
        %v5605 = vsel %vm2895, %v5069, 0.0
        %v5606 = vadd.f32 %v5604, %v5605
        %v5607 = vsel %vm2895, %v5070, 0.0
        %v5608 = vadd.f32 %v5606, %v5607
        %v5609 = vsel %vm2895, %v5071, 0.0
        %v5610 = vadd.f32 %v5608, %v5609
        %v5611 = vsel %vm2895, %v5072, 0.0
        %v5612 = vadd.f32 %v5610, %v5611
        %v5613 = vsel %vm2895, %v5073, 0.0
        %v5614 = vadd.f32 %v5612, %v5613
        %v5615 = vsel %vm2895, %v5074, 0.0
        %v5616 = vadd.f32 %v5614, %v5615
        %v5617 = vsel %vm2895, %v5075, 0.0
        %v5618 = vadd.f32 %v5616, %v5617
        %v5619 = vsel %vm2895, %v5076, 0.0
        %v5620 = vadd.f32 %v5618, %v5619
        %v5621 = vsel %vm2895, %v5077, 0.0
        %v5622 = vadd.f32 %v5620, %v5621
        %v5623 = vsel %vm2895, %v5078, 0.0
        %v5624 = vadd.f32 %v5622, %v5623
        %v5625 = vsel %vm2895, %v5079, 0.0
        %v5626 = vadd.f32 %v5624, %v5625
        %v5627 = vsel %vm2895, %v5080, 0.0
        %v5628 = vadd.f32 %v5626, %v5627
        %v5629 = vsel %vm2895, %v5081, 0.0
        %v5630 = vadd.f32 %v5628, %v5629
        %v5631 = vsel %vm2895, %v5082, 0.0
        %v5632 = vadd.f32 %v5630, %v5631
        %v5633 = vsel %vm2895, %v5083, 0.0
        %v5634 = vadd.f32 %v5632, %v5633
        %v5635 = vsel %vm2895, %v5084, 0.0
        %v5636 = vadd.f32 %v5634, %v5635
        %v5637 = vsel %vm2895, %v5085, 0.0
        %v5638 = vadd.f32 %v5636, %v5637
        %v5639 = vsel %vm2895, %v5086, 0.0
        %v5640 = vadd.f32 %v5638, %v5639
        %v5641 = vsel %vm2895, %v5087, 0.0
        %v5642 = vadd.f32 %v5640, %v5641
        %v5643 = vsel %vm2895, %v5088, 0.0
        %v5644 = vadd.f32 %v5642, %v5643
        %v5645 = vsel %vm2895, %v5089, 0.0
        %v5646 = vadd.f32 %v5644, %v5645
        %v5647 = vsel %vm2895, %v5090, 0.0
        %v5648 = vadd.f32 %v5646, %v5647
        %v5649 = vsel %vm2895, %v5091, 0.0
        %v5650 = vadd.f32 %v5648, %v5649
        %v5651 = vsel %vm2895, %v5092, 0.0
        %v5652 = vadd.f32 %v5650, %v5651
        %v5653 = vsel %vm2895, %v5093, 0.0
        %v5654 = vadd.f32 %v5652, %v5653
        %v5655 = vsel %vm2895, %v5094, 0.0
        %v5656 = vadd.f32 %v5654, %v5655
        %v5657 = vsel %vm2895, %v5095, 0.0
        %v5658 = vadd.f32 %v5656, %v5657
        %v5659 = vsel %vm2895, %v5096, 0.0
        %v5660 = vadd.f32 %v5658, %v5659
        %v5661 = vsel %vm2895, %v5097, 0.0
        %v5662 = vadd.f32 %v5660, %v5661
        %v5663 = vsel %vm2895, %v5098, 0.0
        %v5664 = vadd.f32 %v5662, %v5663
        %v5665 = vsel %vm2895, %v5099, 0.0
        %v5666 = vadd.f32 %v5664, %v5665
        %v5667 = vsel %vm2895, %v5100, 0.0
        %v5668 = vadd.f32 %v5666, %v5667
        %v5669 = vsel %vm2895, %v5101, 0.0
        %v5670 = vadd.f32 %v5668, %v5669
        %v5671 = vsel %vm2895, %v5102, 0.0
        %v5672 = vadd.f32 %v5670, %v5671
        %v5673 = vsel %vm2895, %v5103, 0.0
        %v5674 = vadd.f32 %v5672, %v5673
        %v5675 = vsel %vm2895, %v5104, 0.0
        %v5676 = vadd.f32 %v5674, %v5675
        %v5677 = vsel %vm2895, %v5105, 0.0
        %v5678 = vadd.f32 %v5676, %v5677
        %v5679 = vsel %vm2895, %v5106, 0.0
        %v5680 = vadd.f32 %v5678, %v5679
        %v5681 = vsel %vm2895, %v5107, 0.0
        %v5682 = vadd.f32 %v5680, %v5681
        %v5683 = vsel %vm2895, %v5108, 0.0
        %v5684 = vadd.f32 %v5682, %v5683
        %v5685 = vsel %vm2895, %v5109, 0.0
        %v5686 = vadd.f32 %v5684, %v5685
        %v5687 = vsel %vm2895, %v5110, 0.0
        %v5688 = vadd.f32 %v5686, %v5687
        %v5689 = vsel %vm2895, %v5111, 0.0
        %v5690 = vadd.f32 %v5688, %v5689
        %v5691 = vsel %vm2895, %v5112, 0.0
        %v5692 = vadd.f32 %v5690, %v5691
        %v5693 = vsel %vm2895, %v5113, 0.0
        %v5694 = vadd.f32 %v5692, %v5693
        %v5695 = vsel %vm2895, %v5114, 0.0
        %v5696 = vadd.f32 %v5694, %v5695
        %v5697 = vsel %vm2895, %v5115, 0.0
        %v5698 = vadd.f32 %v5696, %v5697
        %v5699 = vsel %vm2895, %v5116, 0.0
        %v5700 = vadd.f32 %v5698, %v5699
        %v5701 = vsel %vm2895, %v5117, 0.0
        %v5702 = vadd.f32 %v5700, %v5701
        %v5703 = vsel %vm2895, %v5118, 0.0
        %v5704 = vadd.f32 %v5702, %v5703
        %v5705 = vsel %vm2895, %v5119, 0.0
        %v5706 = vadd.f32 %v5704, %v5705
        %v5707 = vsel %vm2895, %v5120, 0.0
        %v5708 = vadd.f32 %v5706, %v5707
        %v5709 = vsel %vm2895, %v5121, 0.0
        %v5710 = vadd.f32 %v5708, %v5709
        %v5711 = vsel %vm2895, %v5122, 0.0
        %v5712 = vadd.f32 %v5710, %v5711
        %v5713 = vsel %vm2895, %v5123, 0.0
        %v5714 = vadd.f32 %v5712, %v5713
        %v5715 = vsel %vm2895, %v5124, 0.0
        %v5716 = vadd.f32 %v5714, %v5715
        %v5717 = vsel %vm2895, %v5125, 0.0
        %v5718 = vadd.f32 %v5716, %v5717
        %v5719 = vsel %vm2895, %v5126, 0.0
        %v5720 = vadd.f32 %v5718, %v5719
        %v5721 = vsel %vm2895, %v5127, 0.0
        %v5722 = vadd.f32 %v5720, %v5721
        %v5723 = vsel %vm2895, %v5128, 0.0
        %v5724 = vadd.f32 %v5722, %v5723
        %v5725 = vsel %vm2895, %v5129, 0.0
        %v5726 = vadd.f32 %v5724, %v5725
        %v5727 = vsel %vm2895, %v5130, 0.0
        %v5728 = vadd.f32 %v5726, %v5727
        %v5729 = vsel %vm2895, %v5131, 0.0
        %v5730 = vadd.f32 %v5728, %v5729
        %v5731 = vsel %vm2895, %v5132, 0.0
        %v5732 = vadd.f32 %v5730, %v5731
        %v5733 = vsel %vm2895, %v5133, 0.0
        %v5734 = vadd.f32 %v5732, %v5733
        %v5735 = vsel %vm2895, %v5134, 0.0
        %v5736 = vadd.f32 %v5734, %v5735
        %v5737 = vsel %vm2895, %v5135, 0.0
        %v5738 = vadd.f32 %v5736, %v5737
        %v5739 = vsel %vm2895, %v5136, 0.0
        %v5740 = vadd.f32 %v5738, %v5739
        %v5741 = vsel %vm2895, %v5137, 0.0
        %v5742 = vadd.f32 %v5740, %v5741
        %v5743 = vsel %vm2895, %v5138, 0.0
        %v5744 = vadd.f32 %v5742, %v5743
        %v5745 = vsel %vm2895, %v5139, 0.0
        %v5746 = vadd.f32 %v5744, %v5745
        %v5747 = vsel %vm2895, %v5140, 0.0
        %v5748 = vadd.f32 %v5746, %v5747
        %v5749 = vsel %vm2895, %v5141, 0.0
        %v5750 = vadd.f32 %v5748, %v5749
        %v5751 = vsel %vm2895, %v5142, 0.0
        %v5752 = vadd.f32 %v5750, %v5751
        %v5753 = vsel %vm2895, %v5143, 0.0
        %v5754 = vadd.f32 %v5752, %v5753
        %v5755 = vsel %vm2895, %v5144, 0.0
        %v5756 = vadd.f32 %v5754, %v5755
        %v5757 = vsel %vm2895, %v5145, 0.0
        %v5758 = vadd.f32 %v5756, %v5757
        %v5759 = vsel %vm2895, %v5146, 0.0
        %v5760 = vadd.f32 %v5758, %v5759
        %v5761 = vsel %vm2895, %v5147, 0.0
        %v5762 = vadd.f32 %v5760, %v5761
        %v5763 = vsel %vm2895, %v5148, 0.0
        %v5764 = vadd.f32 %v5762, %v5763
        %v5765 = vsel %vm2895, %v5149, 0.0
        %v5766 = vadd.f32 %v5764, %v5765
        %v5767 = vsel %vm2895, %v5150, 0.0
        %v5768 = vadd.f32 %v5766, %v5767
        %v5769 = vsel %vm2895, %v5151, 0.0
        %v5770 = vadd.f32 %v5768, %v5769
        %v5771 = vsel %vm2895, %v5152, 0.0
        %v5772 = vadd.f32 %v5770, %v5771
        %v5773 = vsel %vm2895, %v5153, 0.0
        %v5774 = vadd.f32 %v5772, %v5773
        %v5775 = vsel %vm2895, %v5154, 0.0
        %v5776 = vadd.f32 %v5774, %v5775
        %v5777 = vsel %vm2895, %v5155, 0.0
        %v5778 = vadd.f32 %v5776, %v5777
        %v5779 = vsel %vm2895, %v5156, 0.0
        %v5780 = vadd.f32 %v5778, %v5779
        %v5781 = vsel %vm2895, %v5157, 0.0
        %v5782 = vadd.f32 %v5780, %v5781
        %v5783 = vsel %vm2895, %v5158, 0.0
        %v5784 = vadd.f32 %v5782, %v5783
        %v5785 = vsel %vm2895, %v5159, 0.0
        %v5786 = vadd.f32 %v5784, %v5785
        %v5787 = vsel %vm2895, %v5160, 0.0
        %v5788 = vadd.f32 %v5786, %v5787
        %v5789 = vsel %vm2895, %v5161, 0.0
        %v5790 = vadd.f32 %v5788, %v5789
        %v5791 = vsel %vm2895, %v5162, 0.0
        %v5792 = vadd.f32 %v5790, %v5791
        %v5793 = vsel %vm2895, %v5163, 0.0
        %v5794 = vadd.f32 %v5792, %v5793
        %v5795 = vsel %vm2895, %v5164, 0.0
        %v5796 = vadd.f32 %v5794, %v5795
        %v5797 = vsel %vm2895, %v5165, 0.0
        %v5798 = vadd.f32 %v5796, %v5797
        %v5799 = vsel %vm2895, %v5166, 0.0
        %v5800 = vadd.f32 %v5798, %v5799
        %v5801 = vsel %vm2895, %v5167, 0.0
        %v5802 = vadd.f32 %v5800, %v5801
        %v5803 = vsel %vm2895, %v5168, 0.0
        %v5804 = vadd.f32 %v5802, %v5803
        %v5805 = vsel %vm2895, %v5169, 0.0
        %v5806 = vadd.f32 %v5804, %v5805
        %v5807 = vsel %vm2895, %v5170, 0.0
        %v5808 = vadd.f32 %v5806, %v5807
        %v5809 = vsel %vm2895, %v5171, 0.0
        %v5810 = vadd.f32 %v5808, %v5809
        %v5811 = vsel %vm2895, %v5172, 0.0
        %v5812 = vadd.f32 %v5810, %v5811
        %v5813 = vsel %vm2895, %v5173, 0.0
        %v5814 = vadd.f32 %v5812, %v5813
        %v5815 = vsel %vm2895, %v5174, 0.0
        %v5816 = vadd.f32 %v5814, %v5815
        %v5817 = vsel %vm2895, %v5175, 0.0
        %v5818 = vadd.f32 %v5816, %v5817
        %v5819 = vsel %vm2895, %v5176, 0.0
        %v5820 = vadd.f32 %v5818, %v5819
        %v5821 = vsel %vm2895, %v5177, 0.0
        %v5822 = vadd.f32 %v5820, %v5821
        %v5823 = vsel %vm2895, %v5178, 0.0
        %v5824 = vadd.f32 %v5822, %v5823
        %v5825 = vsel %vm2895, %v5179, 0.0
        %v5826 = vadd.f32 %v5824, %v5825
        %v5827 = vsel %vm2895, %v5180, 0.0
        %v5828 = vadd.f32 %v5826, %v5827
        %v5829 = vsel %vm2895, %v5181, 0.0
        %v5830 = vadd.f32 %v5828, %v5829
        %v5831 = vsel %vm2895, %v5182, 0.0
        %v5832 = vadd.f32 %v5830, %v5831
        %v5833 = vsel %vm2895, %v5183, 0.0
        %v5834 = vadd.f32 %v5832, %v5833
        %v5835 = vsel %vm2895, %v5184, 0.0
        %v5836 = vadd.f32 %v5834, %v5835
        %v5837 = vsel %vm2895, %v5185, 0.0
        %v5838 = vadd.f32 %v5836, %v5837
        %v5839 = vsel %vm2895, %v5186, 0.0
        %v5840 = vadd.f32 %v5838, %v5839
        %v5841 = vsel %vm2895, %v5187, 0.0
        %v5842 = vadd.f32 %v5840, %v5841
        %v5843 = vsel %vm2895, %v5188, 0.0
        %v5844 = vadd.f32 %v5842, %v5843
        %v5845 = vsel %vm2895, %v5189, 0.0
        %v5846 = vadd.f32 %v5844, %v5845
        %v5847 = vsel %vm2895, %v5190, 0.0
        %v5848 = vadd.f32 %v5846, %v5847
        %v5849 = vsel %vm2895, %v5191, 0.0
        %v5850 = vadd.f32 %v5848, %v5849
        %v5851 = vsel %vm2895, %v5192, 0.0
        %v5852 = vadd.f32 %v5850, %v5851
        %v5853 = vsel %vm2895, %v5193, 0.0
        %v5854 = vadd.f32 %v5852, %v5853
        %v5855 = vsel %vm2895, %v5194, 0.0
        %v5856 = vadd.f32 %v5854, %v5855
        %v5857 = vsel %vm2895, %v5195, 0.0
        %v5858 = vadd.f32 %v5856, %v5857
        %v5859 = vsel %vm2895, %v5196, 0.0
        %v5860 = vadd.f32 %v5858, %v5859
        %v5861 = vsel %vm2895, %v5197, 0.0
        %v5862 = vadd.f32 %v5860, %v5861
        %v5863 = vsel %vm2895, %v5198, 0.0
        %v5864 = vadd.f32 %v5862, %v5863
        %v5865 = vsel %vm2895, %v5199, 0.0
        %v5866 = vadd.f32 %v5864, %v5865
        %v5867 = vsel %vm2895, %v5200, 0.0
        %v5868 = vadd.f32 %v5866, %v5867
        %v5869 = vsel %vm2895, %v5201, 0.0
        %v5870 = vadd.f32 %v5868, %v5869
        %v5871 = vsel %vm2895, %v5202, 0.0
        %v5872 = vadd.f32 %v5870, %v5871
        %v5873 = vsel %vm2895, %v5203, 0.0
        %v5874 = vadd.f32 %v5872, %v5873
        %v5875 = vsel %vm2895, %v5204, 0.0
        %v5876 = vadd.f32 %v5874, %v5875
        %v5877 = vsel %vm2895, %v5205, 0.0
        %v5878 = vadd.f32 %v5876, %v5877
        %v5879 = vsel %vm2895, %v5206, 0.0
        %v5880 = vadd.f32 %v5878, %v5879
        %v5881 = vsel %vm2895, %v5207, 0.0
        %v5882 = vadd.f32 %v5880, %v5881
        %v5883 = vsel %vm2895, %v5208, 0.0
        %v5884 = vadd.f32 %v5882, %v5883
        %v5885 = vsel %vm2895, %v5209, 0.0
        %v5886 = vadd.f32 %v5884, %v5885
        %v5887 = vsel %vm2895, %v5210, 0.0
        %v5888 = vadd.f32 %v5886, %v5887
        %v5889 = vsel %vm2895, %v5211, 0.0
        %v5890 = vadd.f32 %v5888, %v5889
        %v5891 = vsel %vm2895, %v5212, 0.0
        %v5892 = vadd.f32 %v5890, %v5891
        %v5893 = vsel %vm2895, %v5213, 0.0
        %v5894 = vadd.f32 %v5892, %v5893
        %v5895 = vsel %vm2895, %v5214, 0.0
        %v5896 = vadd.f32 %v5894, %v5895
        %v5897 = vsel %vm2895, %v5215, 0.0
        %v5898 = vadd.f32 %v5896, %v5897
        %v5899 = vsel %vm2895, %v5216, 0.0
        %v5900 = vadd.f32 %v5898, %v5899
        %v5901 = vsel %vm2895, %v5217, 0.0
        %v5902 = vadd.f32 %v5900, %v5901
        %v5903 = vsel %vm2895, %v5218, 0.0
        %v5904 = vadd.f32 %v5902, %v5903
        %v5905 = vsel %vm2895, %v5219, 0.0
        %v5906 = vadd.f32 %v5904, %v5905
        %v5907 = vsel %vm2895, %v5220, 0.0
        %v5908 = vadd.f32 %v5906, %v5907
        %v5909 = vsel %vm2895, %v5221, 0.0
        %v5910 = vadd.f32 %v5908, %v5909
        %v5911 = vsel %vm2895, %v5222, 0.0
        %v5912 = vadd.f32 %v5910, %v5911
        %v5913 = vsel %vm2895, %v5223, 0.0
        %v5914 = vadd.f32 %v5912, %v5913
        %v5915 = vsel %vm2895, %v5224, 0.0
        %v5916 = vadd.f32 %v5914, %v5915
        %v5917 = vsel %vm2895, %v5225, 0.0
        %v5918 = vadd.f32 %v5916, %v5917
        %v5919 = vsel %vm2895, %v5226, 0.0
        %v5920 = vadd.f32 %v5918, %v5919
        %v5921 = vsel %vm2895, %v5227, 0.0
        %v5922 = vadd.f32 %v5920, %v5921
        %v5923 = vsel %vm2895, %v5228, 0.0
        %v5924 = vadd.f32 %v5922, %v5923
        %v5925 = vsel %vm2895, %v5229, 0.0
        %v5926 = vadd.f32 %v5924, %v5925
        %v5927 = vsel %vm2895, %v5230, 0.0
        %v5928 = vadd.f32 %v5926, %v5927
        %v5929 = vsel %vm2895, %v5231, 0.0
        %v5930 = vadd.f32 %v5928, %v5929
        %v5931 = vsel %vm2895, %v5232, 0.0
        %v5932 = vadd.f32 %v5930, %v5931
        %v5933 = vsel %vm2895, %v5233, 0.0
        %v5934 = vadd.f32 %v5932, %v5933
        %v5935 = vsel %vm2895, %v5234, 0.0
        %v5936 = vadd.f32 %v5934, %v5935
        %v5937 = vsel %vm2895, %v5235, 0.0
        %v5938 = vadd.f32 %v5936, %v5937
        %v5939 = vsel %vm2895, %v5236, 0.0
        %v5940 = vadd.f32 %v5938, %v5939
        %v5941 = vsel %vm2895, %v5237, 0.0
        %v5942 = vadd.f32 %v5940, %v5941
        %v5943 = vsel %vm2895, %v5238, 0.0
        %v5944 = vadd.f32 %v5942, %v5943
        %v5945 = vsel %vm2895, %v5239, 0.0
        %v5946 = vadd.f32 %v5944, %v5945
        %v5947 = vsel %vm2895, %v5240, 0.0
        %v5948 = vadd.f32 %v5946, %v5947
        %v5949 = vsel %vm2895, %v5241, 0.0
        %v5950 = vadd.f32 %v5948, %v5949
        %v5951 = vsel %vm2895, %v5242, 0.0
        %v5952 = vadd.f32 %v5950, %v5951
        %v5953 = vsel %vm2895, %v5243, 0.0
        %v5954 = vadd.f32 %v5952, %v5953
        %v5955 = vsel %vm2895, %v5244, 0.0
        %v5956 = vadd.f32 %v5954, %v5955
        %v5957 = vsel %vm2895, %v5245, 0.0
        %v5958 = vadd.f32 %v5956, %v5957
        %v5959 = vsel %vm2895, %v5246, 0.0
        %v5960 = vadd.f32 %v5958, %v5959
        %v5961 = vsel %vm2895, %v5247, 0.0
        %v5962 = vadd.f32 %v5960, %v5961
        %v5963 = vsel %vm2895, %v5248, 0.0
        %v5964 = vadd.f32 %v5962, %v5963
        %v5965 = vsel %vm2895, %v5249, 0.0
        %v5966 = vadd.f32 %v5964, %v5965
        %v5967 = vsel %vm2895, %v5250, 0.0
        %v5968 = vadd.f32 %v5966, %v5967
        %v5969 = vsel %vm2895, %v5251, 0.0
        %v5970 = vadd.f32 %v5968, %v5969
        %v5971 = vsel %vm2895, %v5252, 0.0
        %v5972 = vadd.f32 %v5970, %v5971
        %v5973 = vsel %vm2895, %v5253, 0.0
        %v5974 = vadd.f32 %v5972, %v5973
        %v5975 = vsel %vm2895, %v5254, 0.0
        %v5976 = vadd.f32 %v5974, %v5975
        %v5977 = vsel %vm2895, %v5255, 0.0
        %v5978 = vadd.f32 %v5976, %v5977
        %v5979 = vsel %vm2895, %v5256, 0.0
        %v5980 = vadd.f32 %v5978, %v5979
        %v5981 = vsel %vm2895, %v5257, 0.0
        %v5982 = vadd.f32 %v5980, %v5981
        %v5983 = vsel %vm2895, %v5258, 0.0
        %v5984 = vadd.f32 %v5982, %v5983
        %v5985 = vsel %vm2895, %v5259, 0.0
        %v5986 = vadd.f32 %v5984, %v5985
        %v5987 = vsel %vm2895, %v5260, 0.0
        %v5988 = vadd.f32 %v5986, %v5987
        %v5989 = vsel %vm2895, %v5261, 0.0
        %v5990 = vadd.f32 %v5988, %v5989
        %v5991 = vsel %vm2895, %v5262, 0.0
        %v5992 = vadd.f32 %v5990, %v5991
        %v5993 = vsel %vm2895, %v5263, 0.0
        %v5994 = vadd.f32 %v5992, %v5993
        %v5995 = vsel %vm2895, %v5264, 0.0
        %v5996 = vadd.f32 %v5994, %v5995
        %v5997 = vsel %vm2895, %v5265, 0.0
        %v5998 = vadd.f32 %v5996, %v5997
        %v5999 = vsel %vm2895, %v5266, 0.0
        %v6000 = vadd.f32 %v5998, %v5999
        %v6001 = vsel %vm2895, %v5267, 0.0
        %v6002 = vadd.f32 %v6000, %v6001
        %v6003 = vsel %vm2895, %v5268, 0.0
        %v6004 = vadd.f32 %v6002, %v6003
        %v6005 = vsel %vm2895, %v5269, 0.0
        %v6006 = vadd.f32 %v6004, %v6005
        %v6007 = vsel %vm2895, %v5270, 0.0
        %v6008 = vadd.f32 %v6006, %v6007
        %v6009 = vsel %vm2895, %v5271, 0.0
        %v6010 = vadd.f32 %v6008, %v6009
        %v6011 = vsel %vm2895, %v5272, 0.0
        %v6012 = vadd.f32 %v6010, %v6011
        %v6013 = vsel %vm2895, %v5273, 0.0
        %v6014 = vadd.f32 %v6012, %v6013
        %v6015 = vsel %vm2895, %v5274, 0.0
        %v6016 = vadd.f32 %v6014, %v6015
        %v6017 = vsel %vm2895, %v5275, 0.0
        %v6018 = vadd.f32 %v6016, %v6017
        %v6019 = vsel %vm2895, %v5276, 0.0
        %v6020 = vadd.f32 %v6018, %v6019
        %v6021 = vsel %vm2895, %v5277, 0.0
        %v6022 = vadd.f32 %v6020, %v6021
        %v6023 = vsel %vm2895, %v5278, 0.0
        %v6024 = vadd.f32 %v6022, %v6023
        %v6025 = vsel %vm2895, %v5279, 0.0
        %v6026 = vadd.f32 %v6024, %v6025
        %v6027 = vsel %vm2895, %v5280, 0.0
        %v6028 = vadd.f32 %v6026, %v6027
        %v6029 = vsel %vm2895, %v5281, 0.0
        %v6030 = vadd.f32 %v6028, %v6029
        %v6031 = vsel %vm2895, %v5282, 0.0
        %v6032 = vadd.f32 %v6030, %v6031
        %v6033 = vsel %vm2895, %v5283, 0.0
        %v6034 = vadd.f32 %v6032, %v6033
        %v6035 = vsel %vm2895, %v5284, 0.0
        %v6036 = vadd.f32 %v6034, %v6035
        %v6037 = vsel %vm2895, %v5285, 0.0
        %v6038 = vadd.f32 %v6036, %v6037
        %v6039 = vsel %vm2895, %v5286, 0.0
        %v6040 = vadd.f32 %v6038, %v6039
        %v6041 = vsel %vm2895, %v5287, 0.0
        %v6042 = vadd.f32 %v6040, %v6041
        %v6043 = vsel %vm2895, %v5288, 0.0
        %v6044 = vadd.f32 %v6042, %v6043
        %v6045 = vsel %vm2895, %v5289, 0.0
        %v6046 = vadd.f32 %v6044, %v6045
        %v6047 = vsel %vm2895, %v5290, 0.0
        %v6048 = vadd.f32 %v6046, %v6047
        %v6049 = vsel %vm2895, %v5291, 0.0
        %v6050 = vadd.f32 %v6048, %v6049
        %v6051 = vsel %vm2895, %v5292, 0.0
        %v6052 = vadd.f32 %v6050, %v6051
        %v6053 = vsel %vm2895, %v5293, 0.0
        %v6054 = vadd.f32 %v6052, %v6053
        %v6055 = vsel %vm2895, %v5294, 0.0
        %v6056 = vadd.f32 %v6054, %v6055
        %v6057 = vsel %vm2895, %v5295, 0.0
        %v6058 = vadd.f32 %v6056, %v6057
        %v6059 = vsel %vm2895, %v5296, 0.0
        %v6060 = vadd.f32 %v6058, %v6059
        %v6061 = vsel %vm2895, %v5297, 0.0
        %v6062 = vadd.f32 %v6060, %v6061
        %v6063 = vsel %vm2895, %v5298, 0.0
        %v6064 = vadd.f32 %v6062, %v6063
        %v6065 = vsel %vm2895, %v5299, 0.0
        %v6066 = vadd.f32 %v6064, %v6065
        %v6067 = vsel %vm2895, %v5300, 0.0
        %v6068 = vadd.f32 %v6066, %v6067
        %v6069 = vsel %vm2895, %v5301, 0.0
        %v6070 = vadd.f32 %v6068, %v6069
        %v6071 = vsel %vm2895, %v5302, 0.0
        %v6072 = vadd.f32 %v6070, %v6071
        %6073 = vadd.xlane.f32.xlu0 %v6072
        %v6074 = vpop.xlane.xlu0 %6073
        %v6075 = vadd.f32 %v5303, %v5561
        %v6076 = vadd.f32 %v5304, %v6074
        %vm6077 = vcmask 15368
        %6078 = vst.msk [vmem:[#allocation2] sm:$0xff] %vm6077, %v6075
        %vm6079 = vcmask 9224
        %6080 = vst.msk [vmem:[#allocation2 + $0x8] sm:$0x3] %vm6079, %v6076
        %p6081 = scmp.eq.s32.totalorder %s21, 5
        // Predicated region
        $region49: #{_ocean_forward.1} parent=31 // pred_check
          %p6082 = pneg %p6081
        $region50: #{_ocean_forward.1} parent=31 // pred_check_branch
          %6084 = sbr.rel (%p6082) target = $region52
        $region51: #{_ocean_forward.1} parent=31 // pred_region
          %v6085 = vld [vmem:[#allocation2] sm:$0xff]
          %v6086 = vld [vmem:[#allocation2 + $0x8] sm:$0x3]
          %6087 = vxpose.xlu0.b32.start [1/16] %v6085, 128
          %6088 = vxpose.xlu0.b32.cont [2/16] %v6086, 128
          %6089 = vxpose.xlu0.b32.cont [3/16] 0.0, 128
          %6090 = vxpose.xlu0.b32.cont [4/16] 0.0, 128
          %6091 = vxpose.xlu0.b32.cont [5/16] 0.0, 128
          %6092 = vxpose.xlu0.b32.cont [6/16] 0.0, 128
          %6093 = vxpose.xlu0.b32.cont [7/16] 0.0, 128
          %6094 = vxpose.xlu0.b32.cont [8/16] 0.0, 128
          %6095 = vxpose.xlu0.b32.cont [9/16] 0.0, 128
          %6096 = vxpose.xlu0.b32.cont [10/16] 0.0, 128
          %6097 = vxpose.xlu0.b32.cont [11/16] 0.0, 128
          %6098 = vxpose.xlu0.b32.cont [12/16] 0.0, 128
          %6099 = vxpose.xlu0.b32.cont [13/16] 0.0, 128
          %6100 = vxpose.xlu0.b32.cont [14/16] 0.0, 128
          %6101 = vxpose.xlu0.b32.cont [15/16] 0.0, 128
          %6102 = vxpose.xlu0.b32.end [16/16] 0.0, 128
          %v6103 = vpop.trf.xlu0
          %v6104 = vpop.trf.xlu0
          %v6105 = vpop.trf.xlu0
          %v6106 = vpop.trf.xlu0
          %v6107 = vpop.trf.xlu0
          %v6108 = vpop.trf.xlu0
          %v6109 = vpop.trf.xlu0
          %v6110 = vpop.trf.xlu0
          %v6111 = vpop.trf.xlu0
          %v6112 = vpop.trf.xlu0
          %v6113 = vpop.trf.xlu0
          %v6114 = vpop.trf.xlu0
          %v6115 = vpop.trf.xlu0
          %v6116 = vpop.trf.xlu0
          %v6117 = vpop.trf.xlu0
          %v6118 = vpop.trf.xlu0
          %v6119 = vld [vmem:[#allocation8] sm:$0x1]
          %v6121 = vlaneseq
          %v6122 = vshrl.u32 %v6121, 7
          %v6123 = vsub.s32 0, %v6122
          %v6124 = vrot.slane %v6119, %v6123
          %v6126 = vadd.f32 %v6103, %v6124
          %vm6127 = vcmask 74752
          %6128 = vst.msk [vmem:[#allocation9] sm:$0x3] %vm6127, %v6126
        $region52: #{_ocean_forward.1} parent=31 // pred_fallthru
          _
        // Predicated region
        $region53: #{_ocean_forward.1} parent=31 // pred_check
          %p6129 = pneg %p107
        $region54: #{_ocean_forward.1} parent=31 // pred_check_branch
          %6131 = sbr.rel (%p6129) target = $region56
        $region55: #{_ocean_forward.1} parent=31 // pred_region
          %s6133 = ssub.s32 32, 32
          %6134 = vsyncadd [#allocation5], %s6133
          %s6136 = sshll.u32 [#allocation9], 4
          %s6137 = int_to_ptr.vmem [resolvable:$true] %s6136
          %6139 = dma.vmem_to_hbm [thread:$0]  %s6137, 32, %s3, [#allocation5]
        $region56: #{_ocean_forward.1} parent=31 // pred_fallthru
          _
        // Predicated region
        $region57: #{_ocean_forward.1} parent=31 // pred_check
          %p6140 = pneg %p107
        $region58: #{_ocean_forward.1} parent=31 // pred_check_branch
          %6142 = sbr.rel (%p6140) target = $region60
        $region59: #{_ocean_forward.1} parent=31 // pred_region
          %6143 = dma.done [#allocation5], 32
        $region60: #{_ocean_forward.1} parent=31 // pred_fallthru
          _
      $region32: #{_ocean_forward.1} parent=5 // pred_fallthru
        _
      %p6144 = scmp.le.s32.totalorder 2, %s16
      // Predicated region
      $region61: #{_ocean_forward.1} parent=5 // pred_check
        %p6145 = pneg %p6144
      $region62: #{_ocean_forward.1} parent=5 // pred_check_branch
        %6147 = sbr.rel (%p6145) target = $region64
      $region63: #{_ocean_forward.1} parent=5 // pred_region
        %s6148 = ssub.s32 %s16, 2
      $region64: #{_ocean_forward.1} parent=5 // pred_fallthru
        _
    $region6: #{_ocean_forward.1} parent=1 // loop_footer
      %s20 = sadd.s32 1, %s16
    $region7: #{_ocean_forward.1} parent=1 // loop_footer_branch
      %15 = sbr.rel target = $region3
    $region8: #{_ocean_forward.1} parent=1 // loop_exit
      _
    %6149 = vsyncpa [#allocation4], 1
    %s6150 = scalar_lea.sflag [#allocation4], 1
    %6151 = vsyncpa %s6150, 1
    %6152 = vsyncpa [#allocation7], 1
    %s6153 = scalar_lea.sflag [#allocation7], 1
    %6154 = vsyncpa %s6153, 1
    %6155 = vsyncpa [#allocation5], 1
    %s6156 = scalar_lea.sflag [#allocation5], 1
    %6157 = vsyncpa %s6156, 1

</llo_original>
